<compile_context>
chip_gen: v6e
topology: v6e:2x2x1
jax: 0.10.0
libtpu: 0.0.40
codegen_flags: <defaults>
</compile_context>

<pallas_src>
import functools

import jax
import jax.numpy as jnp
from jax.experimental import pallas as pl
from jax.experimental.pallas import tpu as pltpu


# ----------------------------- Pallas kernel ------------------------------- #
def mfccnet_kernel(xf_ref, xa_ref,              # input tiles (Bt, Df), (Bt, Da) f32
                   wf_ref, bf_ref,              # resnet stand-in:  Df -> 64
                   wa_ref, ba_ref,              # mfcc   stand-in:  Da -> 64
                   w1f_ref, w1a_ref, b1_ref,    # fc1 (split 64|64) -> 256, BN folded
                   w2_ref, b2_ref,              # fc2 256  -> 512,  BN folded
                   w3_ref, b3_ref,              # fc3 512  -> 1024, BN folded
                   w4_ref, b4_ref,              # fc4 1024 -> 128 (padded classes)
                   out_ref):                    # (Bt, 128) f32
    f32 = jnp.float32
    bf16 = jnp.bfloat16

    # Cast inputs to bf16 in-kernel (no extra XLA pass over HBM in the wrapper).
    xf = xf_ref[...].astype(bf16)
    xa = xa_ref[...].astype(bf16)

    # --- backbone stand-ins (ResNet / CNNModel outputs, each (Bt, 64)) ---
    feat_f = jnp.maximum(
        jnp.dot(xf, wf_ref[...], preferred_element_type=f32) + bf_ref[...], 0.0)
    feat_a = jnp.maximum(
        jnp.dot(xa, wa_ref[...], preferred_element_type=f32) + ba_ref[...], 0.0)

    # concat((frames, audio), dim=1) @ W1  ==  frames @ W1[:64] + audio @ W1[64:]
    # (keeps everything on the MXU path; no cross-lane relayout)
    h = (jnp.dot(feat_f.astype(bf16), w1f_ref[...], preferred_element_type=f32)
         + jnp.dot(feat_a.astype(bf16), w1a_ref[...], preferred_element_type=f32)
         + b1_ref[...])
    h = jnp.maximum(h, 0.0)                       # BN folded into w1/b1; ReLU

    h = jnp.maximum(
        jnp.dot(h.astype(bf16), w2_ref[...], preferred_element_type=f32) + b2_ref[...],
        0.0)
    h = jnp.maximum(
        jnp.dot(h.astype(bf16), w3_ref[...], preferred_element_type=f32) + b3_ref[...],
        0.0)

    logits = jnp.dot(h.astype(bf16), w4_ref[...], preferred_element_type=f32) + b4_ref[...]
    out_ref[...] = logits.astype(out_ref.dtype)   # lane-dense (Bt, 128) store


# ------------------------------ wrapper ------------------------------------ #
def mfccnet_forward(x_frames, x_audio, params, *, batch_tile=256):
    """x_frames: (B, C, H, W) f32 ; x_audio: (B, 1, Ha, Wa) f32 -> (B, num_classes)."""
    B = x_frames.shape[0]
    xf = x_frames.reshape(B, -1)                  # contiguous reshape: no data movement
    xa = x_audio.reshape(B, -1)
    Df, Da = xf.shape[1], xa.shape[1]

    # Batch tiling: sublane-aligned, and capped so tiny batches don't pad to 256.
    B8 = max(8, ((B + 7) // 8) * 8)
    Bt = min(batch_tile, B8)
    B_pad = ((B8 + Bt - 1) // Bt) * Bt
    if B_pad != B:
        xf = jnp.pad(xf, ((0, B_pad - B), (0, 0)))
        xa = jnp.pad(xa, ((0, B_pad - B), (0, 0)))
    grid = (B_pad // Bt,)

    num_classes = params["num_classes"]           # Python int (closure constant)
    n_out_pad = params["w4"].shape[1]             # 128 (lane-dense classifier pad)

    weight_keys = ("wf", "bf", "wa", "ba",
                   "w1f", "w1a", "b1",
                   "w2", "b2", "w3", "b3", "w4", "b4")
    weight_args = tuple(params[k] for k in weight_keys)

    row_map = lambda i: (i, 0)                    # activation tiles walk the batch
    const_map = lambda i: (0, 0)                  # weights: fetched once, VMEM-resident

    in_specs = ([pl.BlockSpec((Bt, Df), row_map),
                 pl.BlockSpec((Bt, Da), row_map)]
                + [pl.BlockSpec(w.shape, const_map) for w in weight_args])
    out_spec = pl.BlockSpec((Bt, n_out_pad), row_map)

    out = pl.pallas_call(
        mfccnet_kernel,
        out_shape=jax.ShapeDtypeStruct((B_pad, n_out_pad), jnp.float32),
        grid=grid,
        in_specs=in_specs,
        out_specs=out_spec,
        compiler_params=pltpu.CompilerParams(
            dimension_semantics=("parallel",),
            vmem_limit_bytes=32 << 20),
    )(xf, xa, *weight_args)

    # Slice away batch/class padding outside the kernel.
    return out[:B, :num_classes]


# ---------------------- pure-JAX reference (same math) ---------------------- #
def mfccnet_reference(x_frames, x_audio, params):
    bf16, f32 = jnp.bfloat16, jnp.float32
    B = x_frames.shape[0]
    xf = x_frames.reshape(B, -1).astype(bf16)
    xa = x_audio.reshape(B, -1).astype(bf16)

    def dot(a, w):
        return jnp.dot(a, w, preferred_element_type=f32)

    feat_f = jnp.maximum(dot(xf, params["wf"]) + params["bf"], 0.0)
    feat_a = jnp.maximum(dot(xa, params["wa"]) + params["ba"], 0.0)
    h = (dot(feat_f.astype(bf16), params["w1f"])
         + dot(feat_a.astype(bf16), params["w1a"]) + params["b1"])
    h = jnp.maximum(h, 0.0)
    h = jnp.maximum(dot(h.astype(bf16), params["w2"]) + params["b2"], 0.0)
    h = jnp.maximum(dot(h.astype(bf16), params["w3"]) + params["b3"], 0.0)
    logits = dot(h.astype(bf16), params["w4"]) + params["b4"]
    return logits[:, :params["num_classes"]]


# ------------------------- deterministic params ----------------------------- #
def make_params(key, d_frames, d_audio,
                mfcc_output_size=64, resnet_output_size=64,
                min_key=5, max_key=80, out_pad=128):
    num_classes = max_key - min_key + 1               # 76
    d_cat = mfcc_output_size + resnet_output_size     # 128
    dims = [d_cat, 2 * d_cat, 4 * d_cat, 8 * d_cat, num_classes]

    keys = jax.random.split(key, 6)
    bf16 = jnp.bfloat16

    def lin(k, fan_in, fan_out):
        scale = 1.0 / jnp.sqrt(jnp.float32(fan_in))
        w = jax.random.uniform(k, (fan_in, fan_out), jnp.float32, -scale, scale)
        b = jnp.zeros((1, fan_out), jnp.float32)
        return w, b

    def bn_params(n, eps=1e-5):
        gamma = jnp.ones((1, n), jnp.float32)
        beta = jnp.zeros((1, n), jnp.float32)
        running_mean = jnp.zeros((1, n), jnp.float32)
        running_var = jnp.ones((1, n), jnp.float32)
        s = gamma / jnp.sqrt(running_var + eps)
        t = beta - running_mean * s
        return s, t

    def fold_bn(w, b, s, t):
        # (xW + b) * s + t  ==  x (W*s) + (b*s + t)
        return w * s, b * s + t

    p = {"num_classes": num_classes}

    wf, bf_ = lin(keys[0], d_frames, resnet_output_size)
    wa, ba = lin(keys[1], d_audio, mfcc_output_size)

    w1, b1 = lin(keys[2], dims[0], dims[1])
    w1, b1 = fold_bn(w1, b1, *bn_params(dims[1]))
    w2, b2 = lin(keys[3], dims[1], dims[2])
    w2, b2 = fold_bn(w2, b2, *bn_params(dims[2]))
    w3, b3 = lin(keys[4], dims[2], dims[3])
    w3, b3 = fold_bn(w3, b3, *bn_params(dims[3]))

    w4, b4 = lin(keys[5], dims[3], dims[4])
    # Pad the classifier to a lane-dense 128-wide output; wrapper slices back.
    w4 = jnp.pad(w4, ((0, 0), (0, out_pad - num_classes)))
    b4 = jnp.pad(b4, ((0, 0), (0, out_pad - num_classes)))

    # bf16 weights (halves HBM weight traffic); keep biases in f32.
    p["wf"], p["bf"] = wf.astype(bf16), bf_
    p["wa"], p["ba"] = wa.astype(bf16), ba
    # concat order is (resnet_frames, mfcc_audio): split w1 rows accordingly.
    p["w1f"] = w1[:resnet_output_size].astype(bf16)
    p["w1a"] = w1[resnet_output_size:].astype(bf16)
    p["b1"] = b1
    p["w2"], p["b2"] = w2.astype(bf16), b2
    p["w3"], p["b3"] = w3.astype(bf16), b3
    p["w4"], p["b4"] = w4.astype(bf16), b4
    return p


# ------------------------------- main --------------------------------------- #
if __name__ == "__main__":
    key = jax.random.PRNGKey(0)
    k_xf, k_xa, k_p = jax.random.split(key, 3)

    B, C, H, W = 4, 4, 16, 16          # video frames  (NCHW)
    Ha, Wa = 16, 8                     # MFCC "image"  (N, 1, Ha, Wa)

    x_frames = jax.random.normal(k_xf, (B, C, H, W), jnp.float32)
    x_audio = jax.random.normal(k_xa, (B, 1, Ha, Wa), jnp.float32)

    params = make_params(k_p, d_frames=C * H * W, d_audio=Ha * Wa)

    fwd = jax.jit(functools.partial(mfccnet_forward, params=params))
    y = fwd(x_frames, x_audio)
    jax.block_until_ready(y)

    assert y.shape == (B, 76), y.shape
    assert jnp.all(jnp.isfinite(y))

    # Pure-JAX reference using identical (bf16-weight) math: validates the
    # grid / BlockSpec / padding plumbing of the Pallas kernel.
    y_ref = mfccnet_reference(x_frames, x_audio, params)
    assert jnp.allclose(y, y_ref, rtol=2e-2, atol=2e-2), float(
        jnp.max(jnp.abs(y - y_ref)))

    print("KERNEL_OK")
</pallas_src>

<mosaic_0001>
module attributes {stable_mosaic.version = 11 : i64} {
  func.func @mfccnet_kernel(%arg0: i32, %arg1: memref<8x1024xf32, #tpu.memory_space<vmem>>, %arg2: memref<8x128xf32, #tpu.memory_space<vmem>>, %arg3: memref<1024x64xbf16, #tpu.memory_space<vmem>>, %arg4: memref<1x64xf32, #tpu.memory_space<vmem>>, %arg5: memref<128x64xbf16, #tpu.memory_space<vmem>>, %arg6: memref<1x64xf32, #tpu.memory_space<vmem>>, %arg7: memref<64x256xbf16, #tpu.memory_space<vmem>>, %arg8: memref<64x256xbf16, #tpu.memory_space<vmem>>, %arg9: memref<1x256xf32, #tpu.memory_space<vmem>>, %arg10: memref<256x512xbf16, #tpu.memory_space<vmem>>, %arg11: memref<1x512xf32, #tpu.memory_space<vmem>>, %arg12: memref<512x1024xbf16, #tpu.memory_space<vmem>>, %arg13: memref<1x1024xf32, #tpu.memory_space<vmem>>, %arg14: memref<1024x128xbf16, #tpu.memory_space<vmem>>, %arg15: memref<1x128xf32, #tpu.memory_space<vmem>>, %arg16: memref<8x128xf32, #tpu.memory_space<vmem>>) attributes {dimension_semantics = [#tpu.dimension_semantics<parallel>], iteration_bounds = array<i64: 1>, scalar_prefetch = 0 : i64, scratch_operands = 0 : i64, tpu.core_type = #tpu.core_type<tc>, window_params = [{transform_indices = @transform_0, window_bounds = array<i64: 8, 1024>}, {transform_indices = @transform_1, window_bounds = array<i64: 8, 128>}, {pipeline_mode = #tpu.pipeline_mode<synchronous>, transform_indices = @transform_2, window_bounds = array<i64: 1024, 64>}, {pipeline_mode = #tpu.pipeline_mode<synchronous>, transform_indices = @transform_3, window_bounds = array<i64: 1, 64>}, {pipeline_mode = #tpu.pipeline_mode<synchronous>, transform_indices = @transform_4, window_bounds = array<i64: 128, 64>}, {pipeline_mode = #tpu.pipeline_mode<synchronous>, transform_indices = @transform_5, window_bounds = array<i64: 1, 64>}, {pipeline_mode = #tpu.pipeline_mode<synchronous>, transform_indices = @transform_6, window_bounds = array<i64: 64, 256>}, {pipeline_mode = #tpu.pipeline_mode<synchronous>, transform_indices = @transform_7, window_bounds = array<i64: 64, 256>}, {pipeline_mode = #tpu.pipeline_mode<synchronous>, transform_indices = @transform_8, window_bounds = array<i64: 1, 256>}, {pipeline_mode = #tpu.pipeline_mode<synchronous>, transform_indices = @transform_9, window_bounds = array<i64: 256, 512>}, {pipeline_mode = #tpu.pipeline_mode<synchronous>, transform_indices = @transform_10, window_bounds = array<i64: 1, 512>}, {pipeline_mode = #tpu.pipeline_mode<synchronous>, transform_indices = @transform_11, window_bounds = array<i64: 512, 1024>}, {pipeline_mode = #tpu.pipeline_mode<synchronous>, transform_indices = @transform_12, window_bounds = array<i64: 1, 1024>}, {pipeline_mode = #tpu.pipeline_mode<synchronous>, transform_indices = @transform_13, window_bounds = array<i64: 1024, 128>}, {pipeline_mode = #tpu.pipeline_mode<synchronous>, transform_indices = @transform_14, window_bounds = array<i64: 1, 128>}, {transform_indices = @transform_15, window_bounds = array<i64: 8, 128>}]} {
    %c0 = arith.constant 0 : index
    %c0_0 = arith.constant 0 : index
    %0 = vector.load %arg1[%c0, %c0_0] : memref<8x1024xf32, #tpu.memory_space<vmem>>, vector<8x1024xf32>
    %1 = arith.truncf %0 : vector<8x1024xf32> to vector<8x1024xbf16>
    %c0_1 = arith.constant 0 : index
    %c0_2 = arith.constant 0 : index
    %2 = vector.load %arg2[%c0_1, %c0_2] : memref<8x128xf32, #tpu.memory_space<vmem>>, vector<8x128xf32>
    %3 = arith.truncf %2 : vector<8x128xf32> to vector<8x128xbf16>
    %c0_3 = arith.constant 0 : index
    %c0_4 = arith.constant 0 : index
    %4 = vector.load %arg3[%c0_3, %c0_4] : memref<1024x64xbf16, #tpu.memory_space<vmem>>, vector<1024x64xbf16>
    %cst = arith.constant dense<0.000000e+00> : vector<8x64xf32>
    %5 = tpu.matmul %1, %4, %cst {dimension_numbers = #tpu.dot_dimension_numbers<[1], [0], [0], [1], [0, 0, 1, 1], [], []>} : vector<8x1024xbf16>, vector<1024x64xbf16>, vector<8x64xf32> -> vector<8x64xf32>
    %c0_5 = arith.constant 0 : index
    %c0_6 = arith.constant 0 : index
    %6 = vector.load %arg4[%c0_5, %c0_6] : memref<1x64xf32, #tpu.memory_space<vmem>>, vector<1x64xf32>
    %7 = vector.broadcast %6 : vector<1x64xf32> to vector<8x64xf32>
    %8 = arith.addf %5, %7 : vector<8x64xf32>
    %cst_7 = arith.constant 0.000000e+00 : f32
    %9 = vector.broadcast %cst_7 : f32 to vector<8x64xf32>
    %10 = arith.maximumf %8, %9 : vector<8x64xf32>
    %c0_8 = arith.constant 0 : index
    %c0_9 = arith.constant 0 : index
    %11 = vector.load %arg5[%c0_8, %c0_9] : memref<128x64xbf16, #tpu.memory_space<vmem>>, vector<128x64xbf16>
    %cst_10 = arith.constant dense<0.000000e+00> : vector<8x64xf32>
    %12 = tpu.matmul %3, %11, %cst_10 {dimension_numbers = #tpu.dot_dimension_numbers<[1], [0], [0], [1], [0, 0, 1, 1], [], []>} : vector<8x128xbf16>, vector<128x64xbf16>, vector<8x64xf32> -> vector<8x64xf32>
    %c0_11 = arith.constant 0 : index
    %c0_12 = arith.constant 0 : index
    %13 = vector.load %arg6[%c0_11, %c0_12] : memref<1x64xf32, #tpu.memory_space<vmem>>, vector<1x64xf32>
    %14 = vector.broadcast %13 : vector<1x64xf32> to vector<8x64xf32>
    %15 = arith.addf %12, %14 : vector<8x64xf32>
    %cst_13 = arith.constant 0.000000e+00 : f32
    %16 = vector.broadcast %cst_13 : f32 to vector<8x64xf32>
    %17 = arith.maximumf %15, %16 : vector<8x64xf32>
    %18 = arith.truncf %10 : vector<8x64xf32> to vector<8x64xbf16>
    %c0_14 = arith.constant 0 : index
    %c0_15 = arith.constant 0 : index
    %19 = vector.load %arg7[%c0_14, %c0_15] : memref<64x256xbf16, #tpu.memory_space<vmem>>, vector<64x256xbf16>
    %cst_16 = arith.constant dense<0.000000e+00> : vector<8x256xf32>
    %20 = tpu.matmul %18, %19, %cst_16 {dimension_numbers = #tpu.dot_dimension_numbers<[1], [0], [0], [1], [0, 0, 1, 1], [], []>} : vector<8x64xbf16>, vector<64x256xbf16>, vector<8x256xf32> -> vector<8x256xf32>
    %21 = arith.truncf %17 : vector<8x64xf32> to vector<8x64xbf16>
    %c0_17 = arith.constant 0 : index
    %c0_18 = arith.constant 0 : index
    %22 = vector.load %arg8[%c0_17, %c0_18] : memref<64x256xbf16, #tpu.memory_space<vmem>>, vector<64x256xbf16>
    %cst_19 = arith.constant dense<0.000000e+00> : vector<8x256xf32>
    %23 = tpu.matmul %21, %22, %cst_19 {dimension_numbers = #tpu.dot_dimension_numbers<[1], [0], [0], [1], [0, 0, 1, 1], [], []>} : vector<8x64xbf16>, vector<64x256xbf16>, vector<8x256xf32> -> vector<8x256xf32>
    %24 = arith.addf %20, %23 : vector<8x256xf32>
    %c0_20 = arith.constant 0 : index
    %c0_21 = arith.constant 0 : index
    %25 = vector.load %arg9[%c0_20, %c0_21] : memref<1x256xf32, #tpu.memory_space<vmem>>, vector<1x256xf32>
    %26 = vector.broadcast %25 : vector<1x256xf32> to vector<8x256xf32>
    %27 = arith.addf %24, %26 : vector<8x256xf32>
    %cst_22 = arith.constant 0.000000e+00 : f32
    %28 = vector.broadcast %cst_22 : f32 to vector<8x256xf32>
    %29 = arith.maximumf %27, %28 : vector<8x256xf32>
    %30 = arith.truncf %29 : vector<8x256xf32> to vector<8x256xbf16>
    %c0_23 = arith.constant 0 : index
    %c0_24 = arith.constant 0 : index
    %31 = vector.load %arg10[%c0_23, %c0_24] : memref<256x512xbf16, #tpu.memory_space<vmem>>, vector<256x512xbf16>
    %cst_25 = arith.constant dense<0.000000e+00> : vector<8x512xf32>
    %32 = tpu.matmul %30, %31, %cst_25 {dimension_numbers = #tpu.dot_dimension_numbers<[1], [0], [0], [1], [0, 0, 1, 1], [], []>} : vector<8x256xbf16>, vector<256x512xbf16>, vector<8x512xf32> -> vector<8x512xf32>
    %c0_26 = arith.constant 0 : index
    %c0_27 = arith.constant 0 : index
    %33 = vector.load %arg11[%c0_26, %c0_27] : memref<1x512xf32, #tpu.memory_space<vmem>>, vector<1x512xf32>
    %34 = vector.broadcast %33 : vector<1x512xf32> to vector<8x512xf32>
    %35 = arith.addf %32, %34 : vector<8x512xf32>
    %cst_28 = arith.constant 0.000000e+00 : f32
    %36 = vector.broadcast %cst_28 : f32 to vector<8x512xf32>
    %37 = arith.maximumf %35, %36 : vector<8x512xf32>
    %38 = arith.truncf %37 : vector<8x512xf32> to vector<8x512xbf16>
    %c0_29 = arith.constant 0 : index
    %c0_30 = arith.constant 0 : index
    %39 = vector.load %arg12[%c0_29, %c0_30] : memref<512x1024xbf16, #tpu.memory_space<vmem>>, vector<512x1024xbf16>
    %cst_31 = arith.constant dense<0.000000e+00> : vector<8x1024xf32>
    %40 = tpu.matmul %38, %39, %cst_31 {dimension_numbers = #tpu.dot_dimension_numbers<[1], [0], [0], [1], [0, 0, 1, 1], [], []>} : vector<8x512xbf16>, vector<512x1024xbf16>, vector<8x1024xf32> -> vector<8x1024xf32>
    %c0_32 = arith.constant 0 : index
    %c0_33 = arith.constant 0 : index
    %41 = vector.load %arg13[%c0_32, %c0_33] : memref<1x1024xf32, #tpu.memory_space<vmem>>, vector<1x1024xf32>
    %42 = vector.broadcast %41 : vector<1x1024xf32> to vector<8x1024xf32>
    %43 = arith.addf %40, %42 : vector<8x1024xf32>
    %cst_34 = arith.constant 0.000000e+00 : f32
    %44 = vector.broadcast %cst_34 : f32 to vector<8x1024xf32>
    %45 = arith.maximumf %43, %44 : vector<8x1024xf32>
    %46 = arith.truncf %45 : vector<8x1024xf32> to vector<8x1024xbf16>
    %c0_35 = arith.constant 0 : index
    %c0_36 = arith.constant 0 : index
    %47 = vector.load %arg14[%c0_35, %c0_36] : memref<1024x128xbf16, #tpu.memory_space<vmem>>, vector<1024x128xbf16>
    %cst_37 = arith.constant dense<0.000000e+00> : vector<8x128xf32>
    %48 = tpu.matmul %46, %47, %cst_37 {dimension_numbers = #tpu.dot_dimension_numbers<[1], [0], [0], [1], [0, 0, 1, 1], [], []>} : vector<8x1024xbf16>, vector<1024x128xbf16>, vector<8x128xf32> -> vector<8x128xf32>
    %c0_38 = arith.constant 0 : index
    %c0_39 = arith.constant 0 : index
    %49 = vector.load %arg15[%c0_38, %c0_39] : memref<1x128xf32, #tpu.memory_space<vmem>>, vector<1x128xf32>
    %50 = vector.broadcast %49 : vector<1x128xf32> to vector<8x128xf32>
    %51 = arith.addf %48, %50 : vector<8x128xf32>
    %c0_40 = arith.constant 0 : index
    %c0_41 = arith.constant 0 : index
    %52 = vector.load %arg16[%c0_40, %c0_41] : memref<8x128xf32, #tpu.memory_space<vmem>>, vector<8x128xf32>
    tpu.vector_store %arg16[%c0_40, %c0_41], %51 {strides = array<i32>} : memref<8x128xf32, #tpu.memory_space<vmem>>, vector<8x128xf32>,
    return
  }
  func.func @transform_0(%arg0: i32) -> (i32, i32) {
    %c0_i32 = arith.constant 0 : i32
    %c0_i32_0 = arith.constant 0 : i32
    return %arg0, %c0_i32 : i32, i32
  }
  func.func @transform_1(%arg0: i32) -> (i32, i32) {
    %c0_i32 = arith.constant 0 : i32
    %c0_i32_0 = arith.constant 0 : i32
    return %arg0, %c0_i32 : i32, i32
  }
  func.func @transform_2(%arg0: i32) -> (i32, i32) {
    %c0_i32 = arith.constant 0 : i32
    %c0_i32_0 = arith.constant 0 : i32
    %c0_i32_1 = arith.constant 0 : i32
    return %c0_i32, %c0_i32_0 : i32, i32
  }
  func.func @transform_3(%arg0: i32) -> (i32, i32) {
    %c0_i32 = arith.constant 0 : i32
    %c0_i32_0 = arith.constant 0 : i32
    %c0_i32_1 = arith.constant 0 : i32
    return %c0_i32, %c0_i32_0 : i32, i32
  }
  func.func @transform_4(%arg0: i32) -> (i32, i32) {
    %c0_i32 = arith.constant 0 : i32
    %c0_i32_0 = arith.constant 0 : i32
    %c0_i32_1 = arith.constant 0 : i32
    return %c0_i32, %c0_i32_0 : i32, i32
  }
  func.func @transform_5(%arg0: i32) -> (i32, i32) {
    %c0_i32 = arith.constant 0 : i32
    %c0_i32_0 = arith.constant 0 : i32
    %c0_i32_1 = arith.constant 0 : i32
    return %c0_i32, %c0_i32_0 : i32, i32
  }
  func.func @transform_6(%arg0: i32) -> (i32, i32) {
    %c0_i32 = arith.constant 0 : i32
    %c0_i32_0 = arith.constant 0 : i32
    %c0_i32_1 = arith.constant 0 : i32
    return %c0_i32, %c0_i32_0 : i32, i32
  }
  func.func @transform_7(%arg0: i32) -> (i32, i32) {
    %c0_i32 = arith.constant 0 : i32
    %c0_i32_0 = arith.constant 0 : i32
    %c0_i32_1 = arith.constant 0 : i32
    return %c0_i32, %c0_i32_0 : i32, i32
  }
  func.func @transform_8(%arg0: i32) -> (i32, i32) {
    %c0_i32 = arith.constant 0 : i32
    %c0_i32_0 = arith.constant 0 : i32
    %c0_i32_1 = arith.constant 0 : i32
    return %c0_i32, %c0_i32_0 : i32, i32
  }
  func.func @transform_9(%arg0: i32) -> (i32, i32) {
    %c0_i32 = arith.constant 0 : i32
    %c0_i32_0 = arith.constant 0 : i32
    %c0_i32_1 = arith.constant 0 : i32
    return %c0_i32, %c0_i32_0 : i32, i32
  }
  func.func @transform_10(%arg0: i32) -> (i32, i32) {
    %c0_i32 = arith.constant 0 : i32
    %c0_i32_0 = arith.constant 0 : i32
    %c0_i32_1 = arith.constant 0 : i32
    return %c0_i32, %c0_i32_0 : i32, i32
  }
  func.func @transform_11(%arg0: i32) -> (i32, i32) {
    %c0_i32 = arith.constant 0 : i32
    %c0_i32_0 = arith.constant 0 : i32
    %c0_i32_1 = arith.constant 0 : i32
    return %c0_i32, %c0_i32_0 : i32, i32
  }
  func.func @transform_12(%arg0: i32) -> (i32, i32) {
    %c0_i32 = arith.constant 0 : i32
    %c0_i32_0 = arith.constant 0 : i32
    %c0_i32_1 = arith.constant 0 : i32
    return %c0_i32, %c0_i32_0 : i32, i32
  }
  func.func @transform_13(%arg0: i32) -> (i32, i32) {
    %c0_i32 = arith.constant 0 : i32
    %c0_i32_0 = arith.constant 0 : i32
    %c0_i32_1 = arith.constant 0 : i32
    return %c0_i32, %c0_i32_0 : i32, i32
  }
  func.func @transform_14(%arg0: i32) -> (i32, i32) {
    %c0_i32 = arith.constant 0 : i32
    %c0_i32_0 = arith.constant 0 : i32
    %c0_i32_1 = arith.constant 0 : i32
    return %c0_i32, %c0_i32_0 : i32, i32
  }
  func.func @transform_15(%arg0: i32) -> (i32, i32) {
    %c0_i32 = arith.constant 0 : i32
    %c0_i32_0 = arith.constant 0 : i32
    return %arg0, %c0_i32 : i32, i32
  }
}

</mosaic_0001>

<llo_original>
// kernel: mfccnet_forward.1
$region0: #{mfccnet_forward.1}
  #allocation0 [shape = 'u32[]', space=smem, size = 0x4, offset = 0x4, fixed_abs, tag = 'smem constant byte address 0x4 - core index']
  #allocation1 [shape = 'u32[144,128]{1,0:T(1,128)}', space=vmem, size = 0x12000, scoped, tag = 'internal scratch']
  %s0 = inlined_call_operand.vmem [shape: f32[8,1024], index: 0, kind: input, shape index: {}]
  %s1 = inlined_call_operand.vmem [shape: f32[8,128], index: 1, kind: input, shape index: {}]
  %s2 = inlined_call_operand.vmem [shape: bf16[1024,64], index: 2, kind: input, shape index: {}]
  %s3 = inlined_call_operand.vmem [shape: f32[1,64], index: 3, kind: input, shape index: {}, may-alias: {3,5}]
  %s4 = inlined_call_operand.vmem [shape: bf16[128,64], index: 4, kind: input, shape index: {}]
  %s5 = inlined_call_operand.vmem [shape: f32[1,64], index: 5, kind: input, shape index: {}, may-alias: {3,5}]
  %s6 = inlined_call_operand.hbm [shape: bf16[64,256], index: 6, kind: input, shape index: {}]
  %s7 = inlined_call_operand.hbm [shape: bf16[64,256], index: 7, kind: input, shape index: {}]
  %s8 = inlined_call_operand.vmem [shape: f32[1,256], index: 8, kind: input, shape index: {}]
  %s9 = inlined_call_operand.hbm [shape: bf16[256,512], index: 9, kind: input, shape index: {}]
  %s10 = inlined_call_operand.vmem [shape: f32[1,512], index: 10, kind: input, shape index: {}]
  %s11 = inlined_call_operand.hbm [shape: bf16[512,1024], index: 11, kind: input, shape index: {}]
  %s12 = inlined_call_operand.vmem [shape: f32[1,1024], index: 12, kind: input, shape index: {}]
  %s13 = inlined_call_operand.hbm [shape: bf16[1024,128], index: 13, kind: input, shape index: {}]
  %s14 = inlined_call_operand.vmem [shape: f32[1,128], index: 14, kind: input, shape index: {}]
  %s15 = inlined_call_operand.vmem [shape: f32[8,128], index: 15, kind: output, shape index: {}]
  %s16 = sld [smem:[#allocation0]]
  $region90: #{mfccnet_forward.1} parent=0
    _
  %s18 = ssub.s32 1, %s16
  %s19 = scalar_select 0, %s18, %s16
  $region1: #{mfccnet_forward.1} parent=0
    #allocation2 [shape = 'u8[32768]{0}', space=vmem, size = 0x8000, scoped, tag = 'input window, operand 6, single buffered']
    #allocation3 [shape = 's32[1]{0}', space=sflag, size = 0x4, scoped, tag = 'scoped memory for mfccnet_forward.1']
    #allocation4 [shape = 'u8[32768]{0}', space=vmem, size = 0x8000, scoped, tag = 'input window, operand 7, single buffered']
    #allocation5 [shape = 's32[1]{0}', space=sflag, size = 0x4, scoped, tag = 'scoped memory for mfccnet_forward.1']
    #allocation6 [shape = 'u8[262144]{0}', space=vmem, size = 0x40000, scoped, tag = 'input window, operand 9, single buffered']
    #allocation7 [shape = 'u8[1048576]{0}', space=vmem, size = 0x100000, scoped, tag = 'input window, operand 11, single buffered']
    #allocation8 [shape = 's32[1]{0}', space=sflag, size = 0x4, scoped, tag = 'scoped memory for mfccnet_forward.1']
    #allocation9 [shape = 'u8[262144]{0}', space=vmem, size = 0x40000, scoped, tag = 'input window, operand 13, single buffered']
    %20 = vsyncpa [#allocation3], 0
    %21 = vsyncpa [#allocation5], 0
    %22 = vsyncpa [#allocation8], 0
    // Predicated region
    $region2: #{mfccnet_forward.1} parent=1 // pred_check
      _
    $region3: #{mfccnet_forward.1} parent=1 // pred_check_branch
      %24 = sbr.rel (0) target = $region5
    $region4: #{mfccnet_forward.1} parent=1 // pred_region
      _
    $region5: #{mfccnet_forward.1} parent=1 // pred_fallthru
      _
    // Predicated region
    $region6: #{mfccnet_forward.1} parent=1 // pred_check
      _
    $region7: #{mfccnet_forward.1} parent=1 // pred_check_branch
      %26 = sbr.rel (0) target = $region9
    $region8: #{mfccnet_forward.1} parent=1 // pred_region
      _
    $region9: #{mfccnet_forward.1} parent=1 // pred_fallthru
      _
    // Predicated region
    $region10: #{mfccnet_forward.1} parent=1 // pred_check
      _
    $region11: #{mfccnet_forward.1} parent=1 // pred_check_branch
      %28 = sbr.rel (0) target = $region13
    $region12: #{mfccnet_forward.1} parent=1 // pred_region
      _
    $region13: #{mfccnet_forward.1} parent=1 // pred_fallthru
      _
    // Predicated region
    $region14: #{mfccnet_forward.1} parent=1 // pred_check
      _
    $region15: #{mfccnet_forward.1} parent=1 // pred_check_branch
      %30 = sbr.rel (0) target = $region17
    $region16: #{mfccnet_forward.1} parent=1 // pred_region
      _
    $region17: #{mfccnet_forward.1} parent=1 // pred_fallthru
      _
    // Predicated region
    $region18: #{mfccnet_forward.1} parent=1 // pred_check
      _
    $region19: #{mfccnet_forward.1} parent=1 // pred_check_branch
      %32 = sbr.rel (0) target = $region21
    $region20: #{mfccnet_forward.1} parent=1 // pred_region
      _
    $region21: #{mfccnet_forward.1} parent=1 // pred_fallthru
      _
    // Predicated region
    $region22: #{mfccnet_forward.1} parent=1 // pred_check
      _
    $region23: #{mfccnet_forward.1} parent=1 // pred_check_branch
      %34 = sbr.rel (0) target = $region25
    $region24: #{mfccnet_forward.1} parent=1 // pred_region
      _
    $region25: #{mfccnet_forward.1} parent=1 // pred_fallthru
      _
    // Predicated region
    $region26: #{mfccnet_forward.1} parent=1 // pred_check
      _
    $region27: #{mfccnet_forward.1} parent=1 // pred_check_branch
      %36 = sbr.rel (0) target = $region29
    $region28: #{mfccnet_forward.1} parent=1 // pred_region
      %s38 = ssub.s32 1024, 1024
      %39 = vsyncadd [#allocation3], %s38
      %s40 = sshll.u32 [#allocation2], 4
      %s41 = int_to_ptr.vmem [resolvable:$true] %s40
      %46 = dma.hbm_to_vmem [thread:$0]  %s6, 1024, %s41, [#allocation3], 128, 128, 8
    $region29: #{mfccnet_forward.1} parent=1 // pred_fallthru
      _
    // Predicated region
    $region30: #{mfccnet_forward.1} parent=1 // pred_check
      _
    $region31: #{mfccnet_forward.1} parent=1 // pred_check_branch
      %48 = sbr.rel (0) target = $region33
    $region32: #{mfccnet_forward.1} parent=1 // pred_region
      %s50 = ssub.s32 1024, 1024
      %51 = vsyncadd [#allocation5], %s50
      %s52 = sshll.u32 [#allocation4], 4
      %s53 = int_to_ptr.vmem [resolvable:$true] %s52
      %58 = dma.hbm_to_vmem [thread:$0]  %s7, 1024, %s53, [#allocation5], 128, 128, 8
    $region33: #{mfccnet_forward.1} parent=1 // pred_fallthru
      _
    // Predicated region
    $region34: #{mfccnet_forward.1} parent=1 // pred_check
      _
    $region35: #{mfccnet_forward.1} parent=1 // pred_check_branch
      %60 = sbr.rel (0) target = $region37
    $region36: #{mfccnet_forward.1} parent=1 // pred_region
      _
    $region37: #{mfccnet_forward.1} parent=1 // pred_fallthru
      _
    // Predicated region
    $region38: #{mfccnet_forward.1} parent=1 // pred_check
      _
    $region39: #{mfccnet_forward.1} parent=1 // pred_check_branch
      %62 = sbr.rel (0) target = $region41
    $region40: #{mfccnet_forward.1} parent=1 // pred_region
      %s64 = ssub.s32 8192, 8192
      %65 = vsyncadd [#allocation5], %s64
      %s66 = sshll.u32 [#allocation6], 4
      %s67 = int_to_ptr.vmem [resolvable:$true] %s66
      %72 = dma.hbm_to_vmem [thread:$0]  %s9, 8192, %s67, [#allocation5], 256, 256, 16
    $region41: #{mfccnet_forward.1} parent=1 // pred_fallthru
      _
    // Predicated region
    $region42: #{mfccnet_forward.1} parent=1 // pred_check
      _
    $region43: #{mfccnet_forward.1} parent=1 // pred_check_branch
      %74 = sbr.rel (0) target = $region45
    $region44: #{mfccnet_forward.1} parent=1 // pred_region
      _
    $region45: #{mfccnet_forward.1} parent=1 // pred_fallthru
      _
    // Predicated region
    $region46: #{mfccnet_forward.1} parent=1 // pred_check
      _
    $region47: #{mfccnet_forward.1} parent=1 // pred_check_branch
      %76 = sbr.rel (0) target = $region49
    $region48: #{mfccnet_forward.1} parent=1 // pred_region
      %s78 = ssub.s32 32768, 32768
      %79 = vsyncadd [#allocation8], %s78
      %s80 = sshll.u32 [#allocation7], 4
      %s81 = int_to_ptr.vmem [resolvable:$true] %s80
      %86 = dma.hbm_to_vmem [thread:$0]  %s11, 32768, %s81, [#allocation8], 512, 512, 32
    $region49: #{mfccnet_forward.1} parent=1 // pred_fallthru
      _
    // Predicated region
    $region50: #{mfccnet_forward.1} parent=1 // pred_check
      _
    $region51: #{mfccnet_forward.1} parent=1 // pred_check_branch
      %88 = sbr.rel (0) target = $region53
    $region52: #{mfccnet_forward.1} parent=1 // pred_region
      _
    $region53: #{mfccnet_forward.1} parent=1 // pred_fallthru
      _
    // Predicated region
    $region54: #{mfccnet_forward.1} parent=1 // pred_check
      _
    $region55: #{mfccnet_forward.1} parent=1 // pred_check_branch
      %90 = sbr.rel (0) target = $region57
    $region56: #{mfccnet_forward.1} parent=1 // pred_region
      %s92 = ssub.s32 8192, 8192
      %93 = vsyncadd [#allocation8], %s92
      %s94 = sshll.u32 [#allocation9], 4
      %s95 = int_to_ptr.vmem [resolvable:$true] %s94
      %100 = dma.hbm_to_vmem [thread:$0]  %s13, 8192, %s95, [#allocation8], 64, 64, 4
    $region57: #{mfccnet_forward.1} parent=1 // pred_fallthru
      _
    // Predicated region
    $region58: #{mfccnet_forward.1} parent=1 // pred_check
      _
    $region59: #{mfccnet_forward.1} parent=1 // pred_check_branch
      %102 = sbr.rel (0) target = $region61
    $region60: #{mfccnet_forward.1} parent=1 // pred_region
      _
    $region61: #{mfccnet_forward.1} parent=1 // pred_fallthru
      _
    // Predicated region
    $region62: #{mfccnet_forward.1} parent=1 // pred_check
      _
    $region63: #{mfccnet_forward.1} parent=1 // pred_check_branch
      %104 = sbr.rel (0) target = $region65
    $region64: #{mfccnet_forward.1} parent=1 // pred_region
      %105 = dma.done [#allocation3], 1024
    $region65: #{mfccnet_forward.1} parent=1 // pred_fallthru
      _
    // Predicated region
    $region66: #{mfccnet_forward.1} parent=1 // pred_check
      _
    $region67: #{mfccnet_forward.1} parent=1 // pred_check_branch
      %107 = sbr.rel (0) target = $region69
    $region68: #{mfccnet_forward.1} parent=1 // pred_region
      %108 = dma.done [#allocation5], 1024
    $region69: #{mfccnet_forward.1} parent=1 // pred_fallthru
      _
    // Predicated region
    $region70: #{mfccnet_forward.1} parent=1 // pred_check
      _
    $region71: #{mfccnet_forward.1} parent=1 // pred_check_branch
      %110 = sbr.rel (0) target = $region73
    $region72: #{mfccnet_forward.1} parent=1 // pred_region
      %111 = dma.done [#allocation5], 8192
    $region73: #{mfccnet_forward.1} parent=1 // pred_fallthru
      _
    // Predicated region
    $region74: #{mfccnet_forward.1} parent=1 // pred_check
      _
    $region75: #{mfccnet_forward.1} parent=1 // pred_check_branch
      %113 = sbr.rel (0) target = $region77
    $region76: #{mfccnet_forward.1} parent=1 // pred_region
      %114 = dma.done [#allocation8], 32768
    $region77: #{mfccnet_forward.1} parent=1 // pred_fallthru
      _
    // Predicated region
    $region78: #{mfccnet_forward.1} parent=1 // pred_check
      _
    $region79: #{mfccnet_forward.1} parent=1 // pred_check_branch
      %116 = sbr.rel (0) target = $region81
    $region80: #{mfccnet_forward.1} parent=1 // pred_region
      %117 = dma.done [#allocation8], 8192
    $region81: #{mfccnet_forward.1} parent=1 // pred_fallthru
      _
    %v119 = vld [vmem:[%s0] sm:$0xff]
    %v120 = vld [vmem:[%s0 + $0x8] sm:$0xff]
    %v121 = vld [vmem:[%s0 + $0x10] sm:$0xff]
    %v122 = vld [vmem:[%s0 + $0x18] sm:$0xff]
    %v123 = vld [vmem:[%s0 + $0x20] sm:$0xff]
    %v124 = vld [vmem:[%s0 + $0x28] sm:$0xff]
    %v125 = vld [vmem:[%s0 + $0x30] sm:$0xff]
    %v126 = vld [vmem:[%s0 + $0x38] sm:$0xff]
    %v127 = vpack.c.bf16 %v119, %v119
    %v128 = vpack.c.bf16 %v120, %v120
    %v129 = vpack.c.bf16 %v121, %v121
    %v130 = vpack.c.bf16 %v122, %v122
    %v131 = vpack.c.bf16 %v123, %v123
    %v132 = vpack.c.bf16 %v124, %v124
    %v133 = vpack.c.bf16 %v125, %v125
    %v134 = vpack.c.bf16 %v126, %v126
    %v135 = vld [vmem:[%s1] sm:$0xff]
    %v136 = vpack.c.bf16 %v135, %v135
    %v137 = vld [vmem:[%s2] sm:$0xf]
    %v138 = vld [vmem:[%s2 + $0x4] sm:$0xf]
    %v139 = vld [vmem:[%s2 + $0x8] sm:$0xf]
    %v140 = vld [vmem:[%s2 + $0xc] sm:$0xf]
    %v141 = vld [vmem:[%s2 + $0x10] sm:$0xf]
    %v142 = vld [vmem:[%s2 + $0x14] sm:$0xf]
    %v143 = vld [vmem:[%s2 + $0x18] sm:$0xf]
    %v144 = vld [vmem:[%s2 + $0x1c] sm:$0xf]
    %v145 = vld [vmem:[%s2 + $0x20] sm:$0xf]
    %v146 = vld [vmem:[%s2 + $0x24] sm:$0xf]
    %v147 = vld [vmem:[%s2 + $0x28] sm:$0xf]
    %v148 = vld [vmem:[%s2 + $0x2c] sm:$0xf]
    %v149 = vld [vmem:[%s2 + $0x30] sm:$0xf]
    %v150 = vld [vmem:[%s2 + $0x34] sm:$0xf]
    %v151 = vld [vmem:[%s2 + $0x38] sm:$0xf]
    %v152 = vld [vmem:[%s2 + $0x3c] sm:$0xf]
    %v153 = vld [vmem:[%s2 + $0x40] sm:$0xf]
    %v154 = vld [vmem:[%s2 + $0x44] sm:$0xf]
    %v155 = vld [vmem:[%s2 + $0x48] sm:$0xf]
    %v156 = vld [vmem:[%s2 + $0x4c] sm:$0xf]
    %v157 = vld [vmem:[%s2 + $0x50] sm:$0xf]
    %v158 = vld [vmem:[%s2 + $0x54] sm:$0xf]
    %v159 = vld [vmem:[%s2 + $0x58] sm:$0xf]
    %v160 = vld [vmem:[%s2 + $0x5c] sm:$0xf]
    %v161 = vld [vmem:[%s2 + $0x60] sm:$0xf]
    %v162 = vld [vmem:[%s2 + $0x64] sm:$0xf]
    %v163 = vld [vmem:[%s2 + $0x68] sm:$0xf]
    %v164 = vld [vmem:[%s2 + $0x6c] sm:$0xf]
    %v165 = vld [vmem:[%s2 + $0x70] sm:$0xf]
    %v166 = vld [vmem:[%s2 + $0x74] sm:$0xf]
    %v167 = vld [vmem:[%s2 + $0x78] sm:$0xf]
    %v168 = vld [vmem:[%s2 + $0x7c] sm:$0xf]
    %v169 = vld [vmem:[%s2 + $0x80] sm:$0xf]
    %v170 = vld [vmem:[%s2 + $0x84] sm:$0xf]
    %v171 = vld [vmem:[%s2 + $0x88] sm:$0xf]
    %v172 = vld [vmem:[%s2 + $0x8c] sm:$0xf]
    %v173 = vld [vmem:[%s2 + $0x90] sm:$0xf]
    %v174 = vld [vmem:[%s2 + $0x94] sm:$0xf]
    %v175 = vld [vmem:[%s2 + $0x98] sm:$0xf]
    %v176 = vld [vmem:[%s2 + $0x9c] sm:$0xf]
    %v177 = vld [vmem:[%s2 + $0xa0] sm:$0xf]
    %v178 = vld [vmem:[%s2 + $0xa4] sm:$0xf]
    %v179 = vld [vmem:[%s2 + $0xa8] sm:$0xf]
    %v180 = vld [vmem:[%s2 + $0xac] sm:$0xf]
    %v181 = vld [vmem:[%s2 + $0xb0] sm:$0xf]
    %v182 = vld [vmem:[%s2 + $0xb4] sm:$0xf]
    %v183 = vld [vmem:[%s2 + $0xb8] sm:$0xf]
    %v184 = vld [vmem:[%s2 + $0xbc] sm:$0xf]
    %v185 = vld [vmem:[%s2 + $0xc0] sm:$0xf]
    %v186 = vld [vmem:[%s2 + $0xc4] sm:$0xf]
    %v187 = vld [vmem:[%s2 + $0xc8] sm:$0xf]
    %v188 = vld [vmem:[%s2 + $0xcc] sm:$0xf]
    %v189 = vld [vmem:[%s2 + $0xd0] sm:$0xf]
    %v190 = vld [vmem:[%s2 + $0xd4] sm:$0xf]
    %v191 = vld [vmem:[%s2 + $0xd8] sm:$0xf]
    %v192 = vld [vmem:[%s2 + $0xdc] sm:$0xf]
    %v193 = vld [vmem:[%s2 + $0xe0] sm:$0xf]
    %v194 = vld [vmem:[%s2 + $0xe4] sm:$0xf]
    %v195 = vld [vmem:[%s2 + $0xe8] sm:$0xf]
    %v196 = vld [vmem:[%s2 + $0xec] sm:$0xf]
    %v197 = vld [vmem:[%s2 + $0xf0] sm:$0xf]
    %v198 = vld [vmem:[%s2 + $0xf4] sm:$0xf]
    %v199 = vld [vmem:[%s2 + $0xf8] sm:$0xf]
    %v200 = vld [vmem:[%s2 + $0xfc] sm:$0xf]
    %v201 = vld [vmem:[%s2 + $0x100] sm:$0xf]
    %v202 = vld [vmem:[%s2 + $0x104] sm:$0xf]
    %v203 = vld [vmem:[%s2 + $0x108] sm:$0xf]
    %v204 = vld [vmem:[%s2 + $0x10c] sm:$0xf]
    %v205 = vld [vmem:[%s2 + $0x110] sm:$0xf]
    %v206 = vld [vmem:[%s2 + $0x114] sm:$0xf]
    %v207 = vld [vmem:[%s2 + $0x118] sm:$0xf]
    %v208 = vld [vmem:[%s2 + $0x11c] sm:$0xf]
    %v209 = vld [vmem:[%s2 + $0x120] sm:$0xf]
    %v210 = vld [vmem:[%s2 + $0x124] sm:$0xf]
    %v211 = vld [vmem:[%s2 + $0x128] sm:$0xf]
    %v212 = vld [vmem:[%s2 + $0x12c] sm:$0xf]
    %v213 = vld [vmem:[%s2 + $0x130] sm:$0xf]
    %v214 = vld [vmem:[%s2 + $0x134] sm:$0xf]
    %v215 = vld [vmem:[%s2 + $0x138] sm:$0xf]
    %v216 = vld [vmem:[%s2 + $0x13c] sm:$0xf]
    %v217 = vld [vmem:[%s2 + $0x140] sm:$0xf]
    %v218 = vld [vmem:[%s2 + $0x144] sm:$0xf]
    %v219 = vld [vmem:[%s2 + $0x148] sm:$0xf]
    %v220 = vld [vmem:[%s2 + $0x14c] sm:$0xf]
    %v221 = vld [vmem:[%s2 + $0x150] sm:$0xf]
    %v222 = vld [vmem:[%s2 + $0x154] sm:$0xf]
    %v223 = vld [vmem:[%s2 + $0x158] sm:$0xf]
    %v224 = vld [vmem:[%s2 + $0x15c] sm:$0xf]
    %v225 = vld [vmem:[%s2 + $0x160] sm:$0xf]
    %v226 = vld [vmem:[%s2 + $0x164] sm:$0xf]
    %v227 = vld [vmem:[%s2 + $0x168] sm:$0xf]
    %v228 = vld [vmem:[%s2 + $0x16c] sm:$0xf]
    %v229 = vld [vmem:[%s2 + $0x170] sm:$0xf]
    %v230 = vld [vmem:[%s2 + $0x174] sm:$0xf]
    %v231 = vld [vmem:[%s2 + $0x178] sm:$0xf]
    %v232 = vld [vmem:[%s2 + $0x17c] sm:$0xf]
    %v233 = vld [vmem:[%s2 + $0x180] sm:$0xf]
    %v234 = vld [vmem:[%s2 + $0x184] sm:$0xf]
    %v235 = vld [vmem:[%s2 + $0x188] sm:$0xf]
    %v236 = vld [vmem:[%s2 + $0x18c] sm:$0xf]
    %v237 = vld [vmem:[%s2 + $0x190] sm:$0xf]
    %v238 = vld [vmem:[%s2 + $0x194] sm:$0xf]
    %v239 = vld [vmem:[%s2 + $0x198] sm:$0xf]
    %v240 = vld [vmem:[%s2 + $0x19c] sm:$0xf]
    %v241 = vld [vmem:[%s2 + $0x1a0] sm:$0xf]
    %v242 = vld [vmem:[%s2 + $0x1a4] sm:$0xf]
    %v243 = vld [vmem:[%s2 + $0x1a8] sm:$0xf]
    %v244 = vld [vmem:[%s2 + $0x1ac] sm:$0xf]
    %v245 = vld [vmem:[%s2 + $0x1b0] sm:$0xf]
    %v246 = vld [vmem:[%s2 + $0x1b4] sm:$0xf]
    %v247 = vld [vmem:[%s2 + $0x1b8] sm:$0xf]
    %v248 = vld [vmem:[%s2 + $0x1bc] sm:$0xf]
    %v249 = vld [vmem:[%s2 + $0x1c0] sm:$0xf]
    %v250 = vld [vmem:[%s2 + $0x1c4] sm:$0xf]
    %v251 = vld [vmem:[%s2 + $0x1c8] sm:$0xf]
    %v252 = vld [vmem:[%s2 + $0x1cc] sm:$0xf]
    %v253 = vld [vmem:[%s2 + $0x1d0] sm:$0xf]
    %v254 = vld [vmem:[%s2 + $0x1d4] sm:$0xf]
    %v255 = vld [vmem:[%s2 + $0x1d8] sm:$0xf]
    %v256 = vld [vmem:[%s2 + $0x1dc] sm:$0xf]
    %v257 = vld [vmem:[%s2 + $0x1e0] sm:$0xf]
    %v258 = vld [vmem:[%s2 + $0x1e4] sm:$0xf]
    %v259 = vld [vmem:[%s2 + $0x1e8] sm:$0xf]
    %v260 = vld [vmem:[%s2 + $0x1ec] sm:$0xf]
    %v261 = vld [vmem:[%s2 + $0x1f0] sm:$0xf]
    %v262 = vld [vmem:[%s2 + $0x1f4] sm:$0xf]
    %v263 = vld [vmem:[%s2 + $0x1f8] sm:$0xf]
    %v264 = vld [vmem:[%s2 + $0x1fc] sm:$0xf]
    %v265 = vld [vmem:[%s3] sm:$0x1]
    %v267 = vlaneseq
    %v268 = vshrl.u32 %v267, 7
    %v269 = vsub.s32 0, %v268
    %v270 = vrot.slane %v265, %v269
    %v400 = vunpack.c.l.b16 %v137
    %v401 = vunpack.c.l.b16 %v138
    %v402 = vunpack.c.l.b16 %v139
    %v403 = vunpack.c.l.b16 %v140
    %v404 = vunpack.c.l.b16 %v141
    %v405 = vunpack.c.l.b16 %v142
    %v406 = vunpack.c.l.b16 %v143
    %v407 = vunpack.c.l.b16 %v144
    %v408 = vunpack.c.l.b16 %v145
    %v409 = vunpack.c.l.b16 %v146
    %v410 = vunpack.c.l.b16 %v147
    %v411 = vunpack.c.l.b16 %v148
    %v412 = vunpack.c.l.b16 %v149
    %v413 = vunpack.c.l.b16 %v150
    %v414 = vunpack.c.l.b16 %v151
    %v415 = vunpack.c.l.b16 %v152
    %v416 = vunpack.c.l.b16 %v153
    %v417 = vunpack.c.l.b16 %v154
    %v418 = vunpack.c.l.b16 %v155
    %v419 = vunpack.c.l.b16 %v156
    %v420 = vunpack.c.l.b16 %v157
    %v421 = vunpack.c.l.b16 %v158
    %v422 = vunpack.c.l.b16 %v159
    %v423 = vunpack.c.l.b16 %v160
    %v424 = vunpack.c.l.b16 %v161
    %v425 = vunpack.c.l.b16 %v162
    %v426 = vunpack.c.l.b16 %v163
    %v427 = vunpack.c.l.b16 %v164
    %v428 = vunpack.c.l.b16 %v165
    %v429 = vunpack.c.l.b16 %v166
    %v430 = vunpack.c.l.b16 %v167
    %v431 = vunpack.c.l.b16 %v168
    %v432 = vunpack.c.l.b16 %v169
    %v433 = vunpack.c.l.b16 %v170
    %v434 = vunpack.c.l.b16 %v171
    %v435 = vunpack.c.l.b16 %v172
    %v436 = vunpack.c.l.b16 %v173
    %v437 = vunpack.c.l.b16 %v174
    %v438 = vunpack.c.l.b16 %v175
    %v439 = vunpack.c.l.b16 %v176
    %v440 = vunpack.c.l.b16 %v177
    %v441 = vunpack.c.l.b16 %v178
    %v442 = vunpack.c.l.b16 %v179
    %v443 = vunpack.c.l.b16 %v180
    %v444 = vunpack.c.l.b16 %v181
    %v445 = vunpack.c.l.b16 %v182
    %v446 = vunpack.c.l.b16 %v183
    %v447 = vunpack.c.l.b16 %v184
    %v448 = vunpack.c.l.b16 %v185
    %v449 = vunpack.c.l.b16 %v186
    %v450 = vunpack.c.l.b16 %v187
    %v451 = vunpack.c.l.b16 %v188
    %v452 = vunpack.c.l.b16 %v189
    %v453 = vunpack.c.l.b16 %v190
    %v454 = vunpack.c.l.b16 %v191
    %v455 = vunpack.c.l.b16 %v192
    %v456 = vunpack.c.l.b16 %v193
    %v457 = vunpack.c.l.b16 %v194
    %v458 = vunpack.c.l.b16 %v195
    %v459 = vunpack.c.l.b16 %v196
    %v460 = vunpack.c.l.b16 %v197
    %v461 = vunpack.c.l.b16 %v198
    %v462 = vunpack.c.l.b16 %v199
    %v463 = vunpack.c.l.b16 %v200
    %v464 = vunpack.c.l.b16 %v201
    %v465 = vunpack.c.l.b16 %v202
    %v466 = vunpack.c.l.b16 %v203
    %v467 = vunpack.c.l.b16 %v204
    %v468 = vunpack.c.l.b16 %v205
    %v469 = vunpack.c.l.b16 %v206
    %v470 = vunpack.c.l.b16 %v207
    %v471 = vunpack.c.l.b16 %v208
    %v472 = vunpack.c.l.b16 %v209
    %v473 = vunpack.c.l.b16 %v210
    %v474 = vunpack.c.l.b16 %v211
    %v475 = vunpack.c.l.b16 %v212
    %v476 = vunpack.c.l.b16 %v213
    %v477 = vunpack.c.l.b16 %v214
    %v478 = vunpack.c.l.b16 %v215
    %v479 = vunpack.c.l.b16 %v216
    %v480 = vunpack.c.l.b16 %v217
    %v481 = vunpack.c.l.b16 %v218
    %v482 = vunpack.c.l.b16 %v219
    %v483 = vunpack.c.l.b16 %v220
    %v484 = vunpack.c.l.b16 %v221
    %v485 = vunpack.c.l.b16 %v222
    %v486 = vunpack.c.l.b16 %v223
    %v487 = vunpack.c.l.b16 %v224
    %v488 = vunpack.c.l.b16 %v225
    %v489 = vunpack.c.l.b16 %v226
    %v490 = vunpack.c.l.b16 %v227
    %v491 = vunpack.c.l.b16 %v228
    %v492 = vunpack.c.l.b16 %v229
    %v493 = vunpack.c.l.b16 %v230
    %v494 = vunpack.c.l.b16 %v231
    %v495 = vunpack.c.l.b16 %v232
    %v496 = vunpack.c.l.b16 %v233
    %v497 = vunpack.c.l.b16 %v234
    %v498 = vunpack.c.l.b16 %v235
    %v499 = vunpack.c.l.b16 %v236
    %v500 = vunpack.c.l.b16 %v237
    %v501 = vunpack.c.l.b16 %v238
    %v502 = vunpack.c.l.b16 %v239
    %v503 = vunpack.c.l.b16 %v240
    %v504 = vunpack.c.l.b16 %v241
    %v505 = vunpack.c.l.b16 %v242
    %v506 = vunpack.c.l.b16 %v243
    %v507 = vunpack.c.l.b16 %v244
    %v508 = vunpack.c.l.b16 %v245
    %v509 = vunpack.c.l.b16 %v246
    %v510 = vunpack.c.l.b16 %v247
    %v511 = vunpack.c.l.b16 %v248
    %v512 = vunpack.c.l.b16 %v249
    %v513 = vunpack.c.l.b16 %v250
    %v514 = vunpack.c.l.b16 %v251
    %v515 = vunpack.c.l.b16 %v252
    %v516 = vunpack.c.l.b16 %v253
    %v517 = vunpack.c.l.b16 %v254
    %v518 = vunpack.c.l.b16 %v255
    %v519 = vunpack.c.l.b16 %v256
    %v520 = vunpack.c.l.b16 %v257
    %v521 = vunpack.c.l.b16 %v258
    %v522 = vunpack.c.l.b16 %v259
    %v523 = vunpack.c.l.b16 %v260
    %v524 = vunpack.c.l.b16 %v261
    %v525 = vunpack.c.l.b16 %v262
    %v526 = vunpack.c.l.b16 %v263
    %v527 = vunpack.c.l.b16 %v264
    %v528 = vpack.c.b16 %v401, %v400
    %v529 = vpack.c.b16 %v403, %v402
    %v530 = vpack.c.b16 %v405, %v404
    %v531 = vpack.c.b16 %v407, %v406
    %v532 = vpack.c.b16 %v409, %v408
    %v533 = vpack.c.b16 %v411, %v410
    %v534 = vpack.c.b16 %v413, %v412
    %v535 = vpack.c.b16 %v415, %v414
    %v536 = vpack.c.b16 %v417, %v416
    %v537 = vpack.c.b16 %v419, %v418
    %v538 = vpack.c.b16 %v421, %v420
    %v539 = vpack.c.b16 %v423, %v422
    %v540 = vpack.c.b16 %v425, %v424
    %v541 = vpack.c.b16 %v427, %v426
    %v542 = vpack.c.b16 %v429, %v428
    %v543 = vpack.c.b16 %v431, %v430
    %v544 = vpack.c.b16 %v433, %v432
    %v545 = vpack.c.b16 %v435, %v434
    %v546 = vpack.c.b16 %v437, %v436
    %v547 = vpack.c.b16 %v439, %v438
    %v548 = vpack.c.b16 %v441, %v440
    %v549 = vpack.c.b16 %v443, %v442
    %v550 = vpack.c.b16 %v445, %v444
    %v551 = vpack.c.b16 %v447, %v446
    %v552 = vpack.c.b16 %v449, %v448
    %v553 = vpack.c.b16 %v451, %v450
    %v554 = vpack.c.b16 %v453, %v452
    %v555 = vpack.c.b16 %v455, %v454
    %v556 = vpack.c.b16 %v457, %v456
    %v557 = vpack.c.b16 %v459, %v458
    %v558 = vpack.c.b16 %v461, %v460
    %v559 = vpack.c.b16 %v463, %v462
    %v560 = vpack.c.b16 %v465, %v464
    %v561 = vpack.c.b16 %v467, %v466
    %v562 = vpack.c.b16 %v469, %v468
    %v563 = vpack.c.b16 %v471, %v470
    %v564 = vpack.c.b16 %v473, %v472
    %v565 = vpack.c.b16 %v475, %v474
    %v566 = vpack.c.b16 %v477, %v476
    %v567 = vpack.c.b16 %v479, %v478
    %v568 = vpack.c.b16 %v481, %v480
    %v569 = vpack.c.b16 %v483, %v482
    %v570 = vpack.c.b16 %v485, %v484
    %v571 = vpack.c.b16 %v487, %v486
    %v572 = vpack.c.b16 %v489, %v488
    %v573 = vpack.c.b16 %v491, %v490
    %v574 = vpack.c.b16 %v493, %v492
    %v575 = vpack.c.b16 %v495, %v494
    %v576 = vpack.c.b16 %v497, %v496
    %v577 = vpack.c.b16 %v499, %v498
    %v578 = vpack.c.b16 %v501, %v500
    %v579 = vpack.c.b16 %v503, %v502
    %v580 = vpack.c.b16 %v505, %v504
    %v581 = vpack.c.b16 %v507, %v506
    %v582 = vpack.c.b16 %v509, %v508
    %v583 = vpack.c.b16 %v511, %v510
    %v584 = vpack.c.b16 %v513, %v512
    %v585 = vpack.c.b16 %v515, %v514
    %v586 = vpack.c.b16 %v517, %v516
    %v587 = vpack.c.b16 %v519, %v518
    %v588 = vpack.c.b16 %v521, %v520
    %v589 = vpack.c.b16 %v523, %v522
    %v590 = vpack.c.b16 %v525, %v524
    %v591 = vpack.c.b16 %v527, %v526
    %656 = vmatprep.subr.bf16.mxu0 0
    %657 = vmatpush1.bf16.msra.mxu0 %v535
    %658 = vmatprep.subr.bf16.mxu0 0
    %659 = vmatpush1.bf16.msra.mxu0 %v534
    %660 = vmatprep.subr.bf16.mxu0 0
    %661 = vmatpush1.bf16.msra.mxu0 %v533
    %662 = vmatprep.subr.bf16.mxu0 0
    %663 = vmatpush1.bf16.msra.mxu0 %v532
    %664 = vmatprep.subr.bf16.mxu0 0
    %665 = vmatpush1.bf16.msra.mxu0 %v531
    %666 = vmatprep.subr.bf16.mxu0 0
    %667 = vmatpush1.bf16.msra.mxu0 %v530
    %668 = vmatprep.subr.bf16.mxu0 0
    %669 = vmatpush1.bf16.msra.mxu0 %v529
    %670 = vmatprep.subr.bf16.mxu0 0
    %671 = vmatpush1.bf16.msra.mxu0 %v528
    %672 = vmatprep.subr.bf16.mxu0 0
    %673 = vmatpush2.bf16.msra.mxu0 %v543
    %674 = vmatprep.subr.bf16.mxu0 0
    %675 = vmatpush2.bf16.msra.mxu0 %v542
    %676 = vmatprep.subr.bf16.mxu0 0
    %677 = vmatpush2.bf16.msra.mxu0 %v541
    %678 = vmatprep.subr.bf16.mxu0 0
    %679 = vmatpush2.bf16.msra.mxu0 %v540
    %680 = vmatprep.subr.bf16.mxu0 0
    %681 = vmatpush2.bf16.msra.mxu0 %v539
    %682 = vmatprep.subr.bf16.mxu0 0
    %683 = vmatpush2.bf16.msra.mxu0 %v538
    %684 = vmatprep.subr.bf16.mxu0 0
    %685 = vmatpush2.bf16.msra.mxu0 %v537
    %686 = vmatprep.subr.bf16.mxu0 0
    %687 = vmatpush2.bf16.msra.mxu0 %v536
    %688 = vmatprep.mubr.bf16.mxu0 %v128
    %689 = vmatmul.mubr.bf16.gmra.mxu0 %v127
    %v690 = vpop.f32.mrf.mxu0
    %v691 = vadd.f32 %v270, %v690
    %v692 = vpop.f32.mrf.mxu0
    %v693 = vpop.f32.mrf.mxu0
    %v694 = vpop.f32.mrf.mxu0
    %695 = vdwg.mxu0
    %696 = vmatprep.subr.bf16.mxu0 0
    %697 = vmatpush1.bf16.msra.mxu0 %v551
    %698 = vmatprep.subr.bf16.mxu0 0
    %699 = vmatpush1.bf16.msra.mxu0 %v550
    %700 = vmatprep.subr.bf16.mxu0 0
    %701 = vmatpush1.bf16.msra.mxu0 %v549
    %702 = vmatprep.subr.bf16.mxu0 0
    %703 = vmatpush1.bf16.msra.mxu0 %v548
    %704 = vmatprep.subr.bf16.mxu0 0
    %705 = vmatpush1.bf16.msra.mxu0 %v547
    %706 = vmatprep.subr.bf16.mxu0 0
    %707 = vmatpush1.bf16.msra.mxu0 %v546
    %708 = vmatprep.subr.bf16.mxu0 0
    %709 = vmatpush1.bf16.msra.mxu0 %v545
    %710 = vmatprep.subr.bf16.mxu0 0
    %711 = vmatpush1.bf16.msra.mxu0 %v544
    %712 = vmatprep.subr.bf16.mxu0 0
    %713 = vmatpush2.bf16.msra.mxu0 %v559
    %714 = vmatprep.subr.bf16.mxu0 0
    %715 = vmatpush2.bf16.msra.mxu0 %v558
    %716 = vmatprep.subr.bf16.mxu0 0
    %717 = vmatpush2.bf16.msra.mxu0 %v557
    %718 = vmatprep.subr.bf16.mxu0 0
    %719 = vmatpush2.bf16.msra.mxu0 %v556
    %720 = vmatprep.subr.bf16.mxu0 0
    %721 = vmatpush2.bf16.msra.mxu0 %v555
    %722 = vmatprep.subr.bf16.mxu0 0
    %723 = vmatpush2.bf16.msra.mxu0 %v554
    %724 = vmatprep.subr.bf16.mxu0 0
    %725 = vmatpush2.bf16.msra.mxu0 %v553
    %726 = vmatprep.subr.bf16.mxu0 0
    %727 = vmatpush2.bf16.msra.mxu0 %v552
    %728 = vmatprep.mubr.bf16.mxu0 %v130
    %729 = vmatmul.mubr.bf16.gmra.mxu0 %v129
    %v730 = vpop.f32.mrf.mxu0
    %v731 = vadd.f32 %v691, %v730
    %v732 = vpop.f32.mrf.mxu0
    %v733 = vpop.f32.mrf.mxu0
    %v734 = vpop.f32.mrf.mxu0
    %735 = vdwg.mxu0
    %736 = vmatprep.subr.bf16.mxu0 0
    %737 = vmatpush1.bf16.msra.mxu0 %v567
    %738 = vmatprep.subr.bf16.mxu0 0
    %739 = vmatpush1.bf16.msra.mxu0 %v566
    %740 = vmatprep.subr.bf16.mxu0 0
    %741 = vmatpush1.bf16.msra.mxu0 %v565
    %742 = vmatprep.subr.bf16.mxu0 0
    %743 = vmatpush1.bf16.msra.mxu0 %v564
    %744 = vmatprep.subr.bf16.mxu0 0
    %745 = vmatpush1.bf16.msra.mxu0 %v563
    %746 = vmatprep.subr.bf16.mxu0 0
    %747 = vmatpush1.bf16.msra.mxu0 %v562
    %748 = vmatprep.subr.bf16.mxu0 0
    %749 = vmatpush1.bf16.msra.mxu0 %v561
    %750 = vmatprep.subr.bf16.mxu0 0
    %751 = vmatpush1.bf16.msra.mxu0 %v560
    %752 = vmatprep.subr.bf16.mxu0 0
    %753 = vmatpush2.bf16.msra.mxu0 %v575
    %754 = vmatprep.subr.bf16.mxu0 0
    %755 = vmatpush2.bf16.msra.mxu0 %v574
    %756 = vmatprep.subr.bf16.mxu0 0
    %757 = vmatpush2.bf16.msra.mxu0 %v573
    %758 = vmatprep.subr.bf16.mxu0 0
    %759 = vmatpush2.bf16.msra.mxu0 %v572
    %760 = vmatprep.subr.bf16.mxu0 0
    %761 = vmatpush2.bf16.msra.mxu0 %v571
    %762 = vmatprep.subr.bf16.mxu0 0
    %763 = vmatpush2.bf16.msra.mxu0 %v570
    %764 = vmatprep.subr.bf16.mxu0 0
    %765 = vmatpush2.bf16.msra.mxu0 %v569
    %766 = vmatprep.subr.bf16.mxu0 0
    %767 = vmatpush2.bf16.msra.mxu0 %v568
    %768 = vmatprep.mubr.bf16.mxu0 %v132
    %769 = vmatmul.mubr.bf16.gmra.mxu0 %v131
    %v770 = vpop.f32.mrf.mxu0
    %v771 = vadd.f32 %v731, %v770
    %v772 = vpop.f32.mrf.mxu0
    %v773 = vpop.f32.mrf.mxu0
    %v774 = vpop.f32.mrf.mxu0
    %775 = vdwg.mxu0
    %776 = vmatprep.subr.bf16.mxu0 0
    %777 = vmatpush1.bf16.msra.mxu0 %v583
    %778 = vmatprep.subr.bf16.mxu0 0
    %779 = vmatpush1.bf16.msra.mxu0 %v582
    %780 = vmatprep.subr.bf16.mxu0 0
    %781 = vmatpush1.bf16.msra.mxu0 %v581
    %782 = vmatprep.subr.bf16.mxu0 0
    %783 = vmatpush1.bf16.msra.mxu0 %v580
    %784 = vmatprep.subr.bf16.mxu0 0
    %785 = vmatpush1.bf16.msra.mxu0 %v579
    %786 = vmatprep.subr.bf16.mxu0 0
    %787 = vmatpush1.bf16.msra.mxu0 %v578
    %788 = vmatprep.subr.bf16.mxu0 0
    %789 = vmatpush1.bf16.msra.mxu0 %v577
    %790 = vmatprep.subr.bf16.mxu0 0
    %791 = vmatpush1.bf16.msra.mxu0 %v576
    %792 = vmatprep.subr.bf16.mxu0 0
    %793 = vmatpush2.bf16.msra.mxu0 %v591
    %794 = vmatprep.subr.bf16.mxu0 0
    %795 = vmatpush2.bf16.msra.mxu0 %v590
    %796 = vmatprep.subr.bf16.mxu0 0
    %797 = vmatpush2.bf16.msra.mxu0 %v589
    %798 = vmatprep.subr.bf16.mxu0 0
    %799 = vmatpush2.bf16.msra.mxu0 %v588
    %800 = vmatprep.subr.bf16.mxu0 0
    %801 = vmatpush2.bf16.msra.mxu0 %v587
    %802 = vmatprep.subr.bf16.mxu0 0
    %803 = vmatpush2.bf16.msra.mxu0 %v586
    %804 = vmatprep.subr.bf16.mxu0 0
    %805 = vmatpush2.bf16.msra.mxu0 %v585
    %806 = vmatprep.subr.bf16.mxu0 0
    %807 = vmatpush2.bf16.msra.mxu0 %v584
    %808 = vmatprep.mubr.bf16.mxu0 %v134
    %809 = vmatmul.mubr.bf16.gmra.mxu0 %v133
    %v810 = vpop.f32.mrf.mxu0
    %v811 = vadd.f32 %v771, %v810
    %v812 = vpop.f32.mrf.mxu0
    %v813 = vpop.f32.mrf.mxu0
    %v814 = vpop.f32.mrf.mxu0
    %815 = vdwg.mxu0
    %v816 = vmax.f32 %v811, 0.0
    %v817 = vld [vmem:[%s4] sm:$0xf]
    %v818 = vld [vmem:[%s4 + $0x4] sm:$0xf]
    %v819 = vld [vmem:[%s4 + $0x8] sm:$0xf]
    %v820 = vld [vmem:[%s4 + $0xc] sm:$0xf]
    %v821 = vld [vmem:[%s4 + $0x10] sm:$0xf]
    %v822 = vld [vmem:[%s4 + $0x14] sm:$0xf]
    %v823 = vld [vmem:[%s4 + $0x18] sm:$0xf]
    %v824 = vld [vmem:[%s4 + $0x1c] sm:$0xf]
    %v825 = vld [vmem:[%s4 + $0x20] sm:$0xf]
    %v826 = vld [vmem:[%s4 + $0x24] sm:$0xf]
    %v827 = vld [vmem:[%s4 + $0x28] sm:$0xf]
    %v828 = vld [vmem:[%s4 + $0x2c] sm:$0xf]
    %v829 = vld [vmem:[%s4 + $0x30] sm:$0xf]
    %v830 = vld [vmem:[%s4 + $0x34] sm:$0xf]
    %v831 = vld [vmem:[%s4 + $0x38] sm:$0xf]
    %v832 = vld [vmem:[%s4 + $0x3c] sm:$0xf]
    %v833 = vld [vmem:[%s5] sm:$0x1]
    %v835 = vlaneseq
    %v836 = vshrl.u32 %v835, 7
    %v837 = vsub.s32 0, %v836
    %v838 = vrot.slane %v833, %v837
    %v856 = vunpack.c.l.b16 %v817
    %v857 = vunpack.c.l.b16 %v818
    %v858 = vunpack.c.l.b16 %v819
    %v859 = vunpack.c.l.b16 %v820
    %v860 = vunpack.c.l.b16 %v821
    %v861 = vunpack.c.l.b16 %v822
    %v862 = vunpack.c.l.b16 %v823
    %v863 = vunpack.c.l.b16 %v824
    %v864 = vunpack.c.l.b16 %v825
    %v865 = vunpack.c.l.b16 %v826
    %v866 = vunpack.c.l.b16 %v827
    %v867 = vunpack.c.l.b16 %v828
    %v868 = vunpack.c.l.b16 %v829
    %v869 = vunpack.c.l.b16 %v830
    %v870 = vunpack.c.l.b16 %v831
    %v871 = vunpack.c.l.b16 %v832
    %v872 = vpack.c.b16 %v857, %v856
    %v873 = vpack.c.b16 %v859, %v858
    %v874 = vpack.c.b16 %v861, %v860
    %v875 = vpack.c.b16 %v863, %v862
    %v876 = vpack.c.b16 %v865, %v864
    %v877 = vpack.c.b16 %v867, %v866
    %v878 = vpack.c.b16 %v869, %v868
    %v879 = vpack.c.b16 %v871, %v870
    %888 = vmatprep.subr.bf16.mxu0 0
    %889 = vmatpush1.bf16.msra.mxu0 %v879
    %890 = vmatprep.subr.bf16.mxu0 0
    %891 = vmatpush1.bf16.msra.mxu0 %v878
    %892 = vmatprep.subr.bf16.mxu0 0
    %893 = vmatpush1.bf16.msra.mxu0 %v877
    %894 = vmatprep.subr.bf16.mxu0 0
    %895 = vmatpush1.bf16.msra.mxu0 %v876
    %896 = vmatprep.subr.bf16.mxu0 0
    %897 = vmatpush1.bf16.msra.mxu0 %v875
    %898 = vmatprep.subr.bf16.mxu0 0
    %899 = vmatpush1.bf16.msra.mxu0 %v874
    %900 = vmatprep.subr.bf16.mxu0 0
    %901 = vmatpush1.bf16.msra.mxu0 %v873
    %902 = vmatprep.subr.bf16.mxu0 0
    %903 = vmatpush1.bf16.msra.mxu0 %v872
    %904 = vmatprep.subr.bf16.mxu0 0
    %905 = vmatpush2.bf16.msra.mxu0 0
    %906 = vmatprep.subr.bf16.mxu0 0
    %907 = vmatpush2.bf16.msra.mxu0 0
    %908 = vmatprep.subr.bf16.mxu0 0
    %909 = vmatpush2.bf16.msra.mxu0 0
    %910 = vmatprep.subr.bf16.mxu0 0
    %911 = vmatpush2.bf16.msra.mxu0 0
    %912 = vmatprep.subr.bf16.mxu0 0
    %913 = vmatpush2.bf16.msra.mxu0 0
    %914 = vmatprep.subr.bf16.mxu0 0
    %915 = vmatpush2.bf16.msra.mxu0 0
    %916 = vmatprep.subr.bf16.mxu0 0
    %917 = vmatpush2.bf16.msra.mxu0 0
    %918 = vmatprep.subr.bf16.mxu0 0
    %919 = vmatpush2.bf16.msra.mxu0 0
    %920 = vmatprep.mubr.bf16.mxu0 0
    %921 = vmatmul.mubr.bf16.gmra.mxu0 %v136
    %v922 = vpop.f32.mrf.mxu0
    %v923 = vadd.f32 %v838, %v922
    %v924 = vpop.f32.mrf.mxu0
    %v925 = vpop.f32.mrf.mxu0
    %v926 = vpop.f32.mrf.mxu0
    %927 = vdwg.mxu0
    %v928 = vmax.f32 %v923, 0.0
    %v929 = vpack.c.bf16 %v816, %v816
    %v930 = vld [vmem:[#allocation2] sm:$0xff]
    %v931 = vld [vmem:[#allocation2 + $0x8] sm:$0xff]
    %v932 = vld [vmem:[#allocation2 + $0x10] sm:$0xff]
    %v933 = vld [vmem:[#allocation2 + $0x18] sm:$0xff]
    %v934 = vld [vmem:[#allocation2 + $0x20] sm:$0xff]
    %v935 = vld [vmem:[#allocation2 + $0x28] sm:$0xff]
    %v936 = vld [vmem:[#allocation2 + $0x30] sm:$0xff]
    %v937 = vld [vmem:[#allocation2 + $0x38] sm:$0xff]
    %v938 = vpack.c.bf16 %v928, %v928
    %v939 = vld [vmem:[#allocation4] sm:$0xff]
    %v940 = vld [vmem:[#allocation4 + $0x8] sm:$0xff]
    %v941 = vld [vmem:[#allocation4 + $0x10] sm:$0xff]
    %v942 = vld [vmem:[#allocation4 + $0x18] sm:$0xff]
    %v943 = vld [vmem:[#allocation4 + $0x20] sm:$0xff]
    %v944 = vld [vmem:[#allocation4 + $0x28] sm:$0xff]
    %v945 = vld [vmem:[#allocation4 + $0x30] sm:$0xff]
    %v946 = vld [vmem:[#allocation4 + $0x38] sm:$0xff]
    %v955 = vunpack.c.l.b16 %v939
    %v956 = vunpack.c.h.b16 %v939
    %v957 = vunpack.c.l.b16 %v940
    %v958 = vunpack.c.h.b16 %v940
    %v959 = vunpack.c.l.b16 %v941
    %v960 = vunpack.c.h.b16 %v941
    %v961 = vunpack.c.l.b16 %v942
    %v962 = vunpack.c.h.b16 %v942
    %v963 = vunpack.c.l.b16 %v943
    %v964 = vunpack.c.h.b16 %v943
    %v965 = vunpack.c.l.b16 %v944
    %v966 = vunpack.c.h.b16 %v944
    %v967 = vunpack.c.l.b16 %v945
    %v968 = vunpack.c.h.b16 %v945
    %v969 = vunpack.c.l.b16 %v946
    %v970 = vunpack.c.h.b16 %v946
    %v971 = vpack.c.b16 %v957, %v955
    %v972 = vpack.c.b16 %v958, %v956
    %v973 = vpack.c.b16 %v961, %v959
    %v974 = vpack.c.b16 %v962, %v960
    %v975 = vpack.c.b16 %v965, %v963
    %v976 = vpack.c.b16 %v966, %v964
    %v977 = vpack.c.b16 %v969, %v967
    %v978 = vpack.c.b16 %v970, %v968
    %vm987 = vcmask 523264
    %v989 = vsel %vm987, %v938, 0
    %991 = vmatprep.subr.bf16.mxu0 0
    %992 = vmatpush1.bf16.msra.mxu0 0
    %993 = vmatprep.subr.bf16.mxu0 0
    %994 = vmatpush1.bf16.msra.mxu0 0
    %995 = vmatprep.subr.bf16.mxu0 0
    %996 = vmatpush1.bf16.msra.mxu0 0
    %997 = vmatprep.subr.bf16.mxu0 0
    %998 = vmatpush1.bf16.msra.mxu0 0
    %999 = vmatprep.subr.bf16.mxu0 %v978
    %1000 = vmatpush1.bf16.msra.mxu0 %v977
    %1001 = vmatprep.subr.bf16.mxu0 %v976
    %1002 = vmatpush1.bf16.msra.mxu0 %v975
    %1003 = vmatprep.subr.bf16.mxu0 %v974
    %1004 = vmatpush1.bf16.msra.mxu0 %v973
    %1005 = vmatprep.subr.bf16.mxu0 %v972
    %1006 = vmatpush1.bf16.msra.mxu0 %v971
    %1007 = vmatprep.subr.bf16.mxu0 0
    %1008 = vmatpush2.bf16.msra.mxu0 0
    %1009 = vmatprep.subr.bf16.mxu0 0
    %1010 = vmatpush2.bf16.msra.mxu0 0
    %1011 = vmatprep.subr.bf16.mxu0 0
    %1012 = vmatpush2.bf16.msra.mxu0 0
    %1013 = vmatprep.subr.bf16.mxu0 0
    %1014 = vmatpush2.bf16.msra.mxu0 0
    %1015 = vmatprep.subr.bf16.mxu0 0
    %1016 = vmatpush2.bf16.msra.mxu0 0
    %1017 = vmatprep.subr.bf16.mxu0 0
    %1018 = vmatpush2.bf16.msra.mxu0 0
    %1019 = vmatprep.subr.bf16.mxu0 0
    %1020 = vmatpush2.bf16.msra.mxu0 0
    %1021 = vmatprep.subr.bf16.mxu0 0
    %1022 = vmatpush2.bf16.msra.mxu0 0
    %1023 = vmatprep.mubr.bf16.mxu0 0
    %1024 = vmatmul.mubr.bf16.gmra.mxu0 %v989
    %v1025 = vpop.f32.mrf.mxu0
    %v1026 = vadd.f32 0.0, %v1025
    %v1027 = vpop.f32.mrf.mxu0
    %v1028 = vadd.f32 0.0, %v1027
    %v1029 = vpop.f32.mrf.mxu0
    %v1030 = vpop.f32.mrf.mxu0
    %1031 = vdwg.mxu0
    %v1040 = vunpack.c.l.b16 %v930
    %v1041 = vunpack.c.h.b16 %v930
    %v1042 = vunpack.c.l.b16 %v931
    %v1043 = vunpack.c.h.b16 %v931
    %v1044 = vunpack.c.l.b16 %v932
    %v1045 = vunpack.c.h.b16 %v932
    %v1046 = vunpack.c.l.b16 %v933
    %v1047 = vunpack.c.h.b16 %v933
    %v1048 = vunpack.c.l.b16 %v934
    %v1049 = vunpack.c.h.b16 %v934
    %v1050 = vunpack.c.l.b16 %v935
    %v1051 = vunpack.c.h.b16 %v935
    %v1052 = vunpack.c.l.b16 %v936
    %v1053 = vunpack.c.h.b16 %v936
    %v1054 = vunpack.c.l.b16 %v937
    %v1055 = vunpack.c.h.b16 %v937
    %v1056 = vpack.c.b16 %v1042, %v1040
    %v1057 = vpack.c.b16 %v1043, %v1041
    %v1058 = vpack.c.b16 %v1046, %v1044
    %v1059 = vpack.c.b16 %v1047, %v1045
    %v1060 = vpack.c.b16 %v1050, %v1048
    %v1061 = vpack.c.b16 %v1051, %v1049
    %v1062 = vpack.c.b16 %v1054, %v1052
    %v1063 = vpack.c.b16 %v1055, %v1053
    %v1073 = vsel %vm987, %v929, 0
    %1075 = vmatprep.subr.bf16.mxu0 0
    %1076 = vmatpush1.bf16.msra.mxu0 0
    %1077 = vmatprep.subr.bf16.mxu0 0
    %1078 = vmatpush1.bf16.msra.mxu0 0
    %1079 = vmatprep.subr.bf16.mxu0 0
    %1080 = vmatpush1.bf16.msra.mxu0 0
    %1081 = vmatprep.subr.bf16.mxu0 0
    %1082 = vmatpush1.bf16.msra.mxu0 0
    %1083 = vmatprep.subr.bf16.mxu0 %v1063
    %1084 = vmatpush1.bf16.msra.mxu0 %v1062
    %1085 = vmatprep.subr.bf16.mxu0 %v1061
    %1086 = vmatpush1.bf16.msra.mxu0 %v1060
    %1087 = vmatprep.subr.bf16.mxu0 %v1059
    %1088 = vmatpush1.bf16.msra.mxu0 %v1058
    %1089 = vmatprep.subr.bf16.mxu0 %v1057
    %1090 = vmatpush1.bf16.msra.mxu0 %v1056
    %1091 = vmatprep.subr.bf16.mxu0 0
    %1092 = vmatpush2.bf16.msra.mxu0 0
    %1093 = vmatprep.subr.bf16.mxu0 0
    %1094 = vmatpush2.bf16.msra.mxu0 0
    %1095 = vmatprep.subr.bf16.mxu0 0
    %1096 = vmatpush2.bf16.msra.mxu0 0
    %1097 = vmatprep.subr.bf16.mxu0 0
    %1098 = vmatpush2.bf16.msra.mxu0 0
    %1099 = vmatprep.subr.bf16.mxu0 0
    %1100 = vmatpush2.bf16.msra.mxu0 0
    %1101 = vmatprep.subr.bf16.mxu0 0
    %1102 = vmatpush2.bf16.msra.mxu0 0
    %1103 = vmatprep.subr.bf16.mxu0 0
    %1104 = vmatpush2.bf16.msra.mxu0 0
    %1105 = vmatprep.subr.bf16.mxu0 0
    %1106 = vmatpush2.bf16.msra.mxu0 0
    %1107 = vmatprep.mubr.bf16.mxu0 0
    %1108 = vmatmul.mubr.bf16.gmra.mxu0 %v1073
    %v1109 = vpop.f32.mrf.mxu0
    %v1110 = vadd.f32 %v1026, %v1109
    %v1111 = vpop.f32.mrf.mxu0
    %v1112 = vadd.f32 %v1028, %v1111
    %v1113 = vpop.f32.mrf.mxu0
    %v1114 = vpop.f32.mrf.mxu0
    %1115 = vdwg.mxu0
    %v1116 = vld [vmem:[%s8] sm:$0x3]
    %v1118 = vlaneseq
    %v1119 = vshrl.u32 %v1118, 7
    %v1120 = vsub.s32 0, %v1119
    %v1121 = vrot.slane %v1116, %v1120
    %v1122 = vlaneseq
    %v1123 = vshrl.u32 %v1122, 7
    %v1124 = vsub.s32 1, %v1123
    %v1125 = vrot.slane %v1116, %v1124
    %v1128 = vadd.f32 %v1110, %v1121
    %v1129 = vadd.f32 %v1112, %v1125
    %v1130 = vmax.f32 %v1128, 0.0
    %v1131 = vmax.f32 %v1129, 0.0
    %v1132 = vpack.c.bf16 %v1130, %v1130
    %v1133 = vpack.c.bf16 %v1131, %v1131
    %v1134 = vld [vmem:[#allocation6] sm:$0xff]
    %v1135 = vld [vmem:[#allocation6 + $0x8] sm:$0xff]
    %v1136 = vld [vmem:[#allocation6 + $0x10] sm:$0xff]
    %v1137 = vld [vmem:[#allocation6 + $0x18] sm:$0xff]
    %v1138 = vld [vmem:[#allocation6 + $0x20] sm:$0xff]
    %v1139 = vld [vmem:[#allocation6 + $0x28] sm:$0xff]
    %v1140 = vld [vmem:[#allocation6 + $0x30] sm:$0xff]
    %v1141 = vld [vmem:[#allocation6 + $0x38] sm:$0xff]
    %v1142 = vld [vmem:[#allocation6 + $0x40] sm:$0xff]
    %v1143 = vld [vmem:[#allocation6 + $0x48] sm:$0xff]
    %v1144 = vld [vmem:[#allocation6 + $0x50] sm:$0xff]
    %v1145 = vld [vmem:[#allocation6 + $0x58] sm:$0xff]
    %v1146 = vld [vmem:[#allocation6 + $0x60] sm:$0xff]
    %v1147 = vld [vmem:[#allocation6 + $0x68] sm:$0xff]
    %v1148 = vld [vmem:[#allocation6 + $0x70] sm:$0xff]
    %v1149 = vld [vmem:[#allocation6 + $0x78] sm:$0xff]
    %v1150 = vld [vmem:[#allocation6 + $0x80] sm:$0xff]
    %v1151 = vld [vmem:[#allocation6 + $0x88] sm:$0xff]
    %v1152 = vld [vmem:[#allocation6 + $0x90] sm:$0xff]
    %v1153 = vld [vmem:[#allocation6 + $0x98] sm:$0xff]
    %v1154 = vld [vmem:[#allocation6 + $0xa0] sm:$0xff]
    %v1155 = vld [vmem:[#allocation6 + $0xa8] sm:$0xff]
    %v1156 = vld [vmem:[#allocation6 + $0xb0] sm:$0xff]
    %v1157 = vld [vmem:[#allocation6 + $0xb8] sm:$0xff]
    %v1158 = vld [vmem:[#allocation6 + $0xc0] sm:$0xff]
    %v1159 = vld [vmem:[#allocation6 + $0xc8] sm:$0xff]
    %v1160 = vld [vmem:[#allocation6 + $0xd0] sm:$0xff]
    %v1161 = vld [vmem:[#allocation6 + $0xd8] sm:$0xff]
    %v1162 = vld [vmem:[#allocation6 + $0xe0] sm:$0xff]
    %v1163 = vld [vmem:[#allocation6 + $0xe8] sm:$0xff]
    %v1164 = vld [vmem:[#allocation6 + $0xf0] sm:$0xff]
    %v1165 = vld [vmem:[#allocation6 + $0xf8] sm:$0xff]
    %v1166 = vld [vmem:[#allocation6 + $0x100] sm:$0xff]
    %v1167 = vld [vmem:[#allocation6 + $0x108] sm:$0xff]
    %v1168 = vld [vmem:[#allocation6 + $0x110] sm:$0xff]
    %v1169 = vld [vmem:[#allocation6 + $0x118] sm:$0xff]
    %v1170 = vld [vmem:[#allocation6 + $0x120] sm:$0xff]
    %v1171 = vld [vmem:[#allocation6 + $0x128] sm:$0xff]
    %v1172 = vld [vmem:[#allocation6 + $0x130] sm:$0xff]
    %v1173 = vld [vmem:[#allocation6 + $0x138] sm:$0xff]
    %v1174 = vld [vmem:[#allocation6 + $0x140] sm:$0xff]
    %v1175 = vld [vmem:[#allocation6 + $0x148] sm:$0xff]
    %v1176 = vld [vmem:[#allocation6 + $0x150] sm:$0xff]
    %v1177 = vld [vmem:[#allocation6 + $0x158] sm:$0xff]
    %v1178 = vld [vmem:[#allocation6 + $0x160] sm:$0xff]
    %v1179 = vld [vmem:[#allocation6 + $0x168] sm:$0xff]
    %v1180 = vld [vmem:[#allocation6 + $0x170] sm:$0xff]
    %v1181 = vld [vmem:[#allocation6 + $0x178] sm:$0xff]
    %v1182 = vld [vmem:[#allocation6 + $0x180] sm:$0xff]
    %v1183 = vld [vmem:[#allocation6 + $0x188] sm:$0xff]
    %v1184 = vld [vmem:[#allocation6 + $0x190] sm:$0xff]
    %v1185 = vld [vmem:[#allocation6 + $0x198] sm:$0xff]
    %v1186 = vld [vmem:[#allocation6 + $0x1a0] sm:$0xff]
    %v1187 = vld [vmem:[#allocation6 + $0x1a8] sm:$0xff]
    %v1188 = vld [vmem:[#allocation6 + $0x1b0] sm:$0xff]
    %v1189 = vld [vmem:[#allocation6 + $0x1b8] sm:$0xff]
    %v1190 = vld [vmem:[#allocation6 + $0x1c0] sm:$0xff]
    %v1191 = vld [vmem:[#allocation6 + $0x1c8] sm:$0xff]
    %v1192 = vld [vmem:[#allocation6 + $0x1d0] sm:$0xff]
    %v1193 = vld [vmem:[#allocation6 + $0x1d8] sm:$0xff]
    %v1194 = vld [vmem:[#allocation6 + $0x1e0] sm:$0xff]
    %v1195 = vld [vmem:[#allocation6 + $0x1e8] sm:$0xff]
    %v1196 = vld [vmem:[#allocation6 + $0x1f0] sm:$0xff]
    %v1197 = vld [vmem:[#allocation6 + $0x1f8] sm:$0xff]
    %v1198 = vld [vmem:[%s10] sm:$0xf]
    %v1200 = vlaneseq
    %v1201 = vshrl.u32 %v1200, 7
    %v1202 = vsub.s32 0, %v1201
    %v1203 = vrot.slane %v1198, %v1202
    %v1204 = vlaneseq
    %v1205 = vshrl.u32 %v1204, 7
    %v1206 = vsub.s32 1, %v1205
    %v1207 = vrot.slane %v1198, %v1206
    %v1208 = vlaneseq
    %v1209 = vshrl.u32 %v1208, 7
    %v1210 = vsub.s32 2, %v1209
    %v1211 = vrot.slane %v1198, %v1210
    %v1212 = vlaneseq
    %v1213 = vshrl.u32 %v1212, 7
    %v1214 = vsub.s32 3, %v1213
    %v1215 = vrot.slane %v1198, %v1214
    %v1284 = vunpack.c.l.b16 %v1134
    %v1285 = vunpack.c.h.b16 %v1134
    %v1286 = vunpack.c.l.b16 %v1135
    %v1287 = vunpack.c.h.b16 %v1135
    %v1288 = vunpack.c.l.b16 %v1136
    %v1289 = vunpack.c.h.b16 %v1136
    %v1290 = vunpack.c.l.b16 %v1137
    %v1291 = vunpack.c.h.b16 %v1137
    %v1292 = vunpack.c.l.b16 %v1138
    %v1293 = vunpack.c.h.b16 %v1138
    %v1294 = vunpack.c.l.b16 %v1139
    %v1295 = vunpack.c.h.b16 %v1139
    %v1296 = vunpack.c.l.b16 %v1140
    %v1297 = vunpack.c.h.b16 %v1140
    %v1298 = vunpack.c.l.b16 %v1141
    %v1299 = vunpack.c.h.b16 %v1141
    %v1300 = vunpack.c.l.b16 %v1142
    %v1301 = vunpack.c.h.b16 %v1142
    %v1302 = vunpack.c.l.b16 %v1143
    %v1303 = vunpack.c.h.b16 %v1143
    %v1304 = vunpack.c.l.b16 %v1144
    %v1305 = vunpack.c.h.b16 %v1144
    %v1306 = vunpack.c.l.b16 %v1145
    %v1307 = vunpack.c.h.b16 %v1145
    %v1308 = vunpack.c.l.b16 %v1146
    %v1309 = vunpack.c.h.b16 %v1146
    %v1310 = vunpack.c.l.b16 %v1147
    %v1311 = vunpack.c.h.b16 %v1147
    %v1312 = vunpack.c.l.b16 %v1148
    %v1313 = vunpack.c.h.b16 %v1148
    %v1314 = vunpack.c.l.b16 %v1149
    %v1315 = vunpack.c.h.b16 %v1149
    %v1316 = vunpack.c.l.b16 %v1150
    %v1317 = vunpack.c.h.b16 %v1150
    %v1318 = vunpack.c.l.b16 %v1151
    %v1319 = vunpack.c.h.b16 %v1151
    %v1320 = vunpack.c.l.b16 %v1152
    %v1321 = vunpack.c.h.b16 %v1152
    %v1322 = vunpack.c.l.b16 %v1153
    %v1323 = vunpack.c.h.b16 %v1153
    %v1324 = vunpack.c.l.b16 %v1154
    %v1325 = vunpack.c.h.b16 %v1154
    %v1326 = vunpack.c.l.b16 %v1155
    %v1327 = vunpack.c.h.b16 %v1155
    %v1328 = vunpack.c.l.b16 %v1156
    %v1329 = vunpack.c.h.b16 %v1156
    %v1330 = vunpack.c.l.b16 %v1157
    %v1331 = vunpack.c.h.b16 %v1157
    %v1332 = vunpack.c.l.b16 %v1158
    %v1333 = vunpack.c.h.b16 %v1158
    %v1334 = vunpack.c.l.b16 %v1159
    %v1335 = vunpack.c.h.b16 %v1159
    %v1336 = vunpack.c.l.b16 %v1160
    %v1337 = vunpack.c.h.b16 %v1160
    %v1338 = vunpack.c.l.b16 %v1161
    %v1339 = vunpack.c.h.b16 %v1161
    %v1340 = vunpack.c.l.b16 %v1162
    %v1341 = vunpack.c.h.b16 %v1162
    %v1342 = vunpack.c.l.b16 %v1163
    %v1343 = vunpack.c.h.b16 %v1163
    %v1344 = vunpack.c.l.b16 %v1164
    %v1345 = vunpack.c.h.b16 %v1164
    %v1346 = vunpack.c.l.b16 %v1165
    %v1347 = vunpack.c.h.b16 %v1165
    %v1348 = vunpack.c.l.b16 %v1166
    %v1349 = vunpack.c.h.b16 %v1166
    %v1350 = vunpack.c.l.b16 %v1167
    %v1351 = vunpack.c.h.b16 %v1167
    %v1352 = vunpack.c.l.b16 %v1168
    %v1353 = vunpack.c.h.b16 %v1168
    %v1354 = vunpack.c.l.b16 %v1169
    %v1355 = vunpack.c.h.b16 %v1169
    %v1356 = vunpack.c.l.b16 %v1170
    %v1357 = vunpack.c.h.b16 %v1170
    %v1358 = vunpack.c.l.b16 %v1171
    %v1359 = vunpack.c.h.b16 %v1171
    %v1360 = vunpack.c.l.b16 %v1172
    %v1361 = vunpack.c.h.b16 %v1172
    %v1362 = vunpack.c.l.b16 %v1173
    %v1363 = vunpack.c.h.b16 %v1173
    %v1364 = vunpack.c.l.b16 %v1174
    %v1365 = vunpack.c.h.b16 %v1174
    %v1366 = vunpack.c.l.b16 %v1175
    %v1367 = vunpack.c.h.b16 %v1175
    %v1368 = vunpack.c.l.b16 %v1176
    %v1369 = vunpack.c.h.b16 %v1176
    %v1370 = vunpack.c.l.b16 %v1177
    %v1371 = vunpack.c.h.b16 %v1177
    %v1372 = vunpack.c.l.b16 %v1178
    %v1373 = vunpack.c.h.b16 %v1178
    %v1374 = vunpack.c.l.b16 %v1179
    %v1375 = vunpack.c.h.b16 %v1179
    %v1376 = vunpack.c.l.b16 %v1180
    %v1377 = vunpack.c.h.b16 %v1180
    %v1378 = vunpack.c.l.b16 %v1181
    %v1379 = vunpack.c.h.b16 %v1181
    %v1380 = vunpack.c.l.b16 %v1182
    %v1381 = vunpack.c.h.b16 %v1182
    %v1382 = vunpack.c.l.b16 %v1183
    %v1383 = vunpack.c.h.b16 %v1183
    %v1384 = vunpack.c.l.b16 %v1184
    %v1385 = vunpack.c.h.b16 %v1184
    %v1386 = vunpack.c.l.b16 %v1185
    %v1387 = vunpack.c.h.b16 %v1185
    %v1388 = vunpack.c.l.b16 %v1186
    %v1389 = vunpack.c.h.b16 %v1186
    %v1390 = vunpack.c.l.b16 %v1187
    %v1391 = vunpack.c.h.b16 %v1187
    %v1392 = vunpack.c.l.b16 %v1188
    %v1393 = vunpack.c.h.b16 %v1188
    %v1394 = vunpack.c.l.b16 %v1189
    %v1395 = vunpack.c.h.b16 %v1189
    %v1396 = vunpack.c.l.b16 %v1190
    %v1397 = vunpack.c.h.b16 %v1190
    %v1398 = vunpack.c.l.b16 %v1191
    %v1399 = vunpack.c.h.b16 %v1191
    %v1400 = vunpack.c.l.b16 %v1192
    %v1401 = vunpack.c.h.b16 %v1192
    %v1402 = vunpack.c.l.b16 %v1193
    %v1403 = vunpack.c.h.b16 %v1193
    %v1404 = vunpack.c.l.b16 %v1194
    %v1405 = vunpack.c.h.b16 %v1194
    %v1406 = vunpack.c.l.b16 %v1195
    %v1407 = vunpack.c.h.b16 %v1195
    %v1408 = vunpack.c.l.b16 %v1196
    %v1409 = vunpack.c.h.b16 %v1196
    %v1410 = vunpack.c.l.b16 %v1197
    %v1411 = vunpack.c.h.b16 %v1197
    %v1412 = vpack.c.b16 %v1288, %v1284
    %v1413 = vpack.c.b16 %v1289, %v1285
    %v1414 = vpack.c.b16 %v1290, %v1286
    %v1415 = vpack.c.b16 %v1291, %v1287
    %v1416 = vpack.c.b16 %v1296, %v1292
    %v1417 = vpack.c.b16 %v1297, %v1293
    %v1418 = vpack.c.b16 %v1298, %v1294
    %v1419 = vpack.c.b16 %v1299, %v1295
    %v1420 = vpack.c.b16 %v1304, %v1300
    %v1421 = vpack.c.b16 %v1305, %v1301
    %v1422 = vpack.c.b16 %v1306, %v1302
    %v1423 = vpack.c.b16 %v1307, %v1303
    %v1424 = vpack.c.b16 %v1312, %v1308
    %v1425 = vpack.c.b16 %v1313, %v1309
    %v1426 = vpack.c.b16 %v1314, %v1310
    %v1427 = vpack.c.b16 %v1315, %v1311
    %v1428 = vpack.c.b16 %v1320, %v1316
    %v1429 = vpack.c.b16 %v1321, %v1317
    %v1430 = vpack.c.b16 %v1322, %v1318
    %v1431 = vpack.c.b16 %v1323, %v1319
    %v1432 = vpack.c.b16 %v1328, %v1324
    %v1433 = vpack.c.b16 %v1329, %v1325
    %v1434 = vpack.c.b16 %v1330, %v1326
    %v1435 = vpack.c.b16 %v1331, %v1327
    %v1436 = vpack.c.b16 %v1336, %v1332
    %v1437 = vpack.c.b16 %v1337, %v1333
    %v1438 = vpack.c.b16 %v1338, %v1334
    %v1439 = vpack.c.b16 %v1339, %v1335
    %v1440 = vpack.c.b16 %v1344, %v1340
    %v1441 = vpack.c.b16 %v1345, %v1341
    %v1442 = vpack.c.b16 %v1346, %v1342
    %v1443 = vpack.c.b16 %v1347, %v1343
    %v1444 = vpack.c.b16 %v1352, %v1348
    %v1445 = vpack.c.b16 %v1353, %v1349
    %v1446 = vpack.c.b16 %v1354, %v1350
    %v1447 = vpack.c.b16 %v1355, %v1351
    %v1448 = vpack.c.b16 %v1360, %v1356
    %v1449 = vpack.c.b16 %v1361, %v1357
    %v1450 = vpack.c.b16 %v1362, %v1358
    %v1451 = vpack.c.b16 %v1363, %v1359
    %v1452 = vpack.c.b16 %v1368, %v1364
    %v1453 = vpack.c.b16 %v1369, %v1365
    %v1454 = vpack.c.b16 %v1370, %v1366
    %v1455 = vpack.c.b16 %v1371, %v1367
    %v1456 = vpack.c.b16 %v1376, %v1372
    %v1457 = vpack.c.b16 %v1377, %v1373
    %v1458 = vpack.c.b16 %v1378, %v1374
    %v1459 = vpack.c.b16 %v1379, %v1375
    %v1460 = vpack.c.b16 %v1384, %v1380
    %v1461 = vpack.c.b16 %v1385, %v1381
    %v1462 = vpack.c.b16 %v1386, %v1382
    %v1463 = vpack.c.b16 %v1387, %v1383
    %v1464 = vpack.c.b16 %v1392, %v1388
    %v1465 = vpack.c.b16 %v1393, %v1389
    %v1466 = vpack.c.b16 %v1394, %v1390
    %v1467 = vpack.c.b16 %v1395, %v1391
    %v1468 = vpack.c.b16 %v1400, %v1396
    %v1469 = vpack.c.b16 %v1401, %v1397
    %v1470 = vpack.c.b16 %v1402, %v1398
    %v1471 = vpack.c.b16 %v1403, %v1399
    %v1472 = vpack.c.b16 %v1408, %v1404
    %v1473 = vpack.c.b16 %v1409, %v1405
    %v1474 = vpack.c.b16 %v1410, %v1406
    %v1475 = vpack.c.b16 %v1411, %v1407
    %1540 = vmatprep.subr.bf16.mxu0 %v1441
    %1541 = vmatpush1.bf16.msra.mxu0 %v1440
    %1542 = vmatprep.subr.bf16.mxu0 %v1437
    %1543 = vmatpush1.bf16.msra.mxu0 %v1436
    %1544 = vmatprep.subr.bf16.mxu0 %v1433
    %1545 = vmatpush1.bf16.msra.mxu0 %v1432
    %1546 = vmatprep.subr.bf16.mxu0 %v1429
    %1547 = vmatpush1.bf16.msra.mxu0 %v1428
    %1548 = vmatprep.subr.bf16.mxu0 %v1425
    %1549 = vmatpush1.bf16.msra.mxu0 %v1424
    %1550 = vmatprep.subr.bf16.mxu0 %v1421
    %1551 = vmatpush1.bf16.msra.mxu0 %v1420
    %1552 = vmatprep.subr.bf16.mxu0 %v1417
    %1553 = vmatpush1.bf16.msra.mxu0 %v1416
    %1554 = vmatprep.subr.bf16.mxu0 %v1413
    %1555 = vmatpush1.bf16.msra.mxu0 %v1412
    %1556 = vmatprep.subr.bf16.mxu0 %v1473
    %1557 = vmatpush2.bf16.msra.mxu0 %v1472
    %1558 = vmatprep.subr.bf16.mxu0 %v1469
    %1559 = vmatpush2.bf16.msra.mxu0 %v1468
    %1560 = vmatprep.subr.bf16.mxu0 %v1465
    %1561 = vmatpush2.bf16.msra.mxu0 %v1464
    %1562 = vmatprep.subr.bf16.mxu0 %v1461
    %1563 = vmatpush2.bf16.msra.mxu0 %v1460
    %1564 = vmatprep.subr.bf16.mxu0 %v1457
    %1565 = vmatpush2.bf16.msra.mxu0 %v1456
    %1566 = vmatprep.subr.bf16.mxu0 %v1453
    %1567 = vmatpush2.bf16.msra.mxu0 %v1452
    %1568 = vmatprep.subr.bf16.mxu0 %v1449
    %1569 = vmatpush2.bf16.msra.mxu0 %v1448
    %1570 = vmatprep.subr.bf16.mxu0 %v1445
    %1571 = vmatpush2.bf16.msra.mxu0 %v1444
    %1572 = vmatprep.mubr.bf16.mxu0 %v1133
    %1573 = vmatmul.mubr.bf16.gmra.mxu0 %v1132
    %v1574 = vpop.f32.mrf.mxu0
    %v1575 = vadd.f32 %v1203, %v1574
    %v1576 = vpop.f32.mrf.mxu0
    %v1577 = vadd.f32 %v1207, %v1576
    %v1578 = vpop.f32.mrf.mxu0
    %v1579 = vpop.f32.mrf.mxu0
    %1580 = vdwg.mxu0
    %1581 = vmatprep.subr.bf16.mxu0 %v1443
    %1582 = vmatpush1.bf16.msra.mxu0 %v1442
    %1583 = vmatprep.subr.bf16.mxu0 %v1439
    %1584 = vmatpush1.bf16.msra.mxu0 %v1438
    %1585 = vmatprep.subr.bf16.mxu0 %v1435
    %1586 = vmatpush1.bf16.msra.mxu0 %v1434
    %1587 = vmatprep.subr.bf16.mxu0 %v1431
    %1588 = vmatpush1.bf16.msra.mxu0 %v1430
    %1589 = vmatprep.subr.bf16.mxu0 %v1427
    %1590 = vmatpush1.bf16.msra.mxu0 %v1426
    %1591 = vmatprep.subr.bf16.mxu0 %v1423
    %1592 = vmatpush1.bf16.msra.mxu0 %v1422
    %1593 = vmatprep.subr.bf16.mxu0 %v1419
    %1594 = vmatpush1.bf16.msra.mxu0 %v1418
    %1595 = vmatprep.subr.bf16.mxu0 %v1415
    %1596 = vmatpush1.bf16.msra.mxu0 %v1414
    %1597 = vmatprep.subr.bf16.mxu0 %v1475
    %1598 = vmatpush2.bf16.msra.mxu0 %v1474
    %1599 = vmatprep.subr.bf16.mxu0 %v1471
    %1600 = vmatpush2.bf16.msra.mxu0 %v1470
    %1601 = vmatprep.subr.bf16.mxu0 %v1467
    %1602 = vmatpush2.bf16.msra.mxu0 %v1466
    %1603 = vmatprep.subr.bf16.mxu0 %v1463
    %1604 = vmatpush2.bf16.msra.mxu0 %v1462
    %1605 = vmatprep.subr.bf16.mxu0 %v1459
    %1606 = vmatpush2.bf16.msra.mxu0 %v1458
    %1607 = vmatprep.subr.bf16.mxu0 %v1455
    %1608 = vmatpush2.bf16.msra.mxu0 %v1454
    %1609 = vmatprep.subr.bf16.mxu0 %v1451
    %1610 = vmatpush2.bf16.msra.mxu0 %v1450
    %1611 = vmatprep.subr.bf16.mxu0 %v1447
    %1612 = vmatpush2.bf16.msra.mxu0 %v1446
    %1613 = vmatprep.mubr.bf16.mxu0 %v1133
    %1614 = vmatmul.mubr.bf16.gmra.mxu0 %v1132
    %v1615 = vpop.f32.mrf.mxu0
    %v1616 = vadd.f32 %v1211, %v1615
    %v1617 = vpop.f32.mrf.mxu0
    %v1618 = vadd.f32 %v1215, %v1617
    %v1619 = vpop.f32.mrf.mxu0
    %v1620 = vpop.f32.mrf.mxu0
    %1621 = vdwg.mxu0
    %v1622 = vmax.f32 %v1575, 0.0
    %v1623 = vmax.f32 %v1577, 0.0
    %v1624 = vmax.f32 %v1616, 0.0
    %v1625 = vmax.f32 %v1618, 0.0
    %v1626 = vpack.c.bf16 %v1622, %v1622
    %v1627 = vpack.c.bf16 %v1623, %v1623
    %v1628 = vpack.c.bf16 %v1624, %v1624
    %v1629 = vpack.c.bf16 %v1625, %v1625
    %v1630 = vld [vmem:[#allocation7] sm:$0xff]
    %v1631 = vld [vmem:[#allocation7 + $0x8] sm:$0xff]
    %v1632 = vld [vmem:[#allocation7 + $0x10] sm:$0xff]
    %v1633 = vld [vmem:[#allocation7 + $0x18] sm:$0xff]
    %v1634 = vld [vmem:[#allocation7 + $0x20] sm:$0xff]
    %v1635 = vld [vmem:[#allocation7 + $0x28] sm:$0xff]
    %v1636 = vld [vmem:[#allocation7 + $0x30] sm:$0xff]
    %v1637 = vld [vmem:[#allocation7 + $0x38] sm:$0xff]
    %v1638 = vld [vmem:[#allocation7 + $0x40] sm:$0xff]
    %v1639 = vld [vmem:[#allocation7 + $0x48] sm:$0xff]
    %v1640 = vld [vmem:[#allocation7 + $0x50] sm:$0xff]
    %v1641 = vld [vmem:[#allocation7 + $0x58] sm:$0xff]
    %v1642 = vld [vmem:[#allocation7 + $0x60] sm:$0xff]
    %v1643 = vld [vmem:[#allocation7 + $0x68] sm:$0xff]
    %v1644 = vld [vmem:[#allocation7 + $0x70] sm:$0xff]
    %v1645 = vld [vmem:[#allocation7 + $0x78] sm:$0xff]
    %v1646 = vld [vmem:[#allocation7 + $0x80] sm:$0xff]
    %v1647 = vld [vmem:[#allocation7 + $0x88] sm:$0xff]
    %v1648 = vld [vmem:[#allocation7 + $0x90] sm:$0xff]
    %v1649 = vld [vmem:[#allocation7 + $0x98] sm:$0xff]
    %v1650 = vld [vmem:[#allocation7 + $0xa0] sm:$0xff]
    %v1651 = vld [vmem:[#allocation7 + $0xa8] sm:$0xff]
    %v1652 = vld [vmem:[#allocation7 + $0xb0] sm:$0xff]
    %v1653 = vld [vmem:[#allocation7 + $0xb8] sm:$0xff]
    %v1654 = vld [vmem:[#allocation7 + $0xc0] sm:$0xff]
    %v1655 = vld [vmem:[#allocation7 + $0xc8] sm:$0xff]
    %v1656 = vld [vmem:[#allocation7 + $0xd0] sm:$0xff]
    %v1657 = vld [vmem:[#allocation7 + $0xd8] sm:$0xff]
    %v1658 = vld [vmem:[#allocation7 + $0xe0] sm:$0xff]
    %v1659 = vld [vmem:[#allocation7 + $0xe8] sm:$0xff]
    %v1660 = vld [vmem:[#allocation7 + $0xf0] sm:$0xff]
    %v1661 = vld [vmem:[#allocation7 + $0xf8] sm:$0xff]
    %v1662 = vld [vmem:[#allocation7 + $0x100] sm:$0xff]
    %v1663 = vld [vmem:[#allocation7 + $0x108] sm:$0xff]
    %v1664 = vld [vmem:[#allocation7 + $0x110] sm:$0xff]
    %v1665 = vld [vmem:[#allocation7 + $0x118] sm:$0xff]
    %v1666 = vld [vmem:[#allocation7 + $0x120] sm:$0xff]
    %v1667 = vld [vmem:[#allocation7 + $0x128] sm:$0xff]
    %v1668 = vld [vmem:[#allocation7 + $0x130] sm:$0xff]
    %v1669 = vld [vmem:[#allocation7 + $0x138] sm:$0xff]
    %v1670 = vld [vmem:[#allocation7 + $0x140] sm:$0xff]
    %v1671 = vld [vmem:[#allocation7 + $0x148] sm:$0xff]
    %v1672 = vld [vmem:[#allocation7 + $0x150] sm:$0xff]
    %v1673 = vld [vmem:[#allocation7 + $0x158] sm:$0xff]
    %v1674 = vld [vmem:[#allocation7 + $0x160] sm:$0xff]
    %v1675 = vld [vmem:[#allocation7 + $0x168] sm:$0xff]
    %v1676 = vld [vmem:[#allocation7 + $0x170] sm:$0xff]
    %v1677 = vld [vmem:[#allocation7 + $0x178] sm:$0xff]
    %v1678 = vld [vmem:[#allocation7 + $0x180] sm:$0xff]
    %v1679 = vld [vmem:[#allocation7 + $0x188] sm:$0xff]
    %v1680 = vld [vmem:[#allocation7 + $0x190] sm:$0xff]
    %v1681 = vld [vmem:[#allocation7 + $0x198] sm:$0xff]
    %v1682 = vld [vmem:[#allocation7 + $0x1a0] sm:$0xff]
    %v1683 = vld [vmem:[#allocation7 + $0x1a8] sm:$0xff]
    %v1684 = vld [vmem:[#allocation7 + $0x1b0] sm:$0xff]
    %v1685 = vld [vmem:[#allocation7 + $0x1b8] sm:$0xff]
    %v1686 = vld [vmem:[#allocation7 + $0x1c0] sm:$0xff]
    %v1687 = vld [vmem:[#allocation7 + $0x1c8] sm:$0xff]
    %v1688 = vld [vmem:[#allocation7 + $0x1d0] sm:$0xff]
    %v1689 = vld [vmem:[#allocation7 + $0x1d8] sm:$0xff]
    %v1690 = vld [vmem:[#allocation7 + $0x1e0] sm:$0xff]
    %v1691 = vld [vmem:[#allocation7 + $0x1e8] sm:$0xff]
    %v1692 = vld [vmem:[#allocation7 + $0x1f0] sm:$0xff]
    %v1693 = vld [vmem:[#allocation7 + $0x1f8] sm:$0xff]
    %v1694 = vld [vmem:[#allocation7 + $0x200] sm:$0xff]
    %v1695 = vld [vmem:[#allocation7 + $0x208] sm:$0xff]
    %v1696 = vld [vmem:[#allocation7 + $0x210] sm:$0xff]
    %v1697 = vld [vmem:[#allocation7 + $0x218] sm:$0xff]
    %v1698 = vld [vmem:[#allocation7 + $0x220] sm:$0xff]
    %v1699 = vld [vmem:[#allocation7 + $0x228] sm:$0xff]
    %v1700 = vld [vmem:[#allocation7 + $0x230] sm:$0xff]
    %v1701 = vld [vmem:[#allocation7 + $0x238] sm:$0xff]
    %v1702 = vld [vmem:[#allocation7 + $0x240] sm:$0xff]
    %v1703 = vld [vmem:[#allocation7 + $0x248] sm:$0xff]
    %v1704 = vld [vmem:[#allocation7 + $0x250] sm:$0xff]
    %v1705 = vld [vmem:[#allocation7 + $0x258] sm:$0xff]
    %v1706 = vld [vmem:[#allocation7 + $0x260] sm:$0xff]
    %v1707 = vld [vmem:[#allocation7 + $0x268] sm:$0xff]
    %v1708 = vld [vmem:[#allocation7 + $0x270] sm:$0xff]
    %v1709 = vld [vmem:[#allocation7 + $0x278] sm:$0xff]
    %v1710 = vld [vmem:[#allocation7 + $0x280] sm:$0xff]
    %v1711 = vld [vmem:[#allocation7 + $0x288] sm:$0xff]
    %v1712 = vld [vmem:[#allocation7 + $0x290] sm:$0xff]
    %v1713 = vld [vmem:[#allocation7 + $0x298] sm:$0xff]
    %v1714 = vld [vmem:[#allocation7 + $0x2a0] sm:$0xff]
    %v1715 = vld [vmem:[#allocation7 + $0x2a8] sm:$0xff]
    %v1716 = vld [vmem:[#allocation7 + $0x2b0] sm:$0xff]
    %v1717 = vld [vmem:[#allocation7 + $0x2b8] sm:$0xff]
    %v1718 = vld [vmem:[#allocation7 + $0x2c0] sm:$0xff]
    %v1719 = vld [vmem:[#allocation7 + $0x2c8] sm:$0xff]
    %v1720 = vld [vmem:[#allocation7 + $0x2d0] sm:$0xff]
    %v1721 = vld [vmem:[#allocation7 + $0x2d8] sm:$0xff]
    %v1722 = vld [vmem:[#allocation7 + $0x2e0] sm:$0xff]
    %v1723 = vld [vmem:[#allocation7 + $0x2e8] sm:$0xff]
    %v1724 = vld [vmem:[#allocation7 + $0x2f0] sm:$0xff]
    %v1725 = vld [vmem:[#allocation7 + $0x2f8] sm:$0xff]
    %v1726 = vld [vmem:[#allocation7 + $0x300] sm:$0xff]
    %v1727 = vld [vmem:[#allocation7 + $0x308] sm:$0xff]
    %v1728 = vld [vmem:[#allocation7 + $0x310] sm:$0xff]
    %v1729 = vld [vmem:[#allocation7 + $0x318] sm:$0xff]
    %v1730 = vld [vmem:[#allocation7 + $0x320] sm:$0xff]
    %v1731 = vld [vmem:[#allocation7 + $0x328] sm:$0xff]
    %v1732 = vld [vmem:[#allocation7 + $0x330] sm:$0xff]
    %v1733 = vld [vmem:[#allocation7 + $0x338] sm:$0xff]
    %v1734 = vld [vmem:[#allocation7 + $0x340] sm:$0xff]
    %v1735 = vld [vmem:[#allocation7 + $0x348] sm:$0xff]
    %v1736 = vld [vmem:[#allocation7 + $0x350] sm:$0xff]
    %v1737 = vld [vmem:[#allocation7 + $0x358] sm:$0xff]
    %v1738 = vld [vmem:[#allocation7 + $0x360] sm:$0xff]
    %v1739 = vld [vmem:[#allocation7 + $0x368] sm:$0xff]
    %v1740 = vld [vmem:[#allocation7 + $0x370] sm:$0xff]
    %v1741 = vld [vmem:[#allocation7 + $0x378] sm:$0xff]
    %v1742 = vld [vmem:[#allocation7 + $0x380] sm:$0xff]
    %v1743 = vld [vmem:[#allocation7 + $0x388] sm:$0xff]
    %v1744 = vld [vmem:[#allocation7 + $0x390] sm:$0xff]
    %v1745 = vld [vmem:[#allocation7 + $0x398] sm:$0xff]
    %v1746 = vld [vmem:[#allocation7 + $0x3a0] sm:$0xff]
    %v1747 = vld [vmem:[#allocation7 + $0x3a8] sm:$0xff]
    %v1748 = vld [vmem:[#allocation7 + $0x3b0] sm:$0xff]
    %v1749 = vld [vmem:[#allocation7 + $0x3b8] sm:$0xff]
    %v1750 = vld [vmem:[#allocation7 + $0x3c0] sm:$0xff]
    %v1751 = vld [vmem:[#allocation7 + $0x3c8] sm:$0xff]
    %v1752 = vld [vmem:[#allocation7 + $0x3d0] sm:$0xff]
    %v1753 = vld [vmem:[#allocation7 + $0x3d8] sm:$0xff]
    %v1754 = vld [vmem:[#allocation7 + $0x3e0] sm:$0xff]
    %v1755 = vld [vmem:[#allocation7 + $0x3e8] sm:$0xff]
    %v1756 = vld [vmem:[#allocation7 + $0x3f0] sm:$0xff]
    %v1757 = vld [vmem:[#allocation7 + $0x3f8] sm:$0xff]
    %v1758 = vld [vmem:[#allocation7 + $0x400] sm:$0xff]
    %v1759 = vld [vmem:[#allocation7 + $0x408] sm:$0xff]
    %v1760 = vld [vmem:[#allocation7 + $0x410] sm:$0xff]
    %v1761 = vld [vmem:[#allocation7 + $0x418] sm:$0xff]
    %v1762 = vld [vmem:[#allocation7 + $0x420] sm:$0xff]
    %v1763 = vld [vmem:[#allocation7 + $0x428] sm:$0xff]
    %v1764 = vld [vmem:[#allocation7 + $0x430] sm:$0xff]
    %v1765 = vld [vmem:[#allocation7 + $0x438] sm:$0xff]
    %v1766 = vld [vmem:[#allocation7 + $0x440] sm:$0xff]
    %v1767 = vld [vmem:[#allocation7 + $0x448] sm:$0xff]
    %v1768 = vld [vmem:[#allocation7 + $0x450] sm:$0xff]
    %v1769 = vld [vmem:[#allocation7 + $0x458] sm:$0xff]
    %v1770 = vld [vmem:[#allocation7 + $0x460] sm:$0xff]
    %v1771 = vld [vmem:[#allocation7 + $0x468] sm:$0xff]
    %v1772 = vld [vmem:[#allocation7 + $0x470] sm:$0xff]
    %v1773 = vld [vmem:[#allocation7 + $0x478] sm:$0xff]
    %v1774 = vld [vmem:[#allocation7 + $0x480] sm:$0xff]
    %v1775 = vld [vmem:[#allocation7 + $0x488] sm:$0xff]
    %v1776 = vld [vmem:[#allocation7 + $0x490] sm:$0xff]
    %v1777 = vld [vmem:[#allocation7 + $0x498] sm:$0xff]
    %v1778 = vld [vmem:[#allocation7 + $0x4a0] sm:$0xff]
    %v1779 = vld [vmem:[#allocation7 + $0x4a8] sm:$0xff]
    %v1780 = vld [vmem:[#allocation7 + $0x4b0] sm:$0xff]
    %v1781 = vld [vmem:[#allocation7 + $0x4b8] sm:$0xff]
    %v1782 = vld [vmem:[#allocation7 + $0x4c0] sm:$0xff]
    %v1783 = vld [vmem:[#allocation7 + $0x4c8] sm:$0xff]
    %v1784 = vld [vmem:[#allocation7 + $0x4d0] sm:$0xff]
    %v1785 = vld [vmem:[#allocation7 + $0x4d8] sm:$0xff]
    %v1786 = vld [vmem:[#allocation7 + $0x4e0] sm:$0xff]
    %v1787 = vld [vmem:[#allocation7 + $0x4e8] sm:$0xff]
    %v1788 = vld [vmem:[#allocation7 + $0x4f0] sm:$0xff]
    %v1789 = vld [vmem:[#allocation7 + $0x4f8] sm:$0xff]
    %v1790 = vld [vmem:[#allocation7 + $0x500] sm:$0xff]
    %v1791 = vld [vmem:[#allocation7 + $0x508] sm:$0xff]
    %v1792 = vld [vmem:[#allocation7 + $0x510] sm:$0xff]
    %v1793 = vld [vmem:[#allocation7 + $0x518] sm:$0xff]
    %v1794 = vld [vmem:[#allocation7 + $0x520] sm:$0xff]
    %v1795 = vld [vmem:[#allocation7 + $0x528] sm:$0xff]
    %v1796 = vld [vmem:[#allocation7 + $0x530] sm:$0xff]
    %v1797 = vld [vmem:[#allocation7 + $0x538] sm:$0xff]
    %v1798 = vld [vmem:[#allocation7 + $0x540] sm:$0xff]
    %v1799 = vld [vmem:[#allocation7 + $0x548] sm:$0xff]
    %v1800 = vld [vmem:[#allocation7 + $0x550] sm:$0xff]
    %v1801 = vld [vmem:[#allocation7 + $0x558] sm:$0xff]
    %v1802 = vld [vmem:[#allocation7 + $0x560] sm:$0xff]
    %v1803 = vld [vmem:[#allocation7 + $0x568] sm:$0xff]
    %v1804 = vld [vmem:[#allocation7 + $0x570] sm:$0xff]
    %v1805 = vld [vmem:[#allocation7 + $0x578] sm:$0xff]
    %v1806 = vld [vmem:[#allocation7 + $0x580] sm:$0xff]
    %v1807 = vld [vmem:[#allocation7 + $0x588] sm:$0xff]
    %v1808 = vld [vmem:[#allocation7 + $0x590] sm:$0xff]
    %v1809 = vld [vmem:[#allocation7 + $0x598] sm:$0xff]
    %v1810 = vld [vmem:[#allocation7 + $0x5a0] sm:$0xff]
    %v1811 = vld [vmem:[#allocation7 + $0x5a8] sm:$0xff]
    %v1812 = vld [vmem:[#allocation7 + $0x5b0] sm:$0xff]
    %v1813 = vld [vmem:[#allocation7 + $0x5b8] sm:$0xff]
    %v1814 = vld [vmem:[#allocation7 + $0x5c0] sm:$0xff]
    %v1815 = vld [vmem:[#allocation7 + $0x5c8] sm:$0xff]
    %v1816 = vld [vmem:[#allocation7 + $0x5d0] sm:$0xff]
    %v1817 = vld [vmem:[#allocation7 + $0x5d8] sm:$0xff]
    %v1818 = vld [vmem:[#allocation7 + $0x5e0] sm:$0xff]
    %v1819 = vld [vmem:[#allocation7 + $0x5e8] sm:$0xff]
    %v1820 = vld [vmem:[#allocation7 + $0x5f0] sm:$0xff]
    %v1821 = vld [vmem:[#allocation7 + $0x5f8] sm:$0xff]
    %v1822 = vld [vmem:[#allocation7 + $0x600] sm:$0xff]
    %v1823 = vld [vmem:[#allocation7 + $0x608] sm:$0xff]
    %v1824 = vld [vmem:[#allocation7 + $0x610] sm:$0xff]
    %v1825 = vld [vmem:[#allocation7 + $0x618] sm:$0xff]
    %v1826 = vld [vmem:[#allocation7 + $0x620] sm:$0xff]
    %v1827 = vld [vmem:[#allocation7 + $0x628] sm:$0xff]
    %v1828 = vld [vmem:[#allocation7 + $0x630] sm:$0xff]
    %v1829 = vld [vmem:[#allocation7 + $0x638] sm:$0xff]
    %v1830 = vld [vmem:[#allocation7 + $0x640] sm:$0xff]
    %v1831 = vld [vmem:[#allocation7 + $0x648] sm:$0xff]
    %v1832 = vld [vmem:[#allocation7 + $0x650] sm:$0xff]
    %v1833 = vld [vmem:[#allocation7 + $0x658] sm:$0xff]
    %v1834 = vld [vmem:[#allocation7 + $0x660] sm:$0xff]
    %v1835 = vld [vmem:[#allocation7 + $0x668] sm:$0xff]
    %v1836 = vld [vmem:[#allocation7 + $0x670] sm:$0xff]
    %v1837 = vld [vmem:[#allocation7 + $0x678] sm:$0xff]
    %v1838 = vld [vmem:[#allocation7 + $0x680] sm:$0xff]
    %v1839 = vld [vmem:[#allocation7 + $0x688] sm:$0xff]
    %v1840 = vld [vmem:[#allocation7 + $0x690] sm:$0xff]
    %v1841 = vld [vmem:[#allocation7 + $0x698] sm:$0xff]
    %v1842 = vld [vmem:[#allocation7 + $0x6a0] sm:$0xff]
    %v1843 = vld [vmem:[#allocation7 + $0x6a8] sm:$0xff]
    %v1844 = vld [vmem:[#allocation7 + $0x6b0] sm:$0xff]
    %v1845 = vld [vmem:[#allocation7 + $0x6b8] sm:$0xff]
    %v1846 = vld [vmem:[#allocation7 + $0x6c0] sm:$0xff]
    %v1847 = vld [vmem:[#allocation7 + $0x6c8] sm:$0xff]
    %v1848 = vld [vmem:[#allocation7 + $0x6d0] sm:$0xff]
    %v1849 = vld [vmem:[#allocation7 + $0x6d8] sm:$0xff]
    %v1850 = vld [vmem:[#allocation7 + $0x6e0] sm:$0xff]
    %v1851 = vld [vmem:[#allocation7 + $0x6e8] sm:$0xff]
    %v1852 = vld [vmem:[#allocation7 + $0x6f0] sm:$0xff]
    %v1853 = vld [vmem:[#allocation7 + $0x6f8] sm:$0xff]
    %v1854 = vld [vmem:[#allocation7 + $0x700] sm:$0xff]
    %v1855 = vld [vmem:[#allocation7 + $0x708] sm:$0xff]
    %v1856 = vld [vmem:[#allocation7 + $0x710] sm:$0xff]
    %v1857 = vld [vmem:[#allocation7 + $0x718] sm:$0xff]
    %v1858 = vld [vmem:[#allocation7 + $0x720] sm:$0xff]
    %v1859 = vld [vmem:[#allocation7 + $0x728] sm:$0xff]
    %v1860 = vld [vmem:[#allocation7 + $0x730] sm:$0xff]
    %v1861 = vld [vmem:[#allocation7 + $0x738] sm:$0xff]
    %v1862 = vld [vmem:[#allocation7 + $0x740] sm:$0xff]
    %v1863 = vld [vmem:[#allocation7 + $0x748] sm:$0xff]
    %v1864 = vld [vmem:[#allocation7 + $0x750] sm:$0xff]
    %v1865 = vld [vmem:[#allocation7 + $0x758] sm:$0xff]
    %v1866 = vld [vmem:[#allocation7 + $0x760] sm:$0xff]
    %v1867 = vld [vmem:[#allocation7 + $0x768] sm:$0xff]
    %v1868 = vld [vmem:[#allocation7 + $0x770] sm:$0xff]
    %v1869 = vld [vmem:[#allocation7 + $0x778] sm:$0xff]
    %v1870 = vld [vmem:[#allocation7 + $0x780] sm:$0xff]
    %v1871 = vld [vmem:[#allocation7 + $0x788] sm:$0xff]
    %v1872 = vld [vmem:[#allocation7 + $0x790] sm:$0xff]
    %v1873 = vld [vmem:[#allocation7 + $0x798] sm:$0xff]
    %v1874 = vld [vmem:[#allocation7 + $0x7a0] sm:$0xff]
    %v1875 = vld [vmem:[#allocation7 + $0x7a8] sm:$0xff]
    %v1876 = vld [vmem:[#allocation7 + $0x7b0] sm:$0xff]
    %v1877 = vld [vmem:[#allocation7 + $0x7b8] sm:$0xff]
    %v1878 = vld [vmem:[#allocation7 + $0x7c0] sm:$0xff]
    %v1879 = vld [vmem:[#allocation7 + $0x7c8] sm:$0xff]
    %v1880 = vld [vmem:[#allocation7 + $0x7d0] sm:$0xff]
    %v1881 = vld [vmem:[#allocation7 + $0x7d8] sm:$0xff]
    %v1882 = vld [vmem:[#allocation7 + $0x7e0] sm:$0xff]
    %v1883 = vld [vmem:[#allocation7 + $0x7e8] sm:$0xff]
    %v1884 = vld [vmem:[#allocation7 + $0x7f0] sm:$0xff]
    %v1885 = vld [vmem:[#allocation7 + $0x7f8] sm:$0xff]
    %v1886 = vld [vmem:[%s12] sm:$0xff]
    %v1888 = vlaneseq
    %v1889 = vshrl.u32 %v1888, 7
    %v1890 = vsub.s32 0, %v1889
    %v1891 = vrot.slane %v1886, %v1890
    %v1892 = vlaneseq
    %v1893 = vshrl.u32 %v1892, 7
    %v1894 = vsub.s32 1, %v1893
    %v1895 = vrot.slane %v1886, %v1894
    %v1896 = vlaneseq
    %v1897 = vshrl.u32 %v1896, 7
    %v1898 = vsub.s32 2, %v1897
    %v1899 = vrot.slane %v1886, %v1898
    %v1900 = vlaneseq
    %v1901 = vshrl.u32 %v1900, 7
    %v1902 = vsub.s32 3, %v1901
    %v1903 = vrot.slane %v1886, %v1902
    %v1904 = vlaneseq
    %v1905 = vshrl.u32 %v1904, 7
    %v1906 = vsub.s32 4, %v1905
    %v1907 = vrot.slane %v1886, %v1906
    %v1908 = vlaneseq
    %v1909 = vshrl.u32 %v1908, 7
    %v1910 = vsub.s32 5, %v1909
    %v1911 = vrot.slane %v1886, %v1910
    %v1912 = vlaneseq
    %v1913 = vshrl.u32 %v1912, 7
    %v1914 = vsub.s32 6, %v1913
    %v1915 = vrot.slane %v1886, %v1914
    %v1916 = vlaneseq
    %v1917 = vshrl.u32 %v1916, 7
    %v1918 = vsub.s32 7, %v1917
    %v1919 = vrot.slane %v1886, %v1918
    %v2184 = vunpack.c.l.b16 %v1630
    %v2185 = vunpack.c.h.b16 %v1630
    %v2186 = vunpack.c.l.b16 %v1631
    %v2187 = vunpack.c.h.b16 %v1631
    %v2188 = vunpack.c.l.b16 %v1632
    %v2189 = vunpack.c.h.b16 %v1632
    %v2190 = vunpack.c.l.b16 %v1633
    %v2191 = vunpack.c.h.b16 %v1633
    %v2192 = vunpack.c.l.b16 %v1634
    %v2193 = vunpack.c.h.b16 %v1634
    %v2194 = vunpack.c.l.b16 %v1635
    %v2195 = vunpack.c.h.b16 %v1635
    %v2196 = vunpack.c.l.b16 %v1636
    %v2197 = vunpack.c.h.b16 %v1636
    %v2198 = vunpack.c.l.b16 %v1637
    %v2199 = vunpack.c.h.b16 %v1637
    %v2200 = vunpack.c.l.b16 %v1638
    %v2201 = vunpack.c.h.b16 %v1638
    %v2202 = vunpack.c.l.b16 %v1639
    %v2203 = vunpack.c.h.b16 %v1639
    %v2204 = vunpack.c.l.b16 %v1640
    %v2205 = vunpack.c.h.b16 %v1640
    %v2206 = vunpack.c.l.b16 %v1641
    %v2207 = vunpack.c.h.b16 %v1641
    %v2208 = vunpack.c.l.b16 %v1642
    %v2209 = vunpack.c.h.b16 %v1642
    %v2210 = vunpack.c.l.b16 %v1643
    %v2211 = vunpack.c.h.b16 %v1643
    %v2212 = vunpack.c.l.b16 %v1644
    %v2213 = vunpack.c.h.b16 %v1644
    %v2214 = vunpack.c.l.b16 %v1645
    %v2215 = vunpack.c.h.b16 %v1645
    %v2216 = vunpack.c.l.b16 %v1646
    %v2217 = vunpack.c.h.b16 %v1646
    %v2218 = vunpack.c.l.b16 %v1647
    %v2219 = vunpack.c.h.b16 %v1647
    %v2220 = vunpack.c.l.b16 %v1648
    %v2221 = vunpack.c.h.b16 %v1648
    %v2222 = vunpack.c.l.b16 %v1649
    %v2223 = vunpack.c.h.b16 %v1649
    %v2224 = vunpack.c.l.b16 %v1650
    %v2225 = vunpack.c.h.b16 %v1650
    %v2226 = vunpack.c.l.b16 %v1651
    %v2227 = vunpack.c.h.b16 %v1651
    %v2228 = vunpack.c.l.b16 %v1652
    %v2229 = vunpack.c.h.b16 %v1652
    %v2230 = vunpack.c.l.b16 %v1653
    %v2231 = vunpack.c.h.b16 %v1653
    %v2232 = vunpack.c.l.b16 %v1654
    %v2233 = vunpack.c.h.b16 %v1654
    %v2234 = vunpack.c.l.b16 %v1655
    %v2235 = vunpack.c.h.b16 %v1655
    %v2236 = vunpack.c.l.b16 %v1656
    %v2237 = vunpack.c.h.b16 %v1656
    %v2238 = vunpack.c.l.b16 %v1657
    %v2239 = vunpack.c.h.b16 %v1657
    %v2240 = vunpack.c.l.b16 %v1658
    %v2241 = vunpack.c.h.b16 %v1658
    %v2242 = vunpack.c.l.b16 %v1659
    %v2243 = vunpack.c.h.b16 %v1659
    %v2244 = vunpack.c.l.b16 %v1660
    %v2245 = vunpack.c.h.b16 %v1660
    %v2246 = vunpack.c.l.b16 %v1661
    %v2247 = vunpack.c.h.b16 %v1661
    %v2248 = vunpack.c.l.b16 %v1662
    %v2249 = vunpack.c.h.b16 %v1662
    %v2250 = vunpack.c.l.b16 %v1663
    %v2251 = vunpack.c.h.b16 %v1663
    %v2252 = vunpack.c.l.b16 %v1664
    %v2253 = vunpack.c.h.b16 %v1664
    %v2254 = vunpack.c.l.b16 %v1665
    %v2255 = vunpack.c.h.b16 %v1665
    %v2256 = vunpack.c.l.b16 %v1666
    %v2257 = vunpack.c.h.b16 %v1666
    %v2258 = vunpack.c.l.b16 %v1667
    %v2259 = vunpack.c.h.b16 %v1667
    %v2260 = vunpack.c.l.b16 %v1668
    %v2261 = vunpack.c.h.b16 %v1668
    %v2262 = vunpack.c.l.b16 %v1669
    %v2263 = vunpack.c.h.b16 %v1669
    %v2264 = vunpack.c.l.b16 %v1670
    %v2265 = vunpack.c.h.b16 %v1670
    %v2266 = vunpack.c.l.b16 %v1671
    %v2267 = vunpack.c.h.b16 %v1671
    %v2268 = vunpack.c.l.b16 %v1672
    %v2269 = vunpack.c.h.b16 %v1672
    %v2270 = vunpack.c.l.b16 %v1673
    %v2271 = vunpack.c.h.b16 %v1673
    %v2272 = vunpack.c.l.b16 %v1674
    %v2273 = vunpack.c.h.b16 %v1674
    %v2274 = vunpack.c.l.b16 %v1675
    %v2275 = vunpack.c.h.b16 %v1675
    %v2276 = vunpack.c.l.b16 %v1676
    %v2277 = vunpack.c.h.b16 %v1676
    %v2278 = vunpack.c.l.b16 %v1677
    %v2279 = vunpack.c.h.b16 %v1677
    %v2280 = vunpack.c.l.b16 %v1678
    %v2281 = vunpack.c.h.b16 %v1678
    %v2282 = vunpack.c.l.b16 %v1679
    %v2283 = vunpack.c.h.b16 %v1679
    %v2284 = vunpack.c.l.b16 %v1680
    %v2285 = vunpack.c.h.b16 %v1680
    %v2286 = vunpack.c.l.b16 %v1681
    %v2287 = vunpack.c.h.b16 %v1681
    %v2288 = vunpack.c.l.b16 %v1682
    %v2289 = vunpack.c.h.b16 %v1682
    %v2290 = vunpack.c.l.b16 %v1683
    %v2291 = vunpack.c.h.b16 %v1683
    %v2292 = vunpack.c.l.b16 %v1684
    %v2293 = vunpack.c.h.b16 %v1684
    %v2294 = vunpack.c.l.b16 %v1685
    %v2295 = vunpack.c.h.b16 %v1685
    %v2296 = vunpack.c.l.b16 %v1686
    %v2297 = vunpack.c.h.b16 %v1686
    %v2298 = vunpack.c.l.b16 %v1687
    %v2299 = vunpack.c.h.b16 %v1687
    %v2300 = vunpack.c.l.b16 %v1688
    %v2301 = vunpack.c.h.b16 %v1688
    %v2302 = vunpack.c.l.b16 %v1689
    %v2303 = vunpack.c.h.b16 %v1689
    %v2304 = vunpack.c.l.b16 %v1690
    %v2305 = vunpack.c.h.b16 %v1690
    %v2306 = vunpack.c.l.b16 %v1691
    %v2307 = vunpack.c.h.b16 %v1691
    %v2308 = vunpack.c.l.b16 %v1692
    %v2309 = vunpack.c.h.b16 %v1692
    %v2310 = vunpack.c.l.b16 %v1693
    %v2311 = vunpack.c.h.b16 %v1693
    %v2312 = vunpack.c.l.b16 %v1694
    %v2313 = vunpack.c.h.b16 %v1694
    %v2314 = vunpack.c.l.b16 %v1695
    %v2315 = vunpack.c.h.b16 %v1695
    %v2316 = vunpack.c.l.b16 %v1696
    %v2317 = vunpack.c.h.b16 %v1696
    %v2318 = vunpack.c.l.b16 %v1697
    %v2319 = vunpack.c.h.b16 %v1697
    %v2320 = vunpack.c.l.b16 %v1698
    %v2321 = vunpack.c.h.b16 %v1698
    %v2322 = vunpack.c.l.b16 %v1699
    %v2323 = vunpack.c.h.b16 %v1699
    %v2324 = vunpack.c.l.b16 %v1700
    %v2325 = vunpack.c.h.b16 %v1700
    %v2326 = vunpack.c.l.b16 %v1701
    %v2327 = vunpack.c.h.b16 %v1701
    %v2328 = vunpack.c.l.b16 %v1702
    %v2329 = vunpack.c.h.b16 %v1702
    %v2330 = vunpack.c.l.b16 %v1703
    %v2331 = vunpack.c.h.b16 %v1703
    %v2332 = vunpack.c.l.b16 %v1704
    %v2333 = vunpack.c.h.b16 %v1704
    %v2334 = vunpack.c.l.b16 %v1705
    %v2335 = vunpack.c.h.b16 %v1705
    %v2336 = vunpack.c.l.b16 %v1706
    %v2337 = vunpack.c.h.b16 %v1706
    %v2338 = vunpack.c.l.b16 %v1707
    %v2339 = vunpack.c.h.b16 %v1707
    %v2340 = vunpack.c.l.b16 %v1708
    %v2341 = vunpack.c.h.b16 %v1708
    %v2342 = vunpack.c.l.b16 %v1709
    %v2343 = vunpack.c.h.b16 %v1709
    %v2344 = vunpack.c.l.b16 %v1710
    %v2345 = vunpack.c.h.b16 %v1710
    %v2346 = vunpack.c.l.b16 %v1711
    %v2347 = vunpack.c.h.b16 %v1711
    %v2348 = vunpack.c.l.b16 %v1712
    %v2349 = vunpack.c.h.b16 %v1712
    %v2350 = vunpack.c.l.b16 %v1713
    %v2351 = vunpack.c.h.b16 %v1713
    %v2352 = vunpack.c.l.b16 %v1714
    %v2353 = vunpack.c.h.b16 %v1714
    %v2354 = vunpack.c.l.b16 %v1715
    %v2355 = vunpack.c.h.b16 %v1715
    %v2356 = vunpack.c.l.b16 %v1716
    %v2357 = vunpack.c.h.b16 %v1716
    %v2358 = vunpack.c.l.b16 %v1717
    %v2359 = vunpack.c.h.b16 %v1717
    %v2360 = vunpack.c.l.b16 %v1718
    %v2361 = vunpack.c.h.b16 %v1718
    %v2362 = vunpack.c.l.b16 %v1719
    %v2363 = vunpack.c.h.b16 %v1719
    %v2364 = vunpack.c.l.b16 %v1720
    %v2365 = vunpack.c.h.b16 %v1720
    %v2366 = vunpack.c.l.b16 %v1721
    %v2367 = vunpack.c.h.b16 %v1721
    %v2368 = vunpack.c.l.b16 %v1722
    %v2369 = vunpack.c.h.b16 %v1722
    %v2370 = vunpack.c.l.b16 %v1723
    %v2371 = vunpack.c.h.b16 %v1723
    %v2372 = vunpack.c.l.b16 %v1724
    %v2373 = vunpack.c.h.b16 %v1724
    %v2374 = vunpack.c.l.b16 %v1725
    %v2375 = vunpack.c.h.b16 %v1725
    %v2376 = vunpack.c.l.b16 %v1726
    %v2377 = vunpack.c.h.b16 %v1726
    %v2378 = vunpack.c.l.b16 %v1727
    %v2379 = vunpack.c.h.b16 %v1727
    %v2380 = vunpack.c.l.b16 %v1728
    %v2381 = vunpack.c.h.b16 %v1728
    %v2382 = vunpack.c.l.b16 %v1729
    %v2383 = vunpack.c.h.b16 %v1729
    %v2384 = vunpack.c.l.b16 %v1730
    %v2385 = vunpack.c.h.b16 %v1730
    %v2386 = vunpack.c.l.b16 %v1731
    %v2387 = vunpack.c.h.b16 %v1731
    %v2388 = vunpack.c.l.b16 %v1732
    %v2389 = vunpack.c.h.b16 %v1732
    %v2390 = vunpack.c.l.b16 %v1733
    %v2391 = vunpack.c.h.b16 %v1733
    %v2392 = vunpack.c.l.b16 %v1734
    %v2393 = vunpack.c.h.b16 %v1734
    %v2394 = vunpack.c.l.b16 %v1735
    %v2395 = vunpack.c.h.b16 %v1735
    %v2396 = vunpack.c.l.b16 %v1736
    %v2397 = vunpack.c.h.b16 %v1736
    %v2398 = vunpack.c.l.b16 %v1737
    %v2399 = vunpack.c.h.b16 %v1737
    %v2400 = vunpack.c.l.b16 %v1738
    %v2401 = vunpack.c.h.b16 %v1738
    %v2402 = vunpack.c.l.b16 %v1739
    %v2403 = vunpack.c.h.b16 %v1739
    %v2404 = vunpack.c.l.b16 %v1740
    %v2405 = vunpack.c.h.b16 %v1740
    %v2406 = vunpack.c.l.b16 %v1741
    %v2407 = vunpack.c.h.b16 %v1741
    %v2408 = vunpack.c.l.b16 %v1742
    %v2409 = vunpack.c.h.b16 %v1742
    %v2410 = vunpack.c.l.b16 %v1743
    %v2411 = vunpack.c.h.b16 %v1743
    %v2412 = vunpack.c.l.b16 %v1744
    %v2413 = vunpack.c.h.b16 %v1744
    %v2414 = vunpack.c.l.b16 %v1745
    %v2415 = vunpack.c.h.b16 %v1745
    %v2416 = vunpack.c.l.b16 %v1746
    %v2417 = vunpack.c.h.b16 %v1746
    %v2418 = vunpack.c.l.b16 %v1747
    %v2419 = vunpack.c.h.b16 %v1747
    %v2420 = vunpack.c.l.b16 %v1748
    %v2421 = vunpack.c.h.b16 %v1748
    %v2422 = vunpack.c.l.b16 %v1749
    %v2423 = vunpack.c.h.b16 %v1749
    %v2424 = vunpack.c.l.b16 %v1750
    %v2425 = vunpack.c.h.b16 %v1750
    %v2426 = vunpack.c.l.b16 %v1751
    %v2427 = vunpack.c.h.b16 %v1751
    %v2428 = vunpack.c.l.b16 %v1752
    %v2429 = vunpack.c.h.b16 %v1752
    %v2430 = vunpack.c.l.b16 %v1753
    %v2431 = vunpack.c.h.b16 %v1753
    %v2432 = vunpack.c.l.b16 %v1754
    %v2433 = vunpack.c.h.b16 %v1754
    %v2434 = vunpack.c.l.b16 %v1755
    %v2435 = vunpack.c.h.b16 %v1755
    %v2436 = vunpack.c.l.b16 %v1756
    %v2437 = vunpack.c.h.b16 %v1756
    %v2438 = vunpack.c.l.b16 %v1757
    %v2439 = vunpack.c.h.b16 %v1757
    %v2440 = vunpack.c.l.b16 %v1758
    %v2441 = vunpack.c.h.b16 %v1758
    %v2442 = vunpack.c.l.b16 %v1759
    %v2443 = vunpack.c.h.b16 %v1759
    %v2444 = vunpack.c.l.b16 %v1760
    %v2445 = vunpack.c.h.b16 %v1760
    %v2446 = vunpack.c.l.b16 %v1761
    %v2447 = vunpack.c.h.b16 %v1761
    %v2448 = vunpack.c.l.b16 %v1762
    %v2449 = vunpack.c.h.b16 %v1762
    %v2450 = vunpack.c.l.b16 %v1763
    %v2451 = vunpack.c.h.b16 %v1763
    %v2452 = vunpack.c.l.b16 %v1764
    %v2453 = vunpack.c.h.b16 %v1764
    %v2454 = vunpack.c.l.b16 %v1765
    %v2455 = vunpack.c.h.b16 %v1765
    %v2456 = vunpack.c.l.b16 %v1766
    %v2457 = vunpack.c.h.b16 %v1766
    %v2458 = vunpack.c.l.b16 %v1767
    %v2459 = vunpack.c.h.b16 %v1767
    %v2460 = vunpack.c.l.b16 %v1768
    %v2461 = vunpack.c.h.b16 %v1768
    %v2462 = vunpack.c.l.b16 %v1769
    %v2463 = vunpack.c.h.b16 %v1769
    %v2464 = vunpack.c.l.b16 %v1770
    %v2465 = vunpack.c.h.b16 %v1770
    %v2466 = vunpack.c.l.b16 %v1771
    %v2467 = vunpack.c.h.b16 %v1771
    %v2468 = vunpack.c.l.b16 %v1772
    %v2469 = vunpack.c.h.b16 %v1772
    %v2470 = vunpack.c.l.b16 %v1773
    %v2471 = vunpack.c.h.b16 %v1773
    %v2472 = vunpack.c.l.b16 %v1774
    %v2473 = vunpack.c.h.b16 %v1774
    %v2474 = vunpack.c.l.b16 %v1775
    %v2475 = vunpack.c.h.b16 %v1775
    %v2476 = vunpack.c.l.b16 %v1776
    %v2477 = vunpack.c.h.b16 %v1776
    %v2478 = vunpack.c.l.b16 %v1777
    %v2479 = vunpack.c.h.b16 %v1777
    %v2480 = vunpack.c.l.b16 %v1778
    %v2481 = vunpack.c.h.b16 %v1778
    %v2482 = vunpack.c.l.b16 %v1779
    %v2483 = vunpack.c.h.b16 %v1779
    %v2484 = vunpack.c.l.b16 %v1780
    %v2485 = vunpack.c.h.b16 %v1780
    %v2486 = vunpack.c.l.b16 %v1781
    %v2487 = vunpack.c.h.b16 %v1781
    %v2488 = vunpack.c.l.b16 %v1782
    %v2489 = vunpack.c.h.b16 %v1782
    %v2490 = vunpack.c.l.b16 %v1783
    %v2491 = vunpack.c.h.b16 %v1783
    %v2492 = vunpack.c.l.b16 %v1784
    %v2493 = vunpack.c.h.b16 %v1784
    %v2494 = vunpack.c.l.b16 %v1785
    %v2495 = vunpack.c.h.b16 %v1785
    %v2496 = vunpack.c.l.b16 %v1786
    %v2497 = vunpack.c.h.b16 %v1786
    %v2498 = vunpack.c.l.b16 %v1787
    %v2499 = vunpack.c.h.b16 %v1787
    %v2500 = vunpack.c.l.b16 %v1788
    %v2501 = vunpack.c.h.b16 %v1788
    %v2502 = vunpack.c.l.b16 %v1789
    %v2503 = vunpack.c.h.b16 %v1789
    %v2504 = vunpack.c.l.b16 %v1790
    %v2505 = vunpack.c.h.b16 %v1790
    %v2506 = vunpack.c.l.b16 %v1791
    %v2507 = vunpack.c.h.b16 %v1791
    %v2508 = vunpack.c.l.b16 %v1792
    %v2509 = vunpack.c.h.b16 %v1792
    %v2510 = vunpack.c.l.b16 %v1793
    %v2511 = vunpack.c.h.b16 %v1793
    %v2512 = vunpack.c.l.b16 %v1794
    %v2513 = vunpack.c.h.b16 %v1794
    %v2514 = vunpack.c.l.b16 %v1795
    %v2515 = vunpack.c.h.b16 %v1795
    %v2516 = vunpack.c.l.b16 %v1796
    %v2517 = vunpack.c.h.b16 %v1796
    %v2518 = vunpack.c.l.b16 %v1797
    %v2519 = vunpack.c.h.b16 %v1797
    %v2520 = vunpack.c.l.b16 %v1798
    %v2521 = vunpack.c.h.b16 %v1798
    %v2522 = vunpack.c.l.b16 %v1799
    %v2523 = vunpack.c.h.b16 %v1799
    %v2524 = vunpack.c.l.b16 %v1800
    %v2525 = vunpack.c.h.b16 %v1800
    %v2526 = vunpack.c.l.b16 %v1801
    %v2527 = vunpack.c.h.b16 %v1801
    %v2528 = vunpack.c.l.b16 %v1802
    %v2529 = vunpack.c.h.b16 %v1802
    %v2530 = vunpack.c.l.b16 %v1803
    %v2531 = vunpack.c.h.b16 %v1803
    %v2532 = vunpack.c.l.b16 %v1804
    %v2533 = vunpack.c.h.b16 %v1804
    %v2534 = vunpack.c.l.b16 %v1805
    %v2535 = vunpack.c.h.b16 %v1805
    %v2536 = vunpack.c.l.b16 %v1806
    %v2537 = vunpack.c.h.b16 %v1806
    %v2538 = vunpack.c.l.b16 %v1807
    %v2539 = vunpack.c.h.b16 %v1807
    %v2540 = vunpack.c.l.b16 %v1808
    %v2541 = vunpack.c.h.b16 %v1808
    %v2542 = vunpack.c.l.b16 %v1809
    %v2543 = vunpack.c.h.b16 %v1809
    %v2544 = vunpack.c.l.b16 %v1810
    %v2545 = vunpack.c.h.b16 %v1810
    %v2546 = vunpack.c.l.b16 %v1811
    %v2547 = vunpack.c.h.b16 %v1811
    %v2548 = vunpack.c.l.b16 %v1812
    %v2549 = vunpack.c.h.b16 %v1812
    %v2550 = vunpack.c.l.b16 %v1813
    %v2551 = vunpack.c.h.b16 %v1813
    %v2552 = vunpack.c.l.b16 %v1814
    %v2553 = vunpack.c.h.b16 %v1814
    %v2554 = vunpack.c.l.b16 %v1815
    %v2555 = vunpack.c.h.b16 %v1815
    %v2556 = vunpack.c.l.b16 %v1816
    %v2557 = vunpack.c.h.b16 %v1816
    %v2558 = vunpack.c.l.b16 %v1817
    %v2559 = vunpack.c.h.b16 %v1817
    %v2560 = vunpack.c.l.b16 %v1818
    %v2561 = vunpack.c.h.b16 %v1818
    %v2562 = vunpack.c.l.b16 %v1819
    %v2563 = vunpack.c.h.b16 %v1819
    %v2564 = vunpack.c.l.b16 %v1820
    %v2565 = vunpack.c.h.b16 %v1820
    %v2566 = vunpack.c.l.b16 %v1821
    %v2567 = vunpack.c.h.b16 %v1821
    %v2568 = vunpack.c.l.b16 %v1822
    %v2569 = vunpack.c.h.b16 %v1822
    %v2570 = vunpack.c.l.b16 %v1823
    %v2571 = vunpack.c.h.b16 %v1823
    %v2572 = vunpack.c.l.b16 %v1824
    %v2573 = vunpack.c.h.b16 %v1824
    %v2574 = vunpack.c.l.b16 %v1825
    %v2575 = vunpack.c.h.b16 %v1825
    %v2576 = vunpack.c.l.b16 %v1826
    %v2577 = vunpack.c.h.b16 %v1826
    %v2578 = vunpack.c.l.b16 %v1827
    %v2579 = vunpack.c.h.b16 %v1827
    %v2580 = vunpack.c.l.b16 %v1828
    %v2581 = vunpack.c.h.b16 %v1828
    %v2582 = vunpack.c.l.b16 %v1829
    %v2583 = vunpack.c.h.b16 %v1829
    %v2584 = vunpack.c.l.b16 %v1830
    %v2585 = vunpack.c.h.b16 %v1830
    %v2586 = vunpack.c.l.b16 %v1831
    %v2587 = vunpack.c.h.b16 %v1831
    %v2588 = vunpack.c.l.b16 %v1832
    %v2589 = vunpack.c.h.b16 %v1832
    %v2590 = vunpack.c.l.b16 %v1833
    %v2591 = vunpack.c.h.b16 %v1833
    %v2592 = vunpack.c.l.b16 %v1834
    %v2593 = vunpack.c.h.b16 %v1834
    %v2594 = vunpack.c.l.b16 %v1835
    %v2595 = vunpack.c.h.b16 %v1835
    %v2596 = vunpack.c.l.b16 %v1836
    %v2597 = vunpack.c.h.b16 %v1836
    %v2598 = vunpack.c.l.b16 %v1837
    %v2599 = vunpack.c.h.b16 %v1837
    %v2600 = vunpack.c.l.b16 %v1838
    %v2601 = vunpack.c.h.b16 %v1838
    %v2602 = vunpack.c.l.b16 %v1839
    %v2603 = vunpack.c.h.b16 %v1839
    %v2604 = vunpack.c.l.b16 %v1840
    %v2605 = vunpack.c.h.b16 %v1840
    %v2606 = vunpack.c.l.b16 %v1841
    %v2607 = vunpack.c.h.b16 %v1841
    %v2608 = vunpack.c.l.b16 %v1842
    %v2609 = vunpack.c.h.b16 %v1842
    %v2610 = vunpack.c.l.b16 %v1843
    %v2611 = vunpack.c.h.b16 %v1843
    %v2612 = vunpack.c.l.b16 %v1844
    %v2613 = vunpack.c.h.b16 %v1844
    %v2614 = vunpack.c.l.b16 %v1845
    %v2615 = vunpack.c.h.b16 %v1845
    %v2616 = vunpack.c.l.b16 %v1846
    %v2617 = vunpack.c.h.b16 %v1846
    %v2618 = vunpack.c.l.b16 %v1847
    %v2619 = vunpack.c.h.b16 %v1847
    %v2620 = vunpack.c.l.b16 %v1848
    %v2621 = vunpack.c.h.b16 %v1848
    %v2622 = vunpack.c.l.b16 %v1849
    %v2623 = vunpack.c.h.b16 %v1849
    %v2624 = vunpack.c.l.b16 %v1850
    %v2625 = vunpack.c.h.b16 %v1850
    %v2626 = vunpack.c.l.b16 %v1851
    %v2627 = vunpack.c.h.b16 %v1851
    %v2628 = vunpack.c.l.b16 %v1852
    %v2629 = vunpack.c.h.b16 %v1852
    %v2630 = vunpack.c.l.b16 %v1853
    %v2631 = vunpack.c.h.b16 %v1853
    %v2632 = vunpack.c.l.b16 %v1854
    %v2633 = vunpack.c.h.b16 %v1854
    %v2634 = vunpack.c.l.b16 %v1855
    %v2635 = vunpack.c.h.b16 %v1855
    %v2636 = vunpack.c.l.b16 %v1856
    %v2637 = vunpack.c.h.b16 %v1856
    %v2638 = vunpack.c.l.b16 %v1857
    %v2639 = vunpack.c.h.b16 %v1857
    %v2640 = vunpack.c.l.b16 %v1858
    %v2641 = vunpack.c.h.b16 %v1858
    %v2642 = vunpack.c.l.b16 %v1859
    %v2643 = vunpack.c.h.b16 %v1859
    %v2644 = vunpack.c.l.b16 %v1860
    %v2645 = vunpack.c.h.b16 %v1860
    %v2646 = vunpack.c.l.b16 %v1861
    %v2647 = vunpack.c.h.b16 %v1861
    %v2648 = vunpack.c.l.b16 %v1862
    %v2649 = vunpack.c.h.b16 %v1862
    %v2650 = vunpack.c.l.b16 %v1863
    %v2651 = vunpack.c.h.b16 %v1863
    %v2652 = vunpack.c.l.b16 %v1864
    %v2653 = vunpack.c.h.b16 %v1864
    %v2654 = vunpack.c.l.b16 %v1865
    %v2655 = vunpack.c.h.b16 %v1865
    %v2656 = vunpack.c.l.b16 %v1866
    %v2657 = vunpack.c.h.b16 %v1866
    %v2658 = vunpack.c.l.b16 %v1867
    %v2659 = vunpack.c.h.b16 %v1867
    %v2660 = vunpack.c.l.b16 %v1868
    %v2661 = vunpack.c.h.b16 %v1868
    %v2662 = vunpack.c.l.b16 %v1869
    %v2663 = vunpack.c.h.b16 %v1869
    %v2664 = vunpack.c.l.b16 %v1870
    %v2665 = vunpack.c.h.b16 %v1870
    %v2666 = vunpack.c.l.b16 %v1871
    %v2667 = vunpack.c.h.b16 %v1871
    %v2668 = vunpack.c.l.b16 %v1872
    %v2669 = vunpack.c.h.b16 %v1872
    %v2670 = vunpack.c.l.b16 %v1873
    %v2671 = vunpack.c.h.b16 %v1873
    %v2672 = vunpack.c.l.b16 %v1874
    %v2673 = vunpack.c.h.b16 %v1874
    %v2674 = vunpack.c.l.b16 %v1875
    %v2675 = vunpack.c.h.b16 %v1875
    %v2676 = vunpack.c.l.b16 %v1876
    %v2677 = vunpack.c.h.b16 %v1876
    %v2678 = vunpack.c.l.b16 %v1877
    %v2679 = vunpack.c.h.b16 %v1877
    %v2680 = vunpack.c.l.b16 %v1878
    %v2681 = vunpack.c.h.b16 %v1878
    %v2682 = vunpack.c.l.b16 %v1879
    %v2683 = vunpack.c.h.b16 %v1879
    %v2684 = vunpack.c.l.b16 %v1880
    %v2685 = vunpack.c.h.b16 %v1880
    %v2686 = vunpack.c.l.b16 %v1881
    %v2687 = vunpack.c.h.b16 %v1881
    %v2688 = vunpack.c.l.b16 %v1882
    %v2689 = vunpack.c.h.b16 %v1882
    %v2690 = vunpack.c.l.b16 %v1883
    %v2691 = vunpack.c.h.b16 %v1883
    %v2692 = vunpack.c.l.b16 %v1884
    %v2693 = vunpack.c.h.b16 %v1884
    %v2694 = vunpack.c.l.b16 %v1885
    %v2695 = vunpack.c.h.b16 %v1885
    %v2696 = vpack.c.b16 %v2192, %v2184
    %v2697 = vpack.c.b16 %v2193, %v2185
    %v2698 = vpack.c.b16 %v2194, %v2186
    %v2699 = vpack.c.b16 %v2195, %v2187
    %v2700 = vpack.c.b16 %v2196, %v2188
    %v2701 = vpack.c.b16 %v2197, %v2189
    %v2702 = vpack.c.b16 %v2198, %v2190
    %v2703 = vpack.c.b16 %v2199, %v2191
    %v2704 = vpack.c.b16 %v2208, %v2200
    %v2705 = vpack.c.b16 %v2209, %v2201
    %v2706 = vpack.c.b16 %v2210, %v2202
    %v2707 = vpack.c.b16 %v2211, %v2203
    %v2708 = vpack.c.b16 %v2212, %v2204
    %v2709 = vpack.c.b16 %v2213, %v2205
    %v2710 = vpack.c.b16 %v2214, %v2206
    %v2711 = vpack.c.b16 %v2215, %v2207
    %v2712 = vpack.c.b16 %v2224, %v2216
    %v2713 = vpack.c.b16 %v2225, %v2217
    %v2714 = vpack.c.b16 %v2226, %v2218
    %v2715 = vpack.c.b16 %v2227, %v2219
    %v2716 = vpack.c.b16 %v2228, %v2220
    %v2717 = vpack.c.b16 %v2229, %v2221
    %v2718 = vpack.c.b16 %v2230, %v2222
    %v2719 = vpack.c.b16 %v2231, %v2223
    %v2720 = vpack.c.b16 %v2240, %v2232
    %v2721 = vpack.c.b16 %v2241, %v2233
    %v2722 = vpack.c.b16 %v2242, %v2234
    %v2723 = vpack.c.b16 %v2243, %v2235
    %v2724 = vpack.c.b16 %v2244, %v2236
    %v2725 = vpack.c.b16 %v2245, %v2237
    %v2726 = vpack.c.b16 %v2246, %v2238
    %v2727 = vpack.c.b16 %v2247, %v2239
    %v2728 = vpack.c.b16 %v2256, %v2248
    %v2729 = vpack.c.b16 %v2257, %v2249
    %v2730 = vpack.c.b16 %v2258, %v2250
    %v2731 = vpack.c.b16 %v2259, %v2251
    %v2732 = vpack.c.b16 %v2260, %v2252
    %v2733 = vpack.c.b16 %v2261, %v2253
    %v2734 = vpack.c.b16 %v2262, %v2254
    %v2735 = vpack.c.b16 %v2263, %v2255
    %v2736 = vpack.c.b16 %v2272, %v2264
    %v2737 = vpack.c.b16 %v2273, %v2265
    %v2738 = vpack.c.b16 %v2274, %v2266
    %v2739 = vpack.c.b16 %v2275, %v2267
    %v2740 = vpack.c.b16 %v2276, %v2268
    %v2741 = vpack.c.b16 %v2277, %v2269
    %v2742 = vpack.c.b16 %v2278, %v2270
    %v2743 = vpack.c.b16 %v2279, %v2271
    %v2744 = vpack.c.b16 %v2288, %v2280
    %v2745 = vpack.c.b16 %v2289, %v2281
    %v2746 = vpack.c.b16 %v2290, %v2282
    %v2747 = vpack.c.b16 %v2291, %v2283
    %v2748 = vpack.c.b16 %v2292, %v2284
    %v2749 = vpack.c.b16 %v2293, %v2285
    %v2750 = vpack.c.b16 %v2294, %v2286
    %v2751 = vpack.c.b16 %v2295, %v2287
    %v2752 = vpack.c.b16 %v2304, %v2296
    %v2753 = vpack.c.b16 %v2305, %v2297
    %v2754 = vpack.c.b16 %v2306, %v2298
    %v2755 = vpack.c.b16 %v2307, %v2299
    %v2756 = vpack.c.b16 %v2308, %v2300
    %v2757 = vpack.c.b16 %v2309, %v2301
    %v2758 = vpack.c.b16 %v2310, %v2302
    %v2759 = vpack.c.b16 %v2311, %v2303
    %v2760 = vpack.c.b16 %v2320, %v2312
    %v2761 = vpack.c.b16 %v2321, %v2313
    %v2762 = vpack.c.b16 %v2322, %v2314
    %v2763 = vpack.c.b16 %v2323, %v2315
    %v2764 = vpack.c.b16 %v2324, %v2316
    %v2765 = vpack.c.b16 %v2325, %v2317
    %v2766 = vpack.c.b16 %v2326, %v2318
    %v2767 = vpack.c.b16 %v2327, %v2319
    %v2768 = vpack.c.b16 %v2336, %v2328
    %v2769 = vpack.c.b16 %v2337, %v2329
    %v2770 = vpack.c.b16 %v2338, %v2330
    %v2771 = vpack.c.b16 %v2339, %v2331
    %v2772 = vpack.c.b16 %v2340, %v2332
    %v2773 = vpack.c.b16 %v2341, %v2333
    %v2774 = vpack.c.b16 %v2342, %v2334
    %v2775 = vpack.c.b16 %v2343, %v2335
    %v2776 = vpack.c.b16 %v2352, %v2344
    %v2777 = vpack.c.b16 %v2353, %v2345
    %v2778 = vpack.c.b16 %v2354, %v2346
    %v2779 = vpack.c.b16 %v2355, %v2347
    %v2780 = vpack.c.b16 %v2356, %v2348
    %v2781 = vpack.c.b16 %v2357, %v2349
    %v2782 = vpack.c.b16 %v2358, %v2350
    %v2783 = vpack.c.b16 %v2359, %v2351
    %v2784 = vpack.c.b16 %v2368, %v2360
    %v2785 = vpack.c.b16 %v2369, %v2361
    %v2786 = vpack.c.b16 %v2370, %v2362
    %v2787 = vpack.c.b16 %v2371, %v2363
    %v2788 = vpack.c.b16 %v2372, %v2364
    %v2789 = vpack.c.b16 %v2373, %v2365
    %v2790 = vpack.c.b16 %v2374, %v2366
    %v2791 = vpack.c.b16 %v2375, %v2367
    %v2792 = vpack.c.b16 %v2384, %v2376
    %v2793 = vpack.c.b16 %v2385, %v2377
    %v2794 = vpack.c.b16 %v2386, %v2378
    %v2795 = vpack.c.b16 %v2387, %v2379
    %v2796 = vpack.c.b16 %v2388, %v2380
    %v2797 = vpack.c.b16 %v2389, %v2381
    %v2798 = vpack.c.b16 %v2390, %v2382
    %v2799 = vpack.c.b16 %v2391, %v2383
    %v2800 = vpack.c.b16 %v2400, %v2392
    %v2801 = vpack.c.b16 %v2401, %v2393
    %v2802 = vpack.c.b16 %v2402, %v2394
    %v2803 = vpack.c.b16 %v2403, %v2395
    %v2804 = vpack.c.b16 %v2404, %v2396
    %v2805 = vpack.c.b16 %v2405, %v2397
    %v2806 = vpack.c.b16 %v2406, %v2398
    %v2807 = vpack.c.b16 %v2407, %v2399
    %v2808 = vpack.c.b16 %v2416, %v2408
    %v2809 = vpack.c.b16 %v2417, %v2409
    %v2810 = vpack.c.b16 %v2418, %v2410
    %v2811 = vpack.c.b16 %v2419, %v2411
    %v2812 = vpack.c.b16 %v2420, %v2412
    %v2813 = vpack.c.b16 %v2421, %v2413
    %v2814 = vpack.c.b16 %v2422, %v2414
    %v2815 = vpack.c.b16 %v2423, %v2415
    %v2816 = vpack.c.b16 %v2432, %v2424
    %v2817 = vpack.c.b16 %v2433, %v2425
    %v2818 = vpack.c.b16 %v2434, %v2426
    %v2819 = vpack.c.b16 %v2435, %v2427
    %v2820 = vpack.c.b16 %v2436, %v2428
    %v2821 = vpack.c.b16 %v2437, %v2429
    %v2822 = vpack.c.b16 %v2438, %v2430
    %v2823 = vpack.c.b16 %v2439, %v2431
    %v2824 = vpack.c.b16 %v2448, %v2440
    %v2825 = vpack.c.b16 %v2449, %v2441
    %v2826 = vpack.c.b16 %v2450, %v2442
    %v2827 = vpack.c.b16 %v2451, %v2443
    %v2828 = vpack.c.b16 %v2452, %v2444
    %v2829 = vpack.c.b16 %v2453, %v2445
    %v2830 = vpack.c.b16 %v2454, %v2446
    %v2831 = vpack.c.b16 %v2455, %v2447
    %v2832 = vpack.c.b16 %v2464, %v2456
    %v2833 = vpack.c.b16 %v2465, %v2457
    %v2834 = vpack.c.b16 %v2466, %v2458
    %v2835 = vpack.c.b16 %v2467, %v2459
    %v2836 = vpack.c.b16 %v2468, %v2460
    %v2837 = vpack.c.b16 %v2469, %v2461
    %v2838 = vpack.c.b16 %v2470, %v2462
    %v2839 = vpack.c.b16 %v2471, %v2463
    %v2840 = vpack.c.b16 %v2480, %v2472
    %v2841 = vpack.c.b16 %v2481, %v2473
    %v2842 = vpack.c.b16 %v2482, %v2474
    %v2843 = vpack.c.b16 %v2483, %v2475
    %v2844 = vpack.c.b16 %v2484, %v2476
    %v2845 = vpack.c.b16 %v2485, %v2477
    %v2846 = vpack.c.b16 %v2486, %v2478
    %v2847 = vpack.c.b16 %v2487, %v2479
    %v2848 = vpack.c.b16 %v2496, %v2488
    %v2849 = vpack.c.b16 %v2497, %v2489
    %v2850 = vpack.c.b16 %v2498, %v2490
    %v2851 = vpack.c.b16 %v2499, %v2491
    %v2852 = vpack.c.b16 %v2500, %v2492
    %v2853 = vpack.c.b16 %v2501, %v2493
    %v2854 = vpack.c.b16 %v2502, %v2494
    %v2855 = vpack.c.b16 %v2503, %v2495
    %v2856 = vpack.c.b16 %v2512, %v2504
    %v2857 = vpack.c.b16 %v2513, %v2505
    %v2858 = vpack.c.b16 %v2514, %v2506
    %v2859 = vpack.c.b16 %v2515, %v2507
    %v2860 = vpack.c.b16 %v2516, %v2508
    %v2861 = vpack.c.b16 %v2517, %v2509
    %v2862 = vpack.c.b16 %v2518, %v2510
    %v2863 = vpack.c.b16 %v2519, %v2511
    %v2864 = vpack.c.b16 %v2528, %v2520
    %v2865 = vpack.c.b16 %v2529, %v2521
    %v2866 = vpack.c.b16 %v2530, %v2522
    %v2867 = vpack.c.b16 %v2531, %v2523
    %v2868 = vpack.c.b16 %v2532, %v2524
    %v2869 = vpack.c.b16 %v2533, %v2525
    %v2870 = vpack.c.b16 %v2534, %v2526
    %v2871 = vpack.c.b16 %v2535, %v2527
    %v2872 = vpack.c.b16 %v2544, %v2536
    %v2873 = vpack.c.b16 %v2545, %v2537
    %v2874 = vpack.c.b16 %v2546, %v2538
    %v2875 = vpack.c.b16 %v2547, %v2539
    %v2876 = vpack.c.b16 %v2548, %v2540
    %v2877 = vpack.c.b16 %v2549, %v2541
    %v2878 = vpack.c.b16 %v2550, %v2542
    %v2879 = vpack.c.b16 %v2551, %v2543
    %v2880 = vpack.c.b16 %v2560, %v2552
    %v2881 = vpack.c.b16 %v2561, %v2553
    %v2882 = vpack.c.b16 %v2562, %v2554
    %v2883 = vpack.c.b16 %v2563, %v2555
    %v2884 = vpack.c.b16 %v2564, %v2556
    %v2885 = vpack.c.b16 %v2565, %v2557
    %v2886 = vpack.c.b16 %v2566, %v2558
    %v2887 = vpack.c.b16 %v2567, %v2559
    %v2888 = vpack.c.b16 %v2576, %v2568
    %v2889 = vpack.c.b16 %v2577, %v2569
    %v2890 = vpack.c.b16 %v2578, %v2570
    %v2891 = vpack.c.b16 %v2579, %v2571
    %v2892 = vpack.c.b16 %v2580, %v2572
    %v2893 = vpack.c.b16 %v2581, %v2573
    %v2894 = vpack.c.b16 %v2582, %v2574
    %v2895 = vpack.c.b16 %v2583, %v2575
    %v2896 = vpack.c.b16 %v2592, %v2584
    %v2897 = vpack.c.b16 %v2593, %v2585
    %v2898 = vpack.c.b16 %v2594, %v2586
    %v2899 = vpack.c.b16 %v2595, %v2587
    %v2900 = vpack.c.b16 %v2596, %v2588
    %v2901 = vpack.c.b16 %v2597, %v2589
    %v2902 = vpack.c.b16 %v2598, %v2590
    %v2903 = vpack.c.b16 %v2599, %v2591
    %v2904 = vpack.c.b16 %v2608, %v2600
    %v2905 = vpack.c.b16 %v2609, %v2601
    %v2906 = vpack.c.b16 %v2610, %v2602
    %v2907 = vpack.c.b16 %v2611, %v2603
    %v2908 = vpack.c.b16 %v2612, %v2604
    %v2909 = vpack.c.b16 %v2613, %v2605
    %v2910 = vpack.c.b16 %v2614, %v2606
    %v2911 = vpack.c.b16 %v2615, %v2607
    %v2912 = vpack.c.b16 %v2624, %v2616
    %v2913 = vpack.c.b16 %v2625, %v2617
    %v2914 = vpack.c.b16 %v2626, %v2618
    %v2915 = vpack.c.b16 %v2627, %v2619
    %v2916 = vpack.c.b16 %v2628, %v2620
    %v2917 = vpack.c.b16 %v2629, %v2621
    %v2918 = vpack.c.b16 %v2630, %v2622
    %v2919 = vpack.c.b16 %v2631, %v2623
    %v2920 = vpack.c.b16 %v2640, %v2632
    %v2921 = vpack.c.b16 %v2641, %v2633
    %v2922 = vpack.c.b16 %v2642, %v2634
    %v2923 = vpack.c.b16 %v2643, %v2635
    %v2924 = vpack.c.b16 %v2644, %v2636
    %v2925 = vpack.c.b16 %v2645, %v2637
    %v2926 = vpack.c.b16 %v2646, %v2638
    %v2927 = vpack.c.b16 %v2647, %v2639
    %v2928 = vpack.c.b16 %v2656, %v2648
    %v2929 = vpack.c.b16 %v2657, %v2649
    %v2930 = vpack.c.b16 %v2658, %v2650
    %v2931 = vpack.c.b16 %v2659, %v2651
    %v2932 = vpack.c.b16 %v2660, %v2652
    %v2933 = vpack.c.b16 %v2661, %v2653
    %v2934 = vpack.c.b16 %v2662, %v2654
    %v2935 = vpack.c.b16 %v2663, %v2655
    %v2936 = vpack.c.b16 %v2672, %v2664
    %v2937 = vpack.c.b16 %v2673, %v2665
    %v2938 = vpack.c.b16 %v2674, %v2666
    %v2939 = vpack.c.b16 %v2675, %v2667
    %v2940 = vpack.c.b16 %v2676, %v2668
    %v2941 = vpack.c.b16 %v2677, %v2669
    %v2942 = vpack.c.b16 %v2678, %v2670
    %v2943 = vpack.c.b16 %v2679, %v2671
    %v2944 = vpack.c.b16 %v2688, %v2680
    %v2945 = vpack.c.b16 %v2689, %v2681
    %v2946 = vpack.c.b16 %v2690, %v2682
    %v2947 = vpack.c.b16 %v2691, %v2683
    %v2948 = vpack.c.b16 %v2692, %v2684
    %v2949 = vpack.c.b16 %v2693, %v2685
    %v2950 = vpack.c.b16 %v2694, %v2686
    %v2951 = vpack.c.b16 %v2695, %v2687
    %3208 = vmatprep.subr.bf16.mxu0 %v2753
    %3209 = vmatpush1.bf16.msra.mxu0 %v2752
    %3210 = vmatprep.subr.bf16.mxu0 %v2745
    %3211 = vmatpush1.bf16.msra.mxu0 %v2744
    %3212 = vmatprep.subr.bf16.mxu0 %v2737
    %3213 = vmatpush1.bf16.msra.mxu0 %v2736
    %3214 = vmatprep.subr.bf16.mxu0 %v2729
    %3215 = vmatpush1.bf16.msra.mxu0 %v2728
    %3216 = vmatprep.subr.bf16.mxu0 %v2721
    %3217 = vmatpush1.bf16.msra.mxu0 %v2720
    %3218 = vmatprep.subr.bf16.mxu0 %v2713
    %3219 = vmatpush1.bf16.msra.mxu0 %v2712
    %3220 = vmatprep.subr.bf16.mxu0 %v2705
    %3221 = vmatpush1.bf16.msra.mxu0 %v2704
    %3222 = vmatprep.subr.bf16.mxu0 %v2697
    %3223 = vmatpush1.bf16.msra.mxu0 %v2696
    %3224 = vmatprep.subr.bf16.mxu0 %v2817
    %3225 = vmatpush2.bf16.msra.mxu0 %v2816
    %3226 = vmatprep.subr.bf16.mxu0 %v2809
    %3227 = vmatpush2.bf16.msra.mxu0 %v2808
    %3228 = vmatprep.subr.bf16.mxu0 %v2801
    %3229 = vmatpush2.bf16.msra.mxu0 %v2800
    %3230 = vmatprep.subr.bf16.mxu0 %v2793
    %3231 = vmatpush2.bf16.msra.mxu0 %v2792
    %3232 = vmatprep.subr.bf16.mxu0 %v2785
    %3233 = vmatpush2.bf16.msra.mxu0 %v2784
    %3234 = vmatprep.subr.bf16.mxu0 %v2777
    %3235 = vmatpush2.bf16.msra.mxu0 %v2776
    %3236 = vmatprep.subr.bf16.mxu0 %v2769
    %3237 = vmatpush2.bf16.msra.mxu0 %v2768
    %3238 = vmatprep.subr.bf16.mxu0 %v2761
    %3239 = vmatpush2.bf16.msra.mxu0 %v2760
    %3240 = vmatprep.mubr.bf16.mxu0 %v1627
    %3241 = vmatmul.mubr.bf16.gmra.mxu0 %v1626
    %v3242 = vpop.f32.mrf.mxu0
    %v3243 = vadd.f32 %v1891, %v3242
    %v3244 = vpop.f32.mrf.mxu0
    %v3245 = vadd.f32 %v1895, %v3244
    %v3246 = vpop.f32.mrf.mxu0
    %v3247 = vpop.f32.mrf.mxu0
    %3248 = vdwg.mxu0
    %3249 = vmatprep.subr.bf16.mxu0 %v2881
    %3250 = vmatpush1.bf16.msra.mxu0 %v2880
    %3251 = vmatprep.subr.bf16.mxu0 %v2873
    %3252 = vmatpush1.bf16.msra.mxu0 %v2872
    %3253 = vmatprep.subr.bf16.mxu0 %v2865
    %3254 = vmatpush1.bf16.msra.mxu0 %v2864
    %3255 = vmatprep.subr.bf16.mxu0 %v2857
    %3256 = vmatpush1.bf16.msra.mxu0 %v2856
    %3257 = vmatprep.subr.bf16.mxu0 %v2849
    %3258 = vmatpush1.bf16.msra.mxu0 %v2848
    %3259 = vmatprep.subr.bf16.mxu0 %v2841
    %3260 = vmatpush1.bf16.msra.mxu0 %v2840
    %3261 = vmatprep.subr.bf16.mxu0 %v2833
    %3262 = vmatpush1.bf16.msra.mxu0 %v2832
    %3263 = vmatprep.subr.bf16.mxu0 %v2825
    %3264 = vmatpush1.bf16.msra.mxu0 %v2824
    %3265 = vmatprep.subr.bf16.mxu0 %v2945
    %3266 = vmatpush2.bf16.msra.mxu0 %v2944
    %3267 = vmatprep.subr.bf16.mxu0 %v2937
    %3268 = vmatpush2.bf16.msra.mxu0 %v2936
    %3269 = vmatprep.subr.bf16.mxu0 %v2929
    %3270 = vmatpush2.bf16.msra.mxu0 %v2928
    %3271 = vmatprep.subr.bf16.mxu0 %v2921
    %3272 = vmatpush2.bf16.msra.mxu0 %v2920
    %3273 = vmatprep.subr.bf16.mxu0 %v2913
    %3274 = vmatpush2.bf16.msra.mxu0 %v2912
    %3275 = vmatprep.subr.bf16.mxu0 %v2905
    %3276 = vmatpush2.bf16.msra.mxu0 %v2904
    %3277 = vmatprep.subr.bf16.mxu0 %v2897
    %3278 = vmatpush2.bf16.msra.mxu0 %v2896
    %3279 = vmatprep.subr.bf16.mxu0 %v2889
    %3280 = vmatpush2.bf16.msra.mxu0 %v2888
    %3281 = vmatprep.mubr.bf16.mxu0 %v1629
    %3282 = vmatmul.mubr.bf16.gmra.mxu0 %v1628
    %v3283 = vpop.f32.mrf.mxu0
    %v3284 = vadd.f32 %v3243, %v3283
    %v3285 = vpop.f32.mrf.mxu0
    %v3286 = vadd.f32 %v3245, %v3285
    %v3287 = vpop.f32.mrf.mxu0
    %v3288 = vpop.f32.mrf.mxu0
    %3289 = vdwg.mxu0
    %3290 = vmatprep.subr.bf16.mxu0 %v2755
    %3291 = vmatpush1.bf16.msra.mxu0 %v2754
    %3292 = vmatprep.subr.bf16.mxu0 %v2747
    %3293 = vmatpush1.bf16.msra.mxu0 %v2746
    %3294 = vmatprep.subr.bf16.mxu0 %v2739
    %3295 = vmatpush1.bf16.msra.mxu0 %v2738
    %3296 = vmatprep.subr.bf16.mxu0 %v2731
    %3297 = vmatpush1.bf16.msra.mxu0 %v2730
    %3298 = vmatprep.subr.bf16.mxu0 %v2723
    %3299 = vmatpush1.bf16.msra.mxu0 %v2722
    %3300 = vmatprep.subr.bf16.mxu0 %v2715
    %3301 = vmatpush1.bf16.msra.mxu0 %v2714
    %3302 = vmatprep.subr.bf16.mxu0 %v2707
    %3303 = vmatpush1.bf16.msra.mxu0 %v2706
    %3304 = vmatprep.subr.bf16.mxu0 %v2699
    %3305 = vmatpush1.bf16.msra.mxu0 %v2698
    %3306 = vmatprep.subr.bf16.mxu0 %v2819
    %3307 = vmatpush2.bf16.msra.mxu0 %v2818
    %3308 = vmatprep.subr.bf16.mxu0 %v2811
    %3309 = vmatpush2.bf16.msra.mxu0 %v2810
    %3310 = vmatprep.subr.bf16.mxu0 %v2803
    %3311 = vmatpush2.bf16.msra.mxu0 %v2802
    %3312 = vmatprep.subr.bf16.mxu0 %v2795
    %3313 = vmatpush2.bf16.msra.mxu0 %v2794
    %3314 = vmatprep.subr.bf16.mxu0 %v2787
    %3315 = vmatpush2.bf16.msra.mxu0 %v2786
    %3316 = vmatprep.subr.bf16.mxu0 %v2779
    %3317 = vmatpush2.bf16.msra.mxu0 %v2778
    %3318 = vmatprep.subr.bf16.mxu0 %v2771
    %3319 = vmatpush2.bf16.msra.mxu0 %v2770
    %3320 = vmatprep.subr.bf16.mxu0 %v2763
    %3321 = vmatpush2.bf16.msra.mxu0 %v2762
    %3322 = vmatprep.mubr.bf16.mxu0 %v1627
    %3323 = vmatmul.mubr.bf16.gmra.mxu0 %v1626
    %v3324 = vpop.f32.mrf.mxu0
    %v3325 = vadd.f32 %v1899, %v3324
    %v3326 = vpop.f32.mrf.mxu0
    %v3327 = vadd.f32 %v1903, %v3326
    %v3328 = vpop.f32.mrf.mxu0
    %v3329 = vpop.f32.mrf.mxu0
    %3330 = vdwg.mxu0
    %3331 = vmatprep.subr.bf16.mxu0 %v2883
    %3332 = vmatpush1.bf16.msra.mxu0 %v2882
    %3333 = vmatprep.subr.bf16.mxu0 %v2875
    %3334 = vmatpush1.bf16.msra.mxu0 %v2874
    %3335 = vmatprep.subr.bf16.mxu0 %v2867
    %3336 = vmatpush1.bf16.msra.mxu0 %v2866
    %3337 = vmatprep.subr.bf16.mxu0 %v2859
    %3338 = vmatpush1.bf16.msra.mxu0 %v2858
    %3339 = vmatprep.subr.bf16.mxu0 %v2851
    %3340 = vmatpush1.bf16.msra.mxu0 %v2850
    %3341 = vmatprep.subr.bf16.mxu0 %v2843
    %3342 = vmatpush1.bf16.msra.mxu0 %v2842
    %3343 = vmatprep.subr.bf16.mxu0 %v2835
    %3344 = vmatpush1.bf16.msra.mxu0 %v2834
    %3345 = vmatprep.subr.bf16.mxu0 %v2827
    %3346 = vmatpush1.bf16.msra.mxu0 %v2826
    %3347 = vmatprep.subr.bf16.mxu0 %v2947
    %3348 = vmatpush2.bf16.msra.mxu0 %v2946
    %3349 = vmatprep.subr.bf16.mxu0 %v2939
    %3350 = vmatpush2.bf16.msra.mxu0 %v2938
    %3351 = vmatprep.subr.bf16.mxu0 %v2931
    %3352 = vmatpush2.bf16.msra.mxu0 %v2930
    %3353 = vmatprep.subr.bf16.mxu0 %v2923
    %3354 = vmatpush2.bf16.msra.mxu0 %v2922
    %3355 = vmatprep.subr.bf16.mxu0 %v2915
    %3356 = vmatpush2.bf16.msra.mxu0 %v2914
    %3357 = vmatprep.subr.bf16.mxu0 %v2907
    %3358 = vmatpush2.bf16.msra.mxu0 %v2906
    %3359 = vmatprep.subr.bf16.mxu0 %v2899
    %3360 = vmatpush2.bf16.msra.mxu0 %v2898
    %3361 = vmatprep.subr.bf16.mxu0 %v2891
    %3362 = vmatpush2.bf16.msra.mxu0 %v2890
    %3363 = vmatprep.mubr.bf16.mxu0 %v1629
    %3364 = vmatmul.mubr.bf16.gmra.mxu0 %v1628
    %v3365 = vpop.f32.mrf.mxu0
    %v3366 = vadd.f32 %v3325, %v3365
    %v3367 = vpop.f32.mrf.mxu0
    %v3368 = vadd.f32 %v3327, %v3367
    %v3369 = vpop.f32.mrf.mxu0
    %v3370 = vpop.f32.mrf.mxu0
    %3371 = vdwg.mxu0
    %3372 = vmatprep.subr.bf16.mxu0 %v2757
    %3373 = vmatpush1.bf16.msra.mxu0 %v2756
    %3374 = vmatprep.subr.bf16.mxu0 %v2749
    %3375 = vmatpush1.bf16.msra.mxu0 %v2748
    %3376 = vmatprep.subr.bf16.mxu0 %v2741
    %3377 = vmatpush1.bf16.msra.mxu0 %v2740
    %3378 = vmatprep.subr.bf16.mxu0 %v2733
    %3379 = vmatpush1.bf16.msra.mxu0 %v2732
    %3380 = vmatprep.subr.bf16.mxu0 %v2725
    %3381 = vmatpush1.bf16.msra.mxu0 %v2724
    %3382 = vmatprep.subr.bf16.mxu0 %v2717
    %3383 = vmatpush1.bf16.msra.mxu0 %v2716
    %3384 = vmatprep.subr.bf16.mxu0 %v2709
    %3385 = vmatpush1.bf16.msra.mxu0 %v2708
    %3386 = vmatprep.subr.bf16.mxu0 %v2701
    %3387 = vmatpush1.bf16.msra.mxu0 %v2700
    %3388 = vmatprep.subr.bf16.mxu0 %v2821
    %3389 = vmatpush2.bf16.msra.mxu0 %v2820
    %3390 = vmatprep.subr.bf16.mxu0 %v2813
    %3391 = vmatpush2.bf16.msra.mxu0 %v2812
    %3392 = vmatprep.subr.bf16.mxu0 %v2805
    %3393 = vmatpush2.bf16.msra.mxu0 %v2804
    %3394 = vmatprep.subr.bf16.mxu0 %v2797
    %3395 = vmatpush2.bf16.msra.mxu0 %v2796
    %3396 = vmatprep.subr.bf16.mxu0 %v2789
    %3397 = vmatpush2.bf16.msra.mxu0 %v2788
    %3398 = vmatprep.subr.bf16.mxu0 %v2781
    %3399 = vmatpush2.bf16.msra.mxu0 %v2780
    %3400 = vmatprep.subr.bf16.mxu0 %v2773
    %3401 = vmatpush2.bf16.msra.mxu0 %v2772
    %3402 = vmatprep.subr.bf16.mxu0 %v2765
    %3403 = vmatpush2.bf16.msra.mxu0 %v2764
    %3404 = vmatprep.mubr.bf16.mxu0 %v1627
    %3405 = vmatmul.mubr.bf16.gmra.mxu0 %v1626
    %v3406 = vpop.f32.mrf.mxu0
    %v3407 = vadd.f32 %v1907, %v3406
    %v3408 = vpop.f32.mrf.mxu0
    %v3409 = vadd.f32 %v1911, %v3408
    %v3410 = vpop.f32.mrf.mxu0
    %v3411 = vpop.f32.mrf.mxu0
    %3412 = vdwg.mxu0
    %3413 = vmatprep.subr.bf16.mxu0 %v2885
    %3414 = vmatpush1.bf16.msra.mxu0 %v2884
    %3415 = vmatprep.subr.bf16.mxu0 %v2877
    %3416 = vmatpush1.bf16.msra.mxu0 %v2876
    %3417 = vmatprep.subr.bf16.mxu0 %v2869
    %3418 = vmatpush1.bf16.msra.mxu0 %v2868
    %3419 = vmatprep.subr.bf16.mxu0 %v2861
    %3420 = vmatpush1.bf16.msra.mxu0 %v2860
    %3421 = vmatprep.subr.bf16.mxu0 %v2853
    %3422 = vmatpush1.bf16.msra.mxu0 %v2852
    %3423 = vmatprep.subr.bf16.mxu0 %v2845
    %3424 = vmatpush1.bf16.msra.mxu0 %v2844
    %3425 = vmatprep.subr.bf16.mxu0 %v2837
    %3426 = vmatpush1.bf16.msra.mxu0 %v2836
    %3427 = vmatprep.subr.bf16.mxu0 %v2829
    %3428 = vmatpush1.bf16.msra.mxu0 %v2828
    %3429 = vmatprep.subr.bf16.mxu0 %v2949
    %3430 = vmatpush2.bf16.msra.mxu0 %v2948
    %3431 = vmatprep.subr.bf16.mxu0 %v2941
    %3432 = vmatpush2.bf16.msra.mxu0 %v2940
    %3433 = vmatprep.subr.bf16.mxu0 %v2933
    %3434 = vmatpush2.bf16.msra.mxu0 %v2932
    %3435 = vmatprep.subr.bf16.mxu0 %v2925
    %3436 = vmatpush2.bf16.msra.mxu0 %v2924
    %3437 = vmatprep.subr.bf16.mxu0 %v2917
    %3438 = vmatpush2.bf16.msra.mxu0 %v2916
    %3439 = vmatprep.subr.bf16.mxu0 %v2909
    %3440 = vmatpush2.bf16.msra.mxu0 %v2908
    %3441 = vmatprep.subr.bf16.mxu0 %v2901
    %3442 = vmatpush2.bf16.msra.mxu0 %v2900
    %3443 = vmatprep.subr.bf16.mxu0 %v2893
    %3444 = vmatpush2.bf16.msra.mxu0 %v2892
    %3445 = vmatprep.mubr.bf16.mxu0 %v1629
    %3446 = vmatmul.mubr.bf16.gmra.mxu0 %v1628
    %v3447 = vpop.f32.mrf.mxu0
    %v3448 = vadd.f32 %v3407, %v3447
    %v3449 = vpop.f32.mrf.mxu0
    %v3450 = vadd.f32 %v3409, %v3449
    %v3451 = vpop.f32.mrf.mxu0
    %v3452 = vpop.f32.mrf.mxu0
    %3453 = vdwg.mxu0
    %3454 = vmatprep.subr.bf16.mxu0 %v2759
    %3455 = vmatpush1.bf16.msra.mxu0 %v2758
    %3456 = vmatprep.subr.bf16.mxu0 %v2751
    %3457 = vmatpush1.bf16.msra.mxu0 %v2750
    %3458 = vmatprep.subr.bf16.mxu0 %v2743
    %3459 = vmatpush1.bf16.msra.mxu0 %v2742
    %3460 = vmatprep.subr.bf16.mxu0 %v2735
    %3461 = vmatpush1.bf16.msra.mxu0 %v2734
    %3462 = vmatprep.subr.bf16.mxu0 %v2727
    %3463 = vmatpush1.bf16.msra.mxu0 %v2726
    %3464 = vmatprep.subr.bf16.mxu0 %v2719
    %3465 = vmatpush1.bf16.msra.mxu0 %v2718
    %3466 = vmatprep.subr.bf16.mxu0 %v2711
    %3467 = vmatpush1.bf16.msra.mxu0 %v2710
    %3468 = vmatprep.subr.bf16.mxu0 %v2703
    %3469 = vmatpush1.bf16.msra.mxu0 %v2702
    %3470 = vmatprep.subr.bf16.mxu0 %v2823
    %3471 = vmatpush2.bf16.msra.mxu0 %v2822
    %3472 = vmatprep.subr.bf16.mxu0 %v2815
    %3473 = vmatpush2.bf16.msra.mxu0 %v2814
    %3474 = vmatprep.subr.bf16.mxu0 %v2807
    %3475 = vmatpush2.bf16.msra.mxu0 %v2806
    %3476 = vmatprep.subr.bf16.mxu0 %v2799
    %3477 = vmatpush2.bf16.msra.mxu0 %v2798
    %3478 = vmatprep.subr.bf16.mxu0 %v2791
    %3479 = vmatpush2.bf16.msra.mxu0 %v2790
    %3480 = vmatprep.subr.bf16.mxu0 %v2783
    %3481 = vmatpush2.bf16.msra.mxu0 %v2782
    %3482 = vmatprep.subr.bf16.mxu0 %v2775
    %3483 = vmatpush2.bf16.msra.mxu0 %v2774
    %3484 = vmatprep.subr.bf16.mxu0 %v2767
    %3485 = vmatpush2.bf16.msra.mxu0 %v2766
    %3486 = vmatprep.mubr.bf16.mxu0 %v1627
    %3487 = vmatmul.mubr.bf16.gmra.mxu0 %v1626
    %v3488 = vpop.f32.mrf.mxu0
    %v3489 = vadd.f32 %v1915, %v3488
    %v3490 = vpop.f32.mrf.mxu0
    %v3491 = vadd.f32 %v1919, %v3490
    %v3492 = vpop.f32.mrf.mxu0
    %v3493 = vpop.f32.mrf.mxu0
    %3494 = vdwg.mxu0
    %3495 = vmatprep.subr.bf16.mxu0 %v2887
    %3496 = vmatpush1.bf16.msra.mxu0 %v2886
    %3497 = vmatprep.subr.bf16.mxu0 %v2879
    %3498 = vmatpush1.bf16.msra.mxu0 %v2878
    %3499 = vmatprep.subr.bf16.mxu0 %v2871
    %3500 = vmatpush1.bf16.msra.mxu0 %v2870
    %3501 = vmatprep.subr.bf16.mxu0 %v2863
    %3502 = vmatpush1.bf16.msra.mxu0 %v2862
    %3503 = vmatprep.subr.bf16.mxu0 %v2855
    %3504 = vmatpush1.bf16.msra.mxu0 %v2854
    %3505 = vmatprep.subr.bf16.mxu0 %v2847
    %3506 = vmatpush1.bf16.msra.mxu0 %v2846
    %3507 = vmatprep.subr.bf16.mxu0 %v2839
    %3508 = vmatpush1.bf16.msra.mxu0 %v2838
    %3509 = vmatprep.subr.bf16.mxu0 %v2831
    %3510 = vmatpush1.bf16.msra.mxu0 %v2830
    %3511 = vmatprep.subr.bf16.mxu0 %v2951
    %3512 = vmatpush2.bf16.msra.mxu0 %v2950
    %3513 = vmatprep.subr.bf16.mxu0 %v2943
    %3514 = vmatpush2.bf16.msra.mxu0 %v2942
    %3515 = vmatprep.subr.bf16.mxu0 %v2935
    %3516 = vmatpush2.bf16.msra.mxu0 %v2934
    %3517 = vmatprep.subr.bf16.mxu0 %v2927
    %3518 = vmatpush2.bf16.msra.mxu0 %v2926
    %3519 = vmatprep.subr.bf16.mxu0 %v2919
    %3520 = vmatpush2.bf16.msra.mxu0 %v2918
    %3521 = vmatprep.subr.bf16.mxu0 %v2911
    %3522 = vmatpush2.bf16.msra.mxu0 %v2910
    %3523 = vmatprep.subr.bf16.mxu0 %v2903
    %3524 = vmatpush2.bf16.msra.mxu0 %v2902
    %3525 = vmatprep.subr.bf16.mxu0 %v2895
    %3526 = vmatpush2.bf16.msra.mxu0 %v2894
    %3527 = vmatprep.mubr.bf16.mxu0 %v1629
    %3528 = vmatmul.mubr.bf16.gmra.mxu0 %v1628
    %v3529 = vpop.f32.mrf.mxu0
    %v3530 = vadd.f32 %v3489, %v3529
    %v3531 = vpop.f32.mrf.mxu0
    %v3532 = vadd.f32 %v3491, %v3531
    %v3533 = vpop.f32.mrf.mxu0
    %v3534 = vpop.f32.mrf.mxu0
    %3535 = vdwg.mxu0
    %v3536 = vmax.f32 %v3284, 0.0
    %v3537 = vmax.f32 %v3286, 0.0
    %v3538 = vmax.f32 %v3366, 0.0
    %v3539 = vmax.f32 %v3368, 0.0
    %v3540 = vmax.f32 %v3448, 0.0
    %v3541 = vmax.f32 %v3450, 0.0
    %v3542 = vmax.f32 %v3530, 0.0
    %v3543 = vmax.f32 %v3532, 0.0
    %v3544 = vpack.c.bf16 %v3536, %v3536
    %v3545 = vpack.c.bf16 %v3537, %v3537
    %v3546 = vpack.c.bf16 %v3538, %v3538
    %v3547 = vpack.c.bf16 %v3539, %v3539
    %v3548 = vpack.c.bf16 %v3540, %v3540
    %v3549 = vpack.c.bf16 %v3541, %v3541
    %v3550 = vpack.c.bf16 %v3542, %v3542
    %v3551 = vpack.c.bf16 %v3543, %v3543
    %v3552 = vld [vmem:[#allocation9] sm:$0xf]
    %v3553 = vld [vmem:[#allocation9 + $0x4] sm:$0xf]
    %v3554 = vld [vmem:[#allocation9 + $0x8] sm:$0xf]
    %v3555 = vld [vmem:[#allocation9 + $0xc] sm:$0xf]
    %v3556 = vld [vmem:[#allocation9 + $0x10] sm:$0xf]
    %v3557 = vld [vmem:[#allocation9 + $0x14] sm:$0xf]
    %v3558 = vld [vmem:[#allocation9 + $0x18] sm:$0xf]
    %v3559 = vld [vmem:[#allocation9 + $0x1c] sm:$0xf]
    %v3560 = vld [vmem:[#allocation9 + $0x20] sm:$0xf]
    %v3561 = vld [vmem:[#allocation9 + $0x24] sm:$0xf]
    %v3562 = vld [vmem:[#allocation9 + $0x28] sm:$0xf]
    %v3563 = vld [vmem:[#allocation9 + $0x2c] sm:$0xf]
    %v3564 = vld [vmem:[#allocation9 + $0x30] sm:$0xf]
    %v3565 = vld [vmem:[#allocation9 + $0x34] sm:$0xf]
    %v3566 = vld [vmem:[#allocation9 + $0x38] sm:$0xf]
    %v3567 = vld [vmem:[#allocation9 + $0x3c] sm:$0xf]
    %v3568 = vld [vmem:[#allocation9 + $0x40] sm:$0xf]
    %v3569 = vld [vmem:[#allocation9 + $0x44] sm:$0xf]
    %v3570 = vld [vmem:[#allocation9 + $0x48] sm:$0xf]
    %v3571 = vld [vmem:[#allocation9 + $0x4c] sm:$0xf]
    %v3572 = vld [vmem:[#allocation9 + $0x50] sm:$0xf]
    %v3573 = vld [vmem:[#allocation9 + $0x54] sm:$0xf]
    %v3574 = vld [vmem:[#allocation9 + $0x58] sm:$0xf]
    %v3575 = vld [vmem:[#allocation9 + $0x5c] sm:$0xf]
    %v3576 = vld [vmem:[#allocation9 + $0x60] sm:$0xf]
    %v3577 = vld [vmem:[#allocation9 + $0x64] sm:$0xf]
    %v3578 = vld [vmem:[#allocation9 + $0x68] sm:$0xf]
    %v3579 = vld [vmem:[#allocation9 + $0x6c] sm:$0xf]
    %v3580 = vld [vmem:[#allocation9 + $0x70] sm:$0xf]
    %v3581 = vld [vmem:[#allocation9 + $0x74] sm:$0xf]
    %v3582 = vld [vmem:[#allocation9 + $0x78] sm:$0xf]
    %v3583 = vld [vmem:[#allocation9 + $0x7c] sm:$0xf]
    %v3584 = vld [vmem:[#allocation9 + $0x80] sm:$0xf]
    %v3585 = vld [vmem:[#allocation9 + $0x84] sm:$0xf]
    %v3586 = vld [vmem:[#allocation9 + $0x88] sm:$0xf]
    %v3587 = vld [vmem:[#allocation9 + $0x8c] sm:$0xf]
    %v3588 = vld [vmem:[#allocation9 + $0x90] sm:$0xf]
    %v3589 = vld [vmem:[#allocation9 + $0x94] sm:$0xf]
    %v3590 = vld [vmem:[#allocation9 + $0x98] sm:$0xf]
    %v3591 = vld [vmem:[#allocation9 + $0x9c] sm:$0xf]
    %v3592 = vld [vmem:[#allocation9 + $0xa0] sm:$0xf]
    %v3593 = vld [vmem:[#allocation9 + $0xa4] sm:$0xf]
    %v3594 = vld [vmem:[#allocation9 + $0xa8] sm:$0xf]
    %v3595 = vld [vmem:[#allocation9 + $0xac] sm:$0xf]
    %v3596 = vld [vmem:[#allocation9 + $0xb0] sm:$0xf]
    %v3597 = vld [vmem:[#allocation9 + $0xb4] sm:$0xf]
    %v3598 = vld [vmem:[#allocation9 + $0xb8] sm:$0xf]
    %v3599 = vld [vmem:[#allocation9 + $0xbc] sm:$0xf]
    %v3600 = vld [vmem:[#allocation9 + $0xc0] sm:$0xf]
    %v3601 = vld [vmem:[#allocation9 + $0xc4] sm:$0xf]
    %v3602 = vld [vmem:[#allocation9 + $0xc8] sm:$0xf]
    %v3603 = vld [vmem:[#allocation9 + $0xcc] sm:$0xf]
    %v3604 = vld [vmem:[#allocation9 + $0xd0] sm:$0xf]
    %v3605 = vld [vmem:[#allocation9 + $0xd4] sm:$0xf]
    %v3606 = vld [vmem:[#allocation9 + $0xd8] sm:$0xf]
    %v3607 = vld [vmem:[#allocation9 + $0xdc] sm:$0xf]
    %v3608 = vld [vmem:[#allocation9 + $0xe0] sm:$0xf]
    %v3609 = vld [vmem:[#allocation9 + $0xe4] sm:$0xf]
    %v3610 = vld [vmem:[#allocation9 + $0xe8] sm:$0xf]
    %v3611 = vld [vmem:[#allocation9 + $0xec] sm:$0xf]
    %v3612 = vld [vmem:[#allocation9 + $0xf0] sm:$0xf]
    %v3613 = vld [vmem:[#allocation9 + $0xf4] sm:$0xf]
    %v3614 = vld [vmem:[#allocation9 + $0xf8] sm:$0xf]
    %v3615 = vld [vmem:[#allocation9 + $0xfc] sm:$0xf]
    %v3616 = vld [vmem:[#allocation9 + $0x100] sm:$0xf]
    %v3617 = vld [vmem:[#allocation9 + $0x104] sm:$0xf]
    %v3618 = vld [vmem:[#allocation9 + $0x108] sm:$0xf]
    %v3619 = vld [vmem:[#allocation9 + $0x10c] sm:$0xf]
    %v3620 = vld [vmem:[#allocation9 + $0x110] sm:$0xf]
    %v3621 = vld [vmem:[#allocation9 + $0x114] sm:$0xf]
    %v3622 = vld [vmem:[#allocation9 + $0x118] sm:$0xf]
    %v3623 = vld [vmem:[#allocation9 + $0x11c] sm:$0xf]
    %v3624 = vld [vmem:[#allocation9 + $0x120] sm:$0xf]
    %v3625 = vld [vmem:[#allocation9 + $0x124] sm:$0xf]
    %v3626 = vld [vmem:[#allocation9 + $0x128] sm:$0xf]
    %v3627 = vld [vmem:[#allocation9 + $0x12c] sm:$0xf]
    %v3628 = vld [vmem:[#allocation9 + $0x130] sm:$0xf]
    %v3629 = vld [vmem:[#allocation9 + $0x134] sm:$0xf]
    %v3630 = vld [vmem:[#allocation9 + $0x138] sm:$0xf]
    %v3631 = vld [vmem:[#allocation9 + $0x13c] sm:$0xf]
    %v3632 = vld [vmem:[#allocation9 + $0x140] sm:$0xf]
    %v3633 = vld [vmem:[#allocation9 + $0x144] sm:$0xf]
    %v3634 = vld [vmem:[#allocation9 + $0x148] sm:$0xf]
    %v3635 = vld [vmem:[#allocation9 + $0x14c] sm:$0xf]
    %v3636 = vld [vmem:[#allocation9 + $0x150] sm:$0xf]
    %v3637 = vld [vmem:[#allocation9 + $0x154] sm:$0xf]
    %v3638 = vld [vmem:[#allocation9 + $0x158] sm:$0xf]
    %v3639 = vld [vmem:[#allocation9 + $0x15c] sm:$0xf]
    %v3640 = vld [vmem:[#allocation9 + $0x160] sm:$0xf]
    %v3641 = vld [vmem:[#allocation9 + $0x164] sm:$0xf]
    %v3642 = vld [vmem:[#allocation9 + $0x168] sm:$0xf]
    %v3643 = vld [vmem:[#allocation9 + $0x16c] sm:$0xf]
    %v3644 = vld [vmem:[#allocation9 + $0x170] sm:$0xf]
    %v3645 = vld [vmem:[#allocation9 + $0x174] sm:$0xf]
    %v3646 = vld [vmem:[#allocation9 + $0x178] sm:$0xf]
    %v3647 = vld [vmem:[#allocation9 + $0x17c] sm:$0xf]
    %v3648 = vld [vmem:[#allocation9 + $0x180] sm:$0xf]
    %v3649 = vld [vmem:[#allocation9 + $0x184] sm:$0xf]
    %v3650 = vld [vmem:[#allocation9 + $0x188] sm:$0xf]
    %v3651 = vld [vmem:[#allocation9 + $0x18c] sm:$0xf]
    %v3652 = vld [vmem:[#allocation9 + $0x190] sm:$0xf]
    %v3653 = vld [vmem:[#allocation9 + $0x194] sm:$0xf]
    %v3654 = vld [vmem:[#allocation9 + $0x198] sm:$0xf]
    %v3655 = vld [vmem:[#allocation9 + $0x19c] sm:$0xf]
    %v3656 = vld [vmem:[#allocation9 + $0x1a0] sm:$0xf]
    %v3657 = vld [vmem:[#allocation9 + $0x1a4] sm:$0xf]
    %v3658 = vld [vmem:[#allocation9 + $0x1a8] sm:$0xf]
    %v3659 = vld [vmem:[#allocation9 + $0x1ac] sm:$0xf]
    %v3660 = vld [vmem:[#allocation9 + $0x1b0] sm:$0xf]
    %v3661 = vld [vmem:[#allocation9 + $0x1b4] sm:$0xf]
    %v3662 = vld [vmem:[#allocation9 + $0x1b8] sm:$0xf]
    %v3663 = vld [vmem:[#allocation9 + $0x1bc] sm:$0xf]
    %v3664 = vld [vmem:[#allocation9 + $0x1c0] sm:$0xf]
    %v3665 = vld [vmem:[#allocation9 + $0x1c4] sm:$0xf]
    %v3666 = vld [vmem:[#allocation9 + $0x1c8] sm:$0xf]
    %v3667 = vld [vmem:[#allocation9 + $0x1cc] sm:$0xf]
    %v3668 = vld [vmem:[#allocation9 + $0x1d0] sm:$0xf]
    %v3669 = vld [vmem:[#allocation9 + $0x1d4] sm:$0xf]
    %v3670 = vld [vmem:[#allocation9 + $0x1d8] sm:$0xf]
    %v3671 = vld [vmem:[#allocation9 + $0x1dc] sm:$0xf]
    %v3672 = vld [vmem:[#allocation9 + $0x1e0] sm:$0xf]
    %v3673 = vld [vmem:[#allocation9 + $0x1e4] sm:$0xf]
    %v3674 = vld [vmem:[#allocation9 + $0x1e8] sm:$0xf]
    %v3675 = vld [vmem:[#allocation9 + $0x1ec] sm:$0xf]
    %v3676 = vld [vmem:[#allocation9 + $0x1f0] sm:$0xf]
    %v3677 = vld [vmem:[#allocation9 + $0x1f4] sm:$0xf]
    %v3678 = vld [vmem:[#allocation9 + $0x1f8] sm:$0xf]
    %v3679 = vld [vmem:[#allocation9 + $0x1fc] sm:$0xf]
    %v3680 = vld [vmem:[%s14] sm:$0x1]
    %v3682 = vlaneseq
    %v3683 = vshrl.u32 %v3682, 7
    %v3684 = vsub.s32 0, %v3683
    %v3685 = vrot.slane %v3680, %v3684
    %v3815 = vunpack.c.l.b16 %v3552
    %v3816 = vunpack.c.l.b16 %v3553
    %v3817 = vunpack.c.l.b16 %v3554
    %v3818 = vunpack.c.l.b16 %v3555
    %v3819 = vunpack.c.l.b16 %v3556
    %v3820 = vunpack.c.l.b16 %v3557
    %v3821 = vunpack.c.l.b16 %v3558
    %v3822 = vunpack.c.l.b16 %v3559
    %v3823 = vunpack.c.l.b16 %v3560
    %v3824 = vunpack.c.l.b16 %v3561
    %v3825 = vunpack.c.l.b16 %v3562
    %v3826 = vunpack.c.l.b16 %v3563
    %v3827 = vunpack.c.l.b16 %v3564
    %v3828 = vunpack.c.l.b16 %v3565
    %v3829 = vunpack.c.l.b16 %v3566
    %v3830 = vunpack.c.l.b16 %v3567
    %v3831 = vunpack.c.l.b16 %v3568
    %v3832 = vunpack.c.l.b16 %v3569
    %v3833 = vunpack.c.l.b16 %v3570
    %v3834 = vunpack.c.l.b16 %v3571
    %v3835 = vunpack.c.l.b16 %v3572
    %v3836 = vunpack.c.l.b16 %v3573
    %v3837 = vunpack.c.l.b16 %v3574
    %v3838 = vunpack.c.l.b16 %v3575
    %v3839 = vunpack.c.l.b16 %v3576
    %v3840 = vunpack.c.l.b16 %v3577
    %v3841 = vunpack.c.l.b16 %v3578
    %v3842 = vunpack.c.l.b16 %v3579
    %v3843 = vunpack.c.l.b16 %v3580
    %v3844 = vunpack.c.l.b16 %v3581
    %v3845 = vunpack.c.l.b16 %v3582
    %v3846 = vunpack.c.l.b16 %v3583
    %v3847 = vunpack.c.l.b16 %v3584
    %v3848 = vunpack.c.l.b16 %v3585
    %v3849 = vunpack.c.l.b16 %v3586
    %v3850 = vunpack.c.l.b16 %v3587
    %v3851 = vunpack.c.l.b16 %v3588
    %v3852 = vunpack.c.l.b16 %v3589
    %v3853 = vunpack.c.l.b16 %v3590
    %v3854 = vunpack.c.l.b16 %v3591
    %v3855 = vunpack.c.l.b16 %v3592
    %v3856 = vunpack.c.l.b16 %v3593
    %v3857 = vunpack.c.l.b16 %v3594
    %v3858 = vunpack.c.l.b16 %v3595
    %v3859 = vunpack.c.l.b16 %v3596
    %v3860 = vunpack.c.l.b16 %v3597
    %v3861 = vunpack.c.l.b16 %v3598
    %v3862 = vunpack.c.l.b16 %v3599
    %v3863 = vunpack.c.l.b16 %v3600
    %v3864 = vunpack.c.l.b16 %v3601
    %v3865 = vunpack.c.l.b16 %v3602
    %v3866 = vunpack.c.l.b16 %v3603
    %v3867 = vunpack.c.l.b16 %v3604
    %v3868 = vunpack.c.l.b16 %v3605
    %v3869 = vunpack.c.l.b16 %v3606
    %v3870 = vunpack.c.l.b16 %v3607
    %v3871 = vunpack.c.l.b16 %v3608
    %v3872 = vunpack.c.l.b16 %v3609
    %v3873 = vunpack.c.l.b16 %v3610
    %v3874 = vunpack.c.l.b16 %v3611
    %v3875 = vunpack.c.l.b16 %v3612
    %v3876 = vunpack.c.l.b16 %v3613
    %v3877 = vunpack.c.l.b16 %v3614
    %v3878 = vunpack.c.l.b16 %v3615
    %v3879 = vunpack.c.l.b16 %v3616
    %v3880 = vunpack.c.l.b16 %v3617
    %v3881 = vunpack.c.l.b16 %v3618
    %v3882 = vunpack.c.l.b16 %v3619
    %v3883 = vunpack.c.l.b16 %v3620
    %v3884 = vunpack.c.l.b16 %v3621
    %v3885 = vunpack.c.l.b16 %v3622
    %v3886 = vunpack.c.l.b16 %v3623
    %v3887 = vunpack.c.l.b16 %v3624
    %v3888 = vunpack.c.l.b16 %v3625
    %v3889 = vunpack.c.l.b16 %v3626
    %v3890 = vunpack.c.l.b16 %v3627
    %v3891 = vunpack.c.l.b16 %v3628
    %v3892 = vunpack.c.l.b16 %v3629
    %v3893 = vunpack.c.l.b16 %v3630
    %v3894 = vunpack.c.l.b16 %v3631
    %v3895 = vunpack.c.l.b16 %v3632
    %v3896 = vunpack.c.l.b16 %v3633
    %v3897 = vunpack.c.l.b16 %v3634
    %v3898 = vunpack.c.l.b16 %v3635
    %v3899 = vunpack.c.l.b16 %v3636
    %v3900 = vunpack.c.l.b16 %v3637
    %v3901 = vunpack.c.l.b16 %v3638
    %v3902 = vunpack.c.l.b16 %v3639
    %v3903 = vunpack.c.l.b16 %v3640
    %v3904 = vunpack.c.l.b16 %v3641
    %v3905 = vunpack.c.l.b16 %v3642
    %v3906 = vunpack.c.l.b16 %v3643
    %v3907 = vunpack.c.l.b16 %v3644
    %v3908 = vunpack.c.l.b16 %v3645
    %v3909 = vunpack.c.l.b16 %v3646
    %v3910 = vunpack.c.l.b16 %v3647
    %v3911 = vunpack.c.l.b16 %v3648
    %v3912 = vunpack.c.l.b16 %v3649
    %v3913 = vunpack.c.l.b16 %v3650
    %v3914 = vunpack.c.l.b16 %v3651
    %v3915 = vunpack.c.l.b16 %v3652
    %v3916 = vunpack.c.l.b16 %v3653
    %v3917 = vunpack.c.l.b16 %v3654
    %v3918 = vunpack.c.l.b16 %v3655
    %v3919 = vunpack.c.l.b16 %v3656
    %v3920 = vunpack.c.l.b16 %v3657
    %v3921 = vunpack.c.l.b16 %v3658
    %v3922 = vunpack.c.l.b16 %v3659
    %v3923 = vunpack.c.l.b16 %v3660
    %v3924 = vunpack.c.l.b16 %v3661
    %v3925 = vunpack.c.l.b16 %v3662
    %v3926 = vunpack.c.l.b16 %v3663
    %v3927 = vunpack.c.l.b16 %v3664
    %v3928 = vunpack.c.l.b16 %v3665
    %v3929 = vunpack.c.l.b16 %v3666
    %v3930 = vunpack.c.l.b16 %v3667
    %v3931 = vunpack.c.l.b16 %v3668
    %v3932 = vunpack.c.l.b16 %v3669
    %v3933 = vunpack.c.l.b16 %v3670
    %v3934 = vunpack.c.l.b16 %v3671
    %v3935 = vunpack.c.l.b16 %v3672
    %v3936 = vunpack.c.l.b16 %v3673
    %v3937 = vunpack.c.l.b16 %v3674
    %v3938 = vunpack.c.l.b16 %v3675
    %v3939 = vunpack.c.l.b16 %v3676
    %v3940 = vunpack.c.l.b16 %v3677
    %v3941 = vunpack.c.l.b16 %v3678
    %v3942 = vunpack.c.l.b16 %v3679
    %v3943 = vpack.c.b16 %v3816, %v3815
    %v3944 = vpack.c.b16 %v3818, %v3817
    %v3945 = vpack.c.b16 %v3820, %v3819
    %v3946 = vpack.c.b16 %v3822, %v3821
    %v3947 = vpack.c.b16 %v3824, %v3823
    %v3948 = vpack.c.b16 %v3826, %v3825
    %v3949 = vpack.c.b16 %v3828, %v3827
    %v3950 = vpack.c.b16 %v3830, %v3829
    %v3951 = vpack.c.b16 %v3832, %v3831
    %v3952 = vpack.c.b16 %v3834, %v3833
    %v3953 = vpack.c.b16 %v3836, %v3835
    %v3954 = vpack.c.b16 %v3838, %v3837
    %v3955 = vpack.c.b16 %v3840, %v3839
    %v3956 = vpack.c.b16 %v3842, %v3841
    %v3957 = vpack.c.b16 %v3844, %v3843
    %v3958 = vpack.c.b16 %v3846, %v3845
    %v3959 = vpack.c.b16 %v3848, %v3847
    %v3960 = vpack.c.b16 %v3850, %v3849
    %v3961 = vpack.c.b16 %v3852, %v3851
    %v3962 = vpack.c.b16 %v3854, %v3853
    %v3963 = vpack.c.b16 %v3856, %v3855
    %v3964 = vpack.c.b16 %v3858, %v3857
    %v3965 = vpack.c.b16 %v3860, %v3859
    %v3966 = vpack.c.b16 %v3862, %v3861
    %v3967 = vpack.c.b16 %v3864, %v3863
    %v3968 = vpack.c.b16 %v3866, %v3865
    %v3969 = vpack.c.b16 %v3868, %v3867
    %v3970 = vpack.c.b16 %v3870, %v3869
    %v3971 = vpack.c.b16 %v3872, %v3871
    %v3972 = vpack.c.b16 %v3874, %v3873
    %v3973 = vpack.c.b16 %v3876, %v3875
    %v3974 = vpack.c.b16 %v3878, %v3877
    %v3975 = vpack.c.b16 %v3880, %v3879
    %v3976 = vpack.c.b16 %v3882, %v3881
    %v3977 = vpack.c.b16 %v3884, %v3883
    %v3978 = vpack.c.b16 %v3886, %v3885
    %v3979 = vpack.c.b16 %v3888, %v3887
    %v3980 = vpack.c.b16 %v3890, %v3889
    %v3981 = vpack.c.b16 %v3892, %v3891
    %v3982 = vpack.c.b16 %v3894, %v3893
    %v3983 = vpack.c.b16 %v3896, %v3895
    %v3984 = vpack.c.b16 %v3898, %v3897
    %v3985 = vpack.c.b16 %v3900, %v3899
    %v3986 = vpack.c.b16 %v3902, %v3901
    %v3987 = vpack.c.b16 %v3904, %v3903
    %v3988 = vpack.c.b16 %v3906, %v3905
    %v3989 = vpack.c.b16 %v3908, %v3907
    %v3990 = vpack.c.b16 %v3910, %v3909
    %v3991 = vpack.c.b16 %v3912, %v3911
    %v3992 = vpack.c.b16 %v3914, %v3913
    %v3993 = vpack.c.b16 %v3916, %v3915
    %v3994 = vpack.c.b16 %v3918, %v3917
    %v3995 = vpack.c.b16 %v3920, %v3919
    %v3996 = vpack.c.b16 %v3922, %v3921
    %v3997 = vpack.c.b16 %v3924, %v3923
    %v3998 = vpack.c.b16 %v3926, %v3925
    %v3999 = vpack.c.b16 %v3928, %v3927
    %v4000 = vpack.c.b16 %v3930, %v3929
    %v4001 = vpack.c.b16 %v3932, %v3931
    %v4002 = vpack.c.b16 %v3934, %v3933
    %v4003 = vpack.c.b16 %v3936, %v3935
    %v4004 = vpack.c.b16 %v3938, %v3937
    %v4005 = vpack.c.b16 %v3940, %v3939
    %v4006 = vpack.c.b16 %v3942, %v3941
    %4071 = vmatprep.subr.bf16.mxu0 0
    %4072 = vmatpush1.bf16.msra.mxu0 %v3950
    %4073 = vmatprep.subr.bf16.mxu0 0
    %4074 = vmatpush1.bf16.msra.mxu0 %v3949
    %4075 = vmatprep.subr.bf16.mxu0 0
    %4076 = vmatpush1.bf16.msra.mxu0 %v3948
    %4077 = vmatprep.subr.bf16.mxu0 0
    %4078 = vmatpush1.bf16.msra.mxu0 %v3947
    %4079 = vmatprep.subr.bf16.mxu0 0
    %4080 = vmatpush1.bf16.msra.mxu0 %v3946
    %4081 = vmatprep.subr.bf16.mxu0 0
    %4082 = vmatpush1.bf16.msra.mxu0 %v3945
    %4083 = vmatprep.subr.bf16.mxu0 0
    %4084 = vmatpush1.bf16.msra.mxu0 %v3944
    %4085 = vmatprep.subr.bf16.mxu0 0
    %4086 = vmatpush1.bf16.msra.mxu0 %v3943
    %4087 = vmatprep.subr.bf16.mxu0 0
    %4088 = vmatpush2.bf16.msra.mxu0 %v3958
    %4089 = vmatprep.subr.bf16.mxu0 0
    %4090 = vmatpush2.bf16.msra.mxu0 %v3957
    %4091 = vmatprep.subr.bf16.mxu0 0
    %4092 = vmatpush2.bf16.msra.mxu0 %v3956
    %4093 = vmatprep.subr.bf16.mxu0 0
    %4094 = vmatpush2.bf16.msra.mxu0 %v3955
    %4095 = vmatprep.subr.bf16.mxu0 0
    %4096 = vmatpush2.bf16.msra.mxu0 %v3954
    %4097 = vmatprep.subr.bf16.mxu0 0
    %4098 = vmatpush2.bf16.msra.mxu0 %v3953
    %4099 = vmatprep.subr.bf16.mxu0 0
    %4100 = vmatpush2.bf16.msra.mxu0 %v3952
    %4101 = vmatprep.subr.bf16.mxu0 0
    %4102 = vmatpush2.bf16.msra.mxu0 %v3951
    %4103 = vmatprep.mubr.bf16.mxu0 %v3545
    %4104 = vmatmul.mubr.bf16.gmra.mxu0 %v3544
    %v4105 = vpop.f32.mrf.mxu0
    %v4106 = vadd.f32 %v3685, %v4105
    %v4107 = vpop.f32.mrf.mxu0
    %v4108 = vpop.f32.mrf.mxu0
    %v4109 = vpop.f32.mrf.mxu0
    %4110 = vdwg.mxu0
    %4111 = vmatprep.subr.bf16.mxu0 0
    %4112 = vmatpush1.bf16.msra.mxu0 %v3966
    %4113 = vmatprep.subr.bf16.mxu0 0
    %4114 = vmatpush1.bf16.msra.mxu0 %v3965
    %4115 = vmatprep.subr.bf16.mxu0 0
    %4116 = vmatpush1.bf16.msra.mxu0 %v3964
    %4117 = vmatprep.subr.bf16.mxu0 0
    %4118 = vmatpush1.bf16.msra.mxu0 %v3963
    %4119 = vmatprep.subr.bf16.mxu0 0
    %4120 = vmatpush1.bf16.msra.mxu0 %v3962
    %4121 = vmatprep.subr.bf16.mxu0 0
    %4122 = vmatpush1.bf16.msra.mxu0 %v3961
    %4123 = vmatprep.subr.bf16.mxu0 0
    %4124 = vmatpush1.bf16.msra.mxu0 %v3960
    %4125 = vmatprep.subr.bf16.mxu0 0
    %4126 = vmatpush1.bf16.msra.mxu0 %v3959
    %4127 = vmatprep.subr.bf16.mxu0 0
    %4128 = vmatpush2.bf16.msra.mxu0 %v3974
    %4129 = vmatprep.subr.bf16.mxu0 0
    %4130 = vmatpush2.bf16.msra.mxu0 %v3973
    %4131 = vmatprep.subr.bf16.mxu0 0
    %4132 = vmatpush2.bf16.msra.mxu0 %v3972
    %4133 = vmatprep.subr.bf16.mxu0 0
    %4134 = vmatpush2.bf16.msra.mxu0 %v3971
    %4135 = vmatprep.subr.bf16.mxu0 0
    %4136 = vmatpush2.bf16.msra.mxu0 %v3970
    %4137 = vmatprep.subr.bf16.mxu0 0
    %4138 = vmatpush2.bf16.msra.mxu0 %v3969
    %4139 = vmatprep.subr.bf16.mxu0 0
    %4140 = vmatpush2.bf16.msra.mxu0 %v3968
    %4141 = vmatprep.subr.bf16.mxu0 0
    %4142 = vmatpush2.bf16.msra.mxu0 %v3967
    %4143 = vmatprep.mubr.bf16.mxu0 %v3547
    %4144 = vmatmul.mubr.bf16.gmra.mxu0 %v3546
    %v4145 = vpop.f32.mrf.mxu0
    %v4146 = vadd.f32 %v4106, %v4145
    %v4147 = vpop.f32.mrf.mxu0
    %v4148 = vpop.f32.mrf.mxu0
    %v4149 = vpop.f32.mrf.mxu0
    %4150 = vdwg.mxu0
    %4151 = vmatprep.subr.bf16.mxu0 0
    %4152 = vmatpush1.bf16.msra.mxu0 %v3982
    %4153 = vmatprep.subr.bf16.mxu0 0
    %4154 = vmatpush1.bf16.msra.mxu0 %v3981
    %4155 = vmatprep.subr.bf16.mxu0 0
    %4156 = vmatpush1.bf16.msra.mxu0 %v3980
    %4157 = vmatprep.subr.bf16.mxu0 0
    %4158 = vmatpush1.bf16.msra.mxu0 %v3979
    %4159 = vmatprep.subr.bf16.mxu0 0
    %4160 = vmatpush1.bf16.msra.mxu0 %v3978
    %4161 = vmatprep.subr.bf16.mxu0 0
    %4162 = vmatpush1.bf16.msra.mxu0 %v3977
    %4163 = vmatprep.subr.bf16.mxu0 0
    %4164 = vmatpush1.bf16.msra.mxu0 %v3976
    %4165 = vmatprep.subr.bf16.mxu0 0
    %4166 = vmatpush1.bf16.msra.mxu0 %v3975
    %4167 = vmatprep.subr.bf16.mxu0 0
    %4168 = vmatpush2.bf16.msra.mxu0 %v3990
    %4169 = vmatprep.subr.bf16.mxu0 0
    %4170 = vmatpush2.bf16.msra.mxu0 %v3989
    %4171 = vmatprep.subr.bf16.mxu0 0
    %4172 = vmatpush2.bf16.msra.mxu0 %v3988
    %4173 = vmatprep.subr.bf16.mxu0 0
    %4174 = vmatpush2.bf16.msra.mxu0 %v3987
    %4175 = vmatprep.subr.bf16.mxu0 0
    %4176 = vmatpush2.bf16.msra.mxu0 %v3986
    %4177 = vmatprep.subr.bf16.mxu0 0
    %4178 = vmatpush2.bf16.msra.mxu0 %v3985
    %4179 = vmatprep.subr.bf16.mxu0 0
    %4180 = vmatpush2.bf16.msra.mxu0 %v3984
    %4181 = vmatprep.subr.bf16.mxu0 0
    %4182 = vmatpush2.bf16.msra.mxu0 %v3983
    %4183 = vmatprep.mubr.bf16.mxu0 %v3549
    %4184 = vmatmul.mubr.bf16.gmra.mxu0 %v3548
    %v4185 = vpop.f32.mrf.mxu0
    %v4186 = vadd.f32 %v4146, %v4185
    %v4187 = vpop.f32.mrf.mxu0
    %v4188 = vpop.f32.mrf.mxu0
    %v4189 = vpop.f32.mrf.mxu0
    %4190 = vdwg.mxu0
    %4191 = vmatprep.subr.bf16.mxu0 0
    %4192 = vmatpush1.bf16.msra.mxu0 %v3998
    %4193 = vmatprep.subr.bf16.mxu0 0
    %4194 = vmatpush1.bf16.msra.mxu0 %v3997
    %4195 = vmatprep.subr.bf16.mxu0 0
    %4196 = vmatpush1.bf16.msra.mxu0 %v3996
    %4197 = vmatprep.subr.bf16.mxu0 0
    %4198 = vmatpush1.bf16.msra.mxu0 %v3995
    %4199 = vmatprep.subr.bf16.mxu0 0
    %4200 = vmatpush1.bf16.msra.mxu0 %v3994
    %4201 = vmatprep.subr.bf16.mxu0 0
    %4202 = vmatpush1.bf16.msra.mxu0 %v3993
    %4203 = vmatprep.subr.bf16.mxu0 0
    %4204 = vmatpush1.bf16.msra.mxu0 %v3992
    %4205 = vmatprep.subr.bf16.mxu0 0
    %4206 = vmatpush1.bf16.msra.mxu0 %v3991
    %4207 = vmatprep.subr.bf16.mxu0 0
    %4208 = vmatpush2.bf16.msra.mxu0 %v4006
    %4209 = vmatprep.subr.bf16.mxu0 0
    %4210 = vmatpush2.bf16.msra.mxu0 %v4005
    %4211 = vmatprep.subr.bf16.mxu0 0
    %4212 = vmatpush2.bf16.msra.mxu0 %v4004
    %4213 = vmatprep.subr.bf16.mxu0 0
    %4214 = vmatpush2.bf16.msra.mxu0 %v4003
    %4215 = vmatprep.subr.bf16.mxu0 0
    %4216 = vmatpush2.bf16.msra.mxu0 %v4002
    %4217 = vmatprep.subr.bf16.mxu0 0
    %4218 = vmatpush2.bf16.msra.mxu0 %v4001
    %4219 = vmatprep.subr.bf16.mxu0 0
    %4220 = vmatpush2.bf16.msra.mxu0 %v4000
    %4221 = vmatprep.subr.bf16.mxu0 0
    %4222 = vmatpush2.bf16.msra.mxu0 %v3999
    %4223 = vmatprep.mubr.bf16.mxu0 %v3551
    %4224 = vmatmul.mubr.bf16.gmra.mxu0 %v3550
    %v4225 = vpop.f32.mrf.mxu0
    %v4226 = vadd.f32 %v4186, %v4225
    %v4227 = vpop.f32.mrf.mxu0
    %v4228 = vpop.f32.mrf.mxu0
    %v4229 = vpop.f32.mrf.mxu0
    %4230 = vdwg.mxu0
    %4231 = vst [vmem:[%s15] sm:$0xff] %v4226
    // Predicated region
    $region82: #{mfccnet_forward.1} parent=1 // pred_check
      _
    $region83: #{mfccnet_forward.1} parent=1 // pred_check_branch
      %4233 = sbr.rel (0) target = $region85
    $region84: #{mfccnet_forward.1} parent=1 // pred_region
      _
    $region85: #{mfccnet_forward.1} parent=1 // pred_fallthru
      _
    // Predicated region
    $region86: #{mfccnet_forward.1} parent=1 // pred_check
      _
    $region87: #{mfccnet_forward.1} parent=1 // pred_check_branch
      %4235 = sbr.rel (0) target = $region89
    $region88: #{mfccnet_forward.1} parent=1 // pred_region
      _
    $region89: #{mfccnet_forward.1} parent=1 // pred_fallthru
      _
    %4236 = vsyncpa [#allocation3], 1
    %4237 = vsyncpa [#allocation5], 1
    %4238 = vsyncpa [#allocation8], 1

</llo_original>
